<compile_context>
chip_gen: v7x
topology: tpu7x:2x2x1
jax: 0.10.0
libtpu: 0.0.40
codegen_flags: <defaults>
</compile_context>

<pallas_src>
import functools
import math

import jax
import jax.numpy as jnp
from jax.experimental import pallas as pl
from jax.experimental.pallas import tpu as pltpu

EPS = 1e-6


# ----------------------------------------------------------------------------
# In-kernel helpers
# ----------------------------------------------------------------------------
def _layernorm_rows(x, a, b, eps):
    """torch-style LayerNorm: unbiased std, normalize by (std + eps)."""
    d = x.shape[-1]
    mean = jnp.mean(x, axis=-1, keepdims=True)
    var = jnp.sum((x - mean) ** 2, axis=-1, keepdims=True) / (d - 1)
    return a * (x - mean) / (jnp.sqrt(var) + eps) + b


def _mha_out(q, k, v, mask, wo_ref, bo, nheads):
    """Multi-head attention + output projection (accumulated per head).

    q: [T, D], k/v: [S, D] (fp32), mask: [Tm, S] broadcastable over T.
    Returns attention output after the output projection, shape [T, D].
    """
    t, d = q.shape
    dk = d // nheads
    scale = 1.0 / math.sqrt(dk)
    kt = k.T                                                     # [D, S]
    acc = jnp.zeros((t, d), jnp.float32)
    for hh in range(nheads):                                     # static unroll
        lo = hh * dk
        qh = q[:, lo:lo + dk]                                    # [T, dk]
        s = jnp.dot(qh, kt[lo:lo + dk, :],
                    preferred_element_type=jnp.float32) * scale  # [T, S]
        s = jnp.where(mask == 0.0, -1e9, s)
        s = s - jnp.max(s, axis=-1, keepdims=True)
        p = jnp.exp(s)
        p = p / jnp.sum(p, axis=-1, keepdims=True)
        ctx = jnp.dot(p, v[:, lo:lo + dk],
                      preferred_element_type=jnp.float32)        # [T, dk]
        acc = acc + jnp.dot(ctx.astype(jnp.bfloat16),
                            wo_ref[pl.ds(lo, dk), :].astype(jnp.bfloat16),
                            preferred_element_type=jnp.float32)
    return acc + bo


# ----------------------------------------------------------------------------
# Fused sublayer kernels
# ----------------------------------------------------------------------------
def self_attn_kernel(x_ref, mask_ref, a_ref, b_ref,
                     wqkv_ref, bqkv_ref, wo_ref, bo_ref, o_ref,
                     *, nheads, eps):
    """LN -> fused QKV -> multi-head self-attn -> out-proj -> residual."""
    x = x_ref[0].astype(jnp.float32)                             # [T, D]
    mask = mask_ref[0]                                           # [Tm, T]
    d = x.shape[-1]
    y = _layernorm_rows(x, a_ref[...], b_ref[...], eps)
    qkv = jnp.dot(y.astype(jnp.bfloat16),
                  wqkv_ref[...].astype(jnp.bfloat16),
                  preferred_element_type=jnp.float32) + bqkv_ref[...]
    q = qkv[:, :d]
    k = qkv[:, d:2 * d]
    v = qkv[:, 2 * d:]
    o_ref[0] = x + _mha_out(q, k, v, mask, wo_ref, bo_ref[...], nheads)


def src_attn_kernel(x_ref, mem_ref, mask_ref, a_ref, b_ref,
                    wq_ref, bq_ref, wkv_ref, bkv_ref, wo_ref, bo_ref, o_ref,
                    *, nheads, eps):
    """LN -> Q proj + fused KV proj on memory -> attn -> out-proj -> residual."""
    x = x_ref[0].astype(jnp.float32)                             # [T, D]
    mem = mem_ref[0].astype(jnp.float32)                         # [S, D]
    mask = mask_ref[0]                                           # [Tm, S]
    d = x.shape[-1]
    y = _layernorm_rows(x, a_ref[...], b_ref[...], eps)
    q = jnp.dot(y.astype(jnp.bfloat16), wq_ref[...].astype(jnp.bfloat16),
                preferred_element_type=jnp.float32) + bq_ref[...]
    kv = jnp.dot(mem.astype(jnp.bfloat16), wkv_ref[...].astype(jnp.bfloat16),
                 preferred_element_type=jnp.float32) + bkv_ref[...]
    k = kv[:, :d]
    v = kv[:, d:]
    o_ref[0] = x + _mha_out(q, k, v, mask, wo_ref, bo_ref[...], nheads)


def ffn_kernel(x_ref, a_ref, b_ref, w1_ref, b1_ref, w2_ref, b2_ref, o_ref,
               *, eps):
    """LN -> W1 + ReLU -> W2 -> residual (rows tiled over grid)."""
    x = x_ref[...].astype(jnp.float32)                           # [R, D]
    y = _layernorm_rows(x, a_ref[...], b_ref[...], eps)
    h = jnp.dot(y.astype(jnp.bfloat16), w1_ref[...].astype(jnp.bfloat16),
                preferred_element_type=jnp.float32) + b1_ref[...]
    h = jnp.maximum(h, 0.0)
    out = jnp.dot(h.astype(jnp.bfloat16), w2_ref[...].astype(jnp.bfloat16),
                  preferred_element_type=jnp.float32) + b2_ref[...]
    o_ref[...] = x + out


def layernorm_kernel(x_ref, a_ref, b_ref, o_ref, *, eps):
    x = x_ref[...].astype(jnp.float32)
    o_ref[...] = _layernorm_rows(x, a_ref[...], b_ref[...], eps)


# ----------------------------------------------------------------------------
# Pallas wrappers
# ----------------------------------------------------------------------------
def _row_tile(rows):
    for t in (512, 256, 128, 64, 32, 16, 8):
        if rows % t == 0:
            return t
    return rows


def _const2d(_):
    return (0, 0)


def self_attn_sublayer(x, mask, p, nheads):
    B, T, D = x.shape
    Bm, Tm, S = mask.shape
    mask_idx = (lambda b: (b, 0, 0)) if Bm == B else (lambda b: (0, 0, 0))
    return pl.pallas_call(
        functools.partial(self_attn_kernel, nheads=nheads, eps=EPS),
        out_shape=jax.ShapeDtypeStruct((B, T, D), jnp.float32),
        grid=(B,),
        in_specs=[
            pl.BlockSpec((1, T, D), lambda b: (b, 0, 0)),
            pl.BlockSpec((1, Tm, S), mask_idx),
            pl.BlockSpec((1, D), _const2d),
            pl.BlockSpec((1, D), _const2d),
            pl.BlockSpec((D, 3 * D), _const2d),
            pl.BlockSpec((1, 3 * D), _const2d),
            pl.BlockSpec((D, D), _const2d),
            pl.BlockSpec((1, D), _const2d),
        ],
        out_specs=pl.BlockSpec((1, T, D), lambda b: (b, 0, 0)),
        compiler_params=pltpu.CompilerParams(
            dimension_semantics=("parallel",)),
    )(x, mask,
      p["ln_a"].reshape(1, D), p["ln_b"].reshape(1, D),
      p["wqkv"], p["bqkv"].reshape(1, 3 * D),
      p["wo"], p["bo"].reshape(1, D))


def src_attn_sublayer(x, memory, mask, p, nheads):
    B, T, D = x.shape
    S = memory.shape[1]
    Bm, Tm, Sm = mask.shape
    mask_idx = (lambda b: (b, 0, 0)) if Bm == B else (lambda b: (0, 0, 0))
    return pl.pallas_call(
        functools.partial(src_attn_kernel, nheads=nheads, eps=EPS),
        out_shape=jax.ShapeDtypeStruct((B, T, D), jnp.float32),
        grid=(B,),
        in_specs=[
            pl.BlockSpec((1, T, D), lambda b: (b, 0, 0)),
            pl.BlockSpec((1, S, D), lambda b: (b, 0, 0)),
            pl.BlockSpec((1, Tm, Sm), mask_idx),
            pl.BlockSpec((1, D), _const2d),
            pl.BlockSpec((1, D), _const2d),
            pl.BlockSpec((D, D), _const2d),
            pl.BlockSpec((1, D), _const2d),
            pl.BlockSpec((D, 2 * D), _const2d),
            pl.BlockSpec((1, 2 * D), _const2d),
            pl.BlockSpec((D, D), _const2d),
            pl.BlockSpec((1, D), _const2d),
        ],
        out_specs=pl.BlockSpec((1, T, D), lambda b: (b, 0, 0)),
        compiler_params=pltpu.CompilerParams(
            dimension_semantics=("parallel",)),
    )(x, memory, mask,
      p["ln_a"].reshape(1, D), p["ln_b"].reshape(1, D),
      p["wq"], p["bq"].reshape(1, D),
      p["wkv"], p["bkv"].reshape(1, 2 * D),
      p["wo"], p["bo"].reshape(1, D))


def ffn_sublayer(x, p):
    B, T, D = x.shape
    R = B * T
    DFF = p["w1"].shape[1]
    tr = _row_tile(R)
    out = pl.pallas_call(
        functools.partial(ffn_kernel, eps=EPS),
        out_shape=jax.ShapeDtypeStruct((R, D), jnp.float32),
        grid=(R // tr,),
        in_specs=[
            pl.BlockSpec((tr, D), lambda i: (i, 0)),
            pl.BlockSpec((1, D), lambda i: (0, 0)),
            pl.BlockSpec((1, D), lambda i: (0, 0)),
            pl.BlockSpec((D, DFF), lambda i: (0, 0)),
            pl.BlockSpec((1, DFF), lambda i: (0, 0)),
            pl.BlockSpec((DFF, D), lambda i: (0, 0)),
            pl.BlockSpec((1, D), lambda i: (0, 0)),
        ],
        out_specs=pl.BlockSpec((tr, D), lambda i: (i, 0)),
        compiler_params=pltpu.CompilerParams(
            dimension_semantics=("parallel",)),
    )(x.reshape(R, D),
      p["ln_a"].reshape(1, D), p["ln_b"].reshape(1, D),
      p["w1"], p["b1"].reshape(1, DFF),
      p["w2"], p["b2"].reshape(1, D))
    return out.reshape(B, T, D)


def layernorm(x, a, b):
    B, T, D = x.shape
    R = B * T
    tr = _row_tile(R)
    out = pl.pallas_call(
        functools.partial(layernorm_kernel, eps=EPS),
        out_shape=jax.ShapeDtypeStruct((R, D), jnp.float32),
        grid=(R // tr,),
        in_specs=[pl.BlockSpec((tr, D), lambda i: (i, 0)),
                  pl.BlockSpec((1, D), lambda i: (0, 0)),
                  pl.BlockSpec((1, D), lambda i: (0, 0))],
        out_specs=pl.BlockSpec((tr, D), lambda i: (i, 0)),
        compiler_params=pltpu.CompilerParams(
            dimension_semantics=("parallel",)),
    )(x.reshape(R, D), a.reshape(1, D), b.reshape(1, D))
    return out.reshape(B, T, D)


# ----------------------------------------------------------------------------
# Model glue (plain JAX orchestration of the fused-sublayer kernels)
# ----------------------------------------------------------------------------
def embed(tokens, table, pe):
    # TODO(synk): token-embedding gather stays in XLA (no clean small Pallas
    # equivalent); positional encoding add is a trivially fused XLA op.
    D = table.shape[1]
    x = jnp.take(table, tokens, axis=0) * math.sqrt(D)
    return x + pe[None, :tokens.shape[1], :]


def encoder_layer(p, x, src_mask, h):
    x = self_attn_sublayer(x, src_mask, p["self_attn"], h)
    return ffn_sublayer(x, p["ffn"])


def decoder_layer(p, x, memory, src_mask, tgt_mask, h):
    x = self_attn_sublayer(x, tgt_mask, p["self_attn"], h)
    x = src_attn_sublayer(x, memory, src_mask, p["src_attn"], h)
    return ffn_sublayer(x, p["ffn"])


def encode(params, src, src_mask, h):
    x = embed(src, params["src_emb"], params["pe"])
    for lp in params["enc_layers"]:
        x = encoder_layer(lp, x, src_mask, h)
    return layernorm(x, params["enc_norm_a"], params["enc_norm_b"])


def decode(params, memory, src_mask, tgt, tgt_mask, h):
    x = embed(tgt, params["tgt_emb"], params["pe"])
    for lp in params["dec_layers"]:
        x = decoder_layer(lp, x, memory, src_mask, tgt_mask, h)
    return layernorm(x, params["dec_norm_a"], params["dec_norm_b"])


def encoder_decoder_forward(params, src, tgt, src_mask, tgt_mask, h):
    memory = encode(params, src, src_mask, h)
    return decode(params, memory, src_mask, tgt, tgt_mask, h)


# ----------------------------------------------------------------------------
# Deterministic parameter construction
# ----------------------------------------------------------------------------
def make_pe(max_len, D):
    pos = jnp.arange(max_len, dtype=jnp.float32)[:, None]
    div = jnp.exp(jnp.arange(0, D, 2, dtype=jnp.float32)
                  * (-math.log(10000.0) / D))
    ang = pos * div[None, :]
    pe = jnp.zeros((max_len, D), jnp.float32)
    pe = pe.at[:, 0::2].set(jnp.sin(ang))
    pe = pe.at[:, 1::2].set(jnp.cos(ang))
    return pe


def _ln(D):
    return {"ln_a": jnp.ones((D,), jnp.float32),
            "ln_b": jnp.zeros((D,), jnp.float32)}


def _self_attn_params(key, D):
    k1, k2 = jax.random.split(key)
    p = _ln(D)
    p.update({"wqkv": 0.02 * jax.random.normal(k1, (D, 3 * D), jnp.float32),
              "bqkv": jnp.zeros((3 * D,), jnp.float32),
              "wo": 0.02 * jax.random.normal(k2, (D, D), jnp.float32),
              "bo": jnp.zeros((D,), jnp.float32)})
    return p


def _src_attn_params(key, D):
    k1, k2, k3 = jax.random.split(key, 3)
    p = _ln(D)
    p.update({"wq": 0.02 * jax.random.normal(k1, (D, D), jnp.float32),
              "bq": jnp.zeros((D,), jnp.float32),
              "wkv": 0.02 * jax.random.normal(k2, (D, 2 * D), jnp.float32),
              "bkv": jnp.zeros((2 * D,), jnp.float32),
              "wo": 0.02 * jax.random.normal(k3, (D, D), jnp.float32),
              "bo": jnp.zeros((D,), jnp.float32)})
    return p


def _ffn_params(key, D, DFF):
    k1, k2 = jax.random.split(key)
    p = _ln(D)
    p.update({"w1": 0.02 * jax.random.normal(k1, (D, DFF), jnp.float32),
              "b1": jnp.zeros((DFF,), jnp.float32),
              "w2": 0.02 * jax.random.normal(k2, (DFF, D), jnp.float32),
              "b2": jnp.zeros((D,), jnp.float32)})
    return p


def make_params(key, vocab, D, DFF, N, max_len):
    k_se, k_te, k_enc, k_dec = jax.random.split(key, 4)
    enc_layers = []
    for k in jax.random.split(k_enc, N):
        ka, kf = jax.random.split(k)
        enc_layers.append({"self_attn": _self_attn_params(ka, D),
                           "ffn": _ffn_params(kf, D, DFF)})
    dec_layers = []
    for k in jax.random.split(k_dec, N):
        ka, ks, kf = jax.random.split(k, 3)
        dec_layers.append({"self_attn": _self_attn_params(ka, D),
                           "src_attn": _src_attn_params(ks, D),
                           "ffn": _ffn_params(kf, D, DFF)})
    return {"src_emb": 0.02 * jax.random.normal(k_se, (vocab, D), jnp.float32),
            "tgt_emb": 0.02 * jax.random.normal(k_te, (vocab, D), jnp.float32),
            "pe": make_pe(max_len, D),
            "enc_layers": enc_layers,
            "dec_layers": dec_layers,
            "enc_norm_a": jnp.ones((D,), jnp.float32),
            "enc_norm_b": jnp.zeros((D,), jnp.float32),
            "dec_norm_a": jnp.ones((D,), jnp.float32),
            "dec_norm_b": jnp.zeros((D,), jnp.float32)}


# ----------------------------------------------------------------------------
if __name__ == "__main__":
    B, S, T, D, H, DFF, N, VOCAB = 2, 8, 8, 32, 4, 64, 2, 16

    key = jax.random.PRNGKey(0)
    kp, ks, kt = jax.random.split(key, 3)
    params = make_params(kp, VOCAB, D, DFF, N, max_len=32)

    src = jax.random.randint(ks, (B, S), 0, VOCAB)
    tgt = jax.random.randint(kt, (B, T), 0, VOCAB)

    # padding mask over source keys [B, 1, S]; causal mask over target [1, T, T]
    src_len = jnp.array([S, S - 2])
    src_mask = (jnp.arange(S)[None, None, :]
                < src_len[:, None, None]).astype(jnp.float32)
    tgt_mask = jnp.tril(jnp.ones((T, T), jnp.float32))[None, :, :]

    fwd = jax.jit(functools.partial(encoder_decoder_forward, h=H))
    out = fwd(params, src, tgt, src_mask, tgt_mask)
    jax.block_until_ready(out)

    assert out.shape == (B, T, D)
    assert bool(jnp.all(jnp.isfinite(out)))
    print("KERNEL_OK")
</pallas_src>

<mosaic_0001>
module attributes {stable_mosaic.version = 11 : i64} {
  func.func @self_attn_kernel(%arg0: i32, %arg1: memref<1x8x32xf32, #tpu.memory_space<vmem>>, %arg2: memref<1x8x8xf32, #tpu.memory_space<vmem>>, %arg3: memref<1x32xf32, #tpu.memory_space<vmem>>, %arg4: memref<1x32xf32, #tpu.memory_space<vmem>>, %arg5: memref<32x96xf32, #tpu.memory_space<vmem>>, %arg6: memref<1x96xf32, #tpu.memory_space<vmem>>, %arg7: memref<32x32xf32, #tpu.memory_space<vmem>>, %arg8: memref<1x32xf32, #tpu.memory_space<vmem>>, %arg9: memref<1x8x32xf32, #tpu.memory_space<vmem>>) attributes {dimension_semantics = [#tpu.dimension_semantics<parallel>], iteration_bounds = array<i64: 2>, scalar_prefetch = 0 : i64, scratch_operands = 0 : i64, tpu.core_type = #tpu.core_type<tc>, window_params = [{transform_indices = @transform_0, window_bounds = array<i64: 1, 8, 32>}, {pipeline_mode = #tpu.pipeline_mode<synchronous>, transform_indices = @transform_1, window_bounds = array<i64: 1, 8, 8>}, {pipeline_mode = #tpu.pipeline_mode<synchronous>, transform_indices = @transform_2, window_bounds = array<i64: 1, 32>}, {pipeline_mode = #tpu.pipeline_mode<synchronous>, transform_indices = @transform_3, window_bounds = array<i64: 1, 32>}, {pipeline_mode = #tpu.pipeline_mode<synchronous>, transform_indices = @transform_4, window_bounds = array<i64: 32, 96>}, {pipeline_mode = #tpu.pipeline_mode<synchronous>, transform_indices = @transform_5, window_bounds = array<i64: 1, 96>}, {pipeline_mode = #tpu.pipeline_mode<synchronous>, transform_indices = @transform_6, window_bounds = array<i64: 32, 32>}, {pipeline_mode = #tpu.pipeline_mode<synchronous>, transform_indices = @transform_7, window_bounds = array<i64: 1, 32>}, {transform_indices = @transform_8, window_bounds = array<i64: 1, 8, 32>}]} {
    %c0 = arith.constant 0 : index
    %c0_0 = arith.constant 0 : index
    %c0_1 = arith.constant 0 : index
    %0 = vector.load %arg1[%c0, %c0_0, %c0_1] : memref<1x8x32xf32, #tpu.memory_space<vmem>>, vector<1x8x32xf32>
    %1 = vector.shape_cast %0 : vector<1x8x32xf32> to vector<8x32xf32>
    %c0_2 = arith.constant 0 : index
    %c0_3 = arith.constant 0 : index
    %c0_4 = arith.constant 0 : index
    %2 = vector.load %arg2[%c0_2, %c0_3, %c0_4] : memref<1x8x8xf32, #tpu.memory_space<vmem>>, vector<1x8x8xf32>
    %3 = vector.shape_cast %2 : vector<1x8x8xf32> to vector<8x8xf32>
    %c0_5 = arith.constant 0 : index
    %c0_6 = arith.constant 0 : index
    %4 = vector.load %arg3[%c0_5, %c0_6] : memref<1x32xf32, #tpu.memory_space<vmem>>, vector<1x32xf32>
    %c0_7 = arith.constant 0 : index
    %c0_8 = arith.constant 0 : index
    %5 = vector.load %arg4[%c0_7, %c0_8] : memref<1x32xf32, #tpu.memory_space<vmem>>, vector<1x32xf32>
    %cst = arith.constant dense<0.000000e+00> : vector<8xf32>
    %6 = vector.multi_reduction <add>, %1, %cst [1] : vector<8x32xf32> to vector<8xf32>
    %7 = vector.shape_cast %6 : vector<8xf32> to vector<8x1xf32>
    %cst_9 = arith.constant 3.200000e+01 : f32
    %8 = vector.broadcast %cst_9 : f32 to vector<8x1xf32>
    %9 = arith.divf %7, %8 : vector<8x1xf32>
    %10 = vector.broadcast %9 : vector<8x1xf32> to vector<8x32xf32>
    %11 = arith.subf %1, %10 : vector<8x32xf32>
    %12 = arith.mulf %11, %11 : vector<8x32xf32>
    %cst_10 = arith.constant dense<0.000000e+00> : vector<8xf32>
    %13 = vector.multi_reduction <add>, %12, %cst_10 [1] : vector<8x32xf32> to vector<8xf32>
    %14 = vector.shape_cast %13 : vector<8xf32> to vector<8x1xf32>
    %cst_11 = arith.constant 3.100000e+01 : f32
    %15 = vector.broadcast %cst_11 : f32 to vector<8x1xf32>
    %16 = arith.divf %14, %15 : vector<8x1xf32>
    %17 = vector.broadcast %9 : vector<8x1xf32> to vector<8x32xf32>
    %18 = arith.subf %1, %17 : vector<8x32xf32>
    %19 = vector.broadcast %4 : vector<1x32xf32> to vector<8x32xf32>
    %20 = arith.mulf %19, %18 : vector<8x32xf32>
    %21 = math.sqrt %16 : vector<8x1xf32>
    %cst_12 = arith.constant 9.99999997E-7 : f32
    %22 = vector.broadcast %cst_12 : f32 to vector<8x1xf32>
    %23 = arith.addf %21, %22 : vector<8x1xf32>
    %24 = vector.broadcast %23 : vector<8x1xf32> to vector<8x32xf32>
    %25 = arith.divf %20, %24 : vector<8x32xf32>
    %26 = vector.broadcast %5 : vector<1x32xf32> to vector<8x32xf32>
    %27 = arith.addf %25, %26 : vector<8x32xf32>
    %28 = arith.truncf %27 : vector<8x32xf32> to vector<8x32xbf16>
    %c0_13 = arith.constant 0 : index
    %c0_14 = arith.constant 0 : index
    %29 = vector.load %arg5[%c0_13, %c0_14] : memref<32x96xf32, #tpu.memory_space<vmem>>, vector<32x96xf32>
    %30 = arith.truncf %29 : vector<32x96xf32> to vector<32x96xbf16>
    %cst_15 = arith.constant dense<0.000000e+00> : vector<8x96xf32>
    %31 = tpu.matmul %28, %30, %cst_15 {dimension_numbers = #tpu.dot_dimension_numbers<[1], [0], [0], [1], [0, 0, 1, 1], [], []>} : vector<8x32xbf16>, vector<32x96xbf16>, vector<8x96xf32> -> vector<8x96xf32>
    %c0_16 = arith.constant 0 : index
    %c0_17 = arith.constant 0 : index
    %32 = vector.load %arg6[%c0_16, %c0_17] : memref<1x96xf32, #tpu.memory_space<vmem>>, vector<1x96xf32>
    %33 = vector.broadcast %32 : vector<1x96xf32> to vector<8x96xf32>
    %34 = arith.addf %31, %33 : vector<8x96xf32>
    %35 = vector.extract_strided_slice %34 {offsets = [0, 0], sizes = [8, 32], strides = [1, 1]} : vector<8x96xf32> to vector<8x32xf32>
    %36 = vector.extract_strided_slice %34 {offsets = [0, 32], sizes = [8, 32], strides = [1, 1]} : vector<8x96xf32> to vector<8x32xf32>
    %37 = vector.extract_strided_slice %34 {offsets = [0, 64], sizes = [8, 32], strides = [1, 1]} : vector<8x96xf32> to vector<8x32xf32>
    %c0_18 = arith.constant 0 : index
    %c0_19 = arith.constant 0 : index
    %38 = vector.load %arg8[%c0_18, %c0_19] : memref<1x32xf32, #tpu.memory_space<vmem>>, vector<1x32xf32>
    %39 = tpu.transpose %36, [1, 0] : vector<8x32xf32> -> vector<32x8xf32>
    %cst_20 = arith.constant 0.000000e+00 : f32
    %40 = vector.broadcast %cst_20 : f32 to vector<8x32xf32>
    %41 = vector.extract_strided_slice %35 {offsets = [0, 0], sizes = [8, 8], strides = [1, 1]} : vector<8x32xf32> to vector<8x8xf32>
    %42 = vector.extract_strided_slice %39 {offsets = [0, 0], sizes = [8, 8], strides = [1, 1]} : vector<32x8xf32> to vector<8x8xf32>
    %cst_21 = arith.constant dense<0.000000e+00> : vector<8x8xf32>
    %43 = tpu.matmul %41, %42, %cst_21 {dimension_numbers = #tpu.dot_dimension_numbers<[1], [0], [0], [1], [0, 0, 1, 1], [], []>} : vector<8x8xf32>, vector<8x8xf32>, vector<8x8xf32> -> vector<8x8xf32>
    %cst_22 = arith.constant 0.353553385 : f32
    %44 = vector.broadcast %cst_22 : f32 to vector<8x8xf32>
    %45 = arith.mulf %43, %44 : vector<8x8xf32>
    %cst_23 = arith.constant 0.000000e+00 : f32
    %46 = vector.broadcast %cst_23 : f32 to vector<8x8xf32>
    %47 = arith.cmpf oeq, %3, %46 : vector<8x8xf32>
    %cst_24 = arith.constant -1.000000e+09 : f32
    %48 = vector.broadcast %cst_24 : f32 to vector<8x8xf32>
    %49 = arith.select %47, %48, %45 : vector<8x8xi1>, vector<8x8xf32>
    %cst_25 = arith.constant dense<0xFF800000> : vector<8xf32>
    %50 = vector.multi_reduction <maximumf>, %49, %cst_25 [1] : vector<8x8xf32> to vector<8xf32>
    %51 = vector.shape_cast %50 : vector<8xf32> to vector<8x1xf32>
    %52 = vector.broadcast %51 : vector<8x1xf32> to vector<8x8xf32>
    %53 = arith.subf %49, %52 : vector<8x8xf32>
    %54 = math.exp %53 : vector<8x8xf32>
    %cst_26 = arith.constant dense<0.000000e+00> : vector<8xf32>
    %55 = vector.multi_reduction <add>, %54, %cst_26 [1] : vector<8x8xf32> to vector<8xf32>
    %56 = vector.shape_cast %55 : vector<8xf32> to vector<8x1xf32>
    %57 = vector.broadcast %56 : vector<8x1xf32> to vector<8x8xf32>
    %58 = arith.divf %54, %57 : vector<8x8xf32>
    %59 = vector.extract_strided_slice %37 {offsets = [0, 0], sizes = [8, 8], strides = [1, 1]} : vector<8x32xf32> to vector<8x8xf32>
    %cst_27 = arith.constant dense<0.000000e+00> : vector<8x8xf32>
    %60 = tpu.matmul %58, %59, %cst_27 {dimension_numbers = #tpu.dot_dimension_numbers<[1], [0], [0], [1], [0, 0, 1, 1], [], []>} : vector<8x8xf32>, vector<8x8xf32>, vector<8x8xf32> -> vector<8x8xf32>
    %61 = arith.truncf %60 : vector<8x8xf32> to vector<8x8xbf16>
    %c0_28 = arith.constant 0 : index
    %c0_29 = arith.constant 0 : index
    %62 = vector.load %arg7[%c0_28, %c0_29] : memref<32x32xf32, #tpu.memory_space<vmem>>, vector<8x32xf32>
    %63 = arith.truncf %62 : vector<8x32xf32> to vector<8x32xbf16>
    %cst_30 = arith.constant dense<0.000000e+00> : vector<8x32xf32>
    %64 = tpu.matmul %61, %63, %cst_30 {dimension_numbers = #tpu.dot_dimension_numbers<[1], [0], [0], [1], [0, 0, 1, 1], [], []>} : vector<8x8xbf16>, vector<8x32xbf16>, vector<8x32xf32> -> vector<8x32xf32>
    %65 = arith.addf %40, %64 : vector<8x32xf32>
    %66 = vector.extract_strided_slice %35 {offsets = [0, 8], sizes = [8, 8], strides = [1, 1]} : vector<8x32xf32> to vector<8x8xf32>
    %67 = vector.extract_strided_slice %39 {offsets = [8, 0], sizes = [8, 8], strides = [1, 1]} : vector<32x8xf32> to vector<8x8xf32>
    %cst_31 = arith.constant dense<0.000000e+00> : vector<8x8xf32>
    %68 = tpu.matmul %66, %67, %cst_31 {dimension_numbers = #tpu.dot_dimension_numbers<[1], [0], [0], [1], [0, 0, 1, 1], [], []>} : vector<8x8xf32>, vector<8x8xf32>, vector<8x8xf32> -> vector<8x8xf32>
    %cst_32 = arith.constant 0.353553385 : f32
    %69 = vector.broadcast %cst_32 : f32 to vector<8x8xf32>
    %70 = arith.mulf %68, %69 : vector<8x8xf32>
    %cst_33 = arith.constant 0.000000e+00 : f32
    %71 = vector.broadcast %cst_33 : f32 to vector<8x8xf32>
    %72 = arith.cmpf oeq, %3, %71 : vector<8x8xf32>
    %cst_34 = arith.constant -1.000000e+09 : f32
    %73 = vector.broadcast %cst_34 : f32 to vector<8x8xf32>
    %74 = arith.select %72, %73, %70 : vector<8x8xi1>, vector<8x8xf32>
    %cst_35 = arith.constant dense<0xFF800000> : vector<8xf32>
    %75 = vector.multi_reduction <maximumf>, %74, %cst_35 [1] : vector<8x8xf32> to vector<8xf32>
    %76 = vector.shape_cast %75 : vector<8xf32> to vector<8x1xf32>
    %77 = vector.broadcast %76 : vector<8x1xf32> to vector<8x8xf32>
    %78 = arith.subf %74, %77 : vector<8x8xf32>
    %79 = math.exp %78 : vector<8x8xf32>
    %cst_36 = arith.constant dense<0.000000e+00> : vector<8xf32>
    %80 = vector.multi_reduction <add>, %79, %cst_36 [1] : vector<8x8xf32> to vector<8xf32>
    %81 = vector.shape_cast %80 : vector<8xf32> to vector<8x1xf32>
    %82 = vector.broadcast %81 : vector<8x1xf32> to vector<8x8xf32>
    %83 = arith.divf %79, %82 : vector<8x8xf32>
    %84 = vector.extract_strided_slice %37 {offsets = [0, 8], sizes = [8, 8], strides = [1, 1]} : vector<8x32xf32> to vector<8x8xf32>
    %cst_37 = arith.constant dense<0.000000e+00> : vector<8x8xf32>
    %85 = tpu.matmul %83, %84, %cst_37 {dimension_numbers = #tpu.dot_dimension_numbers<[1], [0], [0], [1], [0, 0, 1, 1], [], []>} : vector<8x8xf32>, vector<8x8xf32>, vector<8x8xf32> -> vector<8x8xf32>
    %86 = arith.truncf %85 : vector<8x8xf32> to vector<8x8xbf16>
    %c8 = arith.constant 8 : index
    %c0_38 = arith.constant 0 : index
    %87 = vector.load %arg7[%c8, %c0_38] : memref<32x32xf32, #tpu.memory_space<vmem>>, vector<8x32xf32>
    %88 = arith.truncf %87 : vector<8x32xf32> to vector<8x32xbf16>
    %cst_39 = arith.constant dense<0.000000e+00> : vector<8x32xf32>
    %89 = tpu.matmul %86, %88, %cst_39 {dimension_numbers = #tpu.dot_dimension_numbers<[1], [0], [0], [1], [0, 0, 1, 1], [], []>} : vector<8x8xbf16>, vector<8x32xbf16>, vector<8x32xf32> -> vector<8x32xf32>
    %90 = arith.addf %65, %89 : vector<8x32xf32>
    %91 = vector.extract_strided_slice %35 {offsets = [0, 16], sizes = [8, 8], strides = [1, 1]} : vector<8x32xf32> to vector<8x8xf32>
    %92 = vector.extract_strided_slice %39 {offsets = [16, 0], sizes = [8, 8], strides = [1, 1]} : vector<32x8xf32> to vector<8x8xf32>
    %cst_40 = arith.constant dense<0.000000e+00> : vector<8x8xf32>
    %93 = tpu.matmul %91, %92, %cst_40 {dimension_numbers = #tpu.dot_dimension_numbers<[1], [0], [0], [1], [0, 0, 1, 1], [], []>} : vector<8x8xf32>, vector<8x8xf32>, vector<8x8xf32> -> vector<8x8xf32>
    %cst_41 = arith.constant 0.353553385 : f32
    %94 = vector.broadcast %cst_41 : f32 to vector<8x8xf32>
    %95 = arith.mulf %93, %94 : vector<8x8xf32>
    %cst_42 = arith.constant 0.000000e+00 : f32
    %96 = vector.broadcast %cst_42 : f32 to vector<8x8xf32>
    %97 = arith.cmpf oeq, %3, %96 : vector<8x8xf32>
    %cst_43 = arith.constant -1.000000e+09 : f32
    %98 = vector.broadcast %cst_43 : f32 to vector<8x8xf32>
    %99 = arith.select %97, %98, %95 : vector<8x8xi1>, vector<8x8xf32>
    %cst_44 = arith.constant dense<0xFF800000> : vector<8xf32>
    %100 = vector.multi_reduction <maximumf>, %99, %cst_44 [1] : vector<8x8xf32> to vector<8xf32>
    %101 = vector.shape_cast %100 : vector<8xf32> to vector<8x1xf32>
    %102 = vector.broadcast %101 : vector<8x1xf32> to vector<8x8xf32>
    %103 = arith.subf %99, %102 : vector<8x8xf32>
    %104 = math.exp %103 : vector<8x8xf32>
    %cst_45 = arith.constant dense<0.000000e+00> : vector<8xf32>
    %105 = vector.multi_reduction <add>, %104, %cst_45 [1] : vector<8x8xf32> to vector<8xf32>
    %106 = vector.shape_cast %105 : vector<8xf32> to vector<8x1xf32>
    %107 = vector.broadcast %106 : vector<8x1xf32> to vector<8x8xf32>
    %108 = arith.divf %104, %107 : vector<8x8xf32>
    %109 = vector.extract_strided_slice %37 {offsets = [0, 16], sizes = [8, 8], strides = [1, 1]} : vector<8x32xf32> to vector<8x8xf32>
    %cst_46 = arith.constant dense<0.000000e+00> : vector<8x8xf32>
    %110 = tpu.matmul %108, %109, %cst_46 {dimension_numbers = #tpu.dot_dimension_numbers<[1], [0], [0], [1], [0, 0, 1, 1], [], []>} : vector<8x8xf32>, vector<8x8xf32>, vector<8x8xf32> -> vector<8x8xf32>
    %111 = arith.truncf %110 : vector<8x8xf32> to vector<8x8xbf16>
    %c16 = arith.constant 16 : index
    %c0_47 = arith.constant 0 : index
    %112 = vector.load %arg7[%c16, %c0_47] : memref<32x32xf32, #tpu.memory_space<vmem>>, vector<8x32xf32>
    %113 = arith.truncf %112 : vector<8x32xf32> to vector<8x32xbf16>
    %cst_48 = arith.constant dense<0.000000e+00> : vector<8x32xf32>
    %114 = tpu.matmul %111, %113, %cst_48 {dimension_numbers = #tpu.dot_dimension_numbers<[1], [0], [0], [1], [0, 0, 1, 1], [], []>} : vector<8x8xbf16>, vector<8x32xbf16>, vector<8x32xf32> -> vector<8x32xf32>
    %115 = arith.addf %90, %114 : vector<8x32xf32>
    %116 = vector.extract_strided_slice %35 {offsets = [0, 24], sizes = [8, 8], strides = [1, 1]} : vector<8x32xf32> to vector<8x8xf32>
    %117 = vector.extract_strided_slice %39 {offsets = [24, 0], sizes = [8, 8], strides = [1, 1]} : vector<32x8xf32> to vector<8x8xf32>
    %cst_49 = arith.constant dense<0.000000e+00> : vector<8x8xf32>
    %118 = tpu.matmul %116, %117, %cst_49 {dimension_numbers = #tpu.dot_dimension_numbers<[1], [0], [0], [1], [0, 0, 1, 1], [], []>} : vector<8x8xf32>, vector<8x8xf32>, vector<8x8xf32> -> vector<8x8xf32>
    %cst_50 = arith.constant 0.353553385 : f32
    %119 = vector.broadcast %cst_50 : f32 to vector<8x8xf32>
    %120 = arith.mulf %118, %119 : vector<8x8xf32>
    %cst_51 = arith.constant 0.000000e+00 : f32
    %121 = vector.broadcast %cst_51 : f32 to vector<8x8xf32>
    %122 = arith.cmpf oeq, %3, %121 : vector<8x8xf32>
    %cst_52 = arith.constant -1.000000e+09 : f32
    %123 = vector.broadcast %cst_52 : f32 to vector<8x8xf32>
    %124 = arith.select %122, %123, %120 : vector<8x8xi1>, vector<8x8xf32>
    %cst_53 = arith.constant dense<0xFF800000> : vector<8xf32>
    %125 = vector.multi_reduction <maximumf>, %124, %cst_53 [1] : vector<8x8xf32> to vector<8xf32>
    %126 = vector.shape_cast %125 : vector<8xf32> to vector<8x1xf32>
    %127 = vector.broadcast %126 : vector<8x1xf32> to vector<8x8xf32>
    %128 = arith.subf %124, %127 : vector<8x8xf32>
    %129 = math.exp %128 : vector<8x8xf32>
    %cst_54 = arith.constant dense<0.000000e+00> : vector<8xf32>
    %130 = vector.multi_reduction <add>, %129, %cst_54 [1] : vector<8x8xf32> to vector<8xf32>
    %131 = vector.shape_cast %130 : vector<8xf32> to vector<8x1xf32>
    %132 = vector.broadcast %131 : vector<8x1xf32> to vector<8x8xf32>
    %133 = arith.divf %129, %132 : vector<8x8xf32>
    %134 = vector.extract_strided_slice %37 {offsets = [0, 24], sizes = [8, 8], strides = [1, 1]} : vector<8x32xf32> to vector<8x8xf32>
    %cst_55 = arith.constant dense<0.000000e+00> : vector<8x8xf32>
    %135 = tpu.matmul %133, %134, %cst_55 {dimension_numbers = #tpu.dot_dimension_numbers<[1], [0], [0], [1], [0, 0, 1, 1], [], []>} : vector<8x8xf32>, vector<8x8xf32>, vector<8x8xf32> -> vector<8x8xf32>
    %136 = arith.truncf %135 : vector<8x8xf32> to vector<8x8xbf16>
    %c24 = arith.constant 24 : index
    %c0_56 = arith.constant 0 : index
    %137 = vector.load %arg7[%c24, %c0_56] : memref<32x32xf32, #tpu.memory_space<vmem>>, vector<8x32xf32>
    %138 = arith.truncf %137 : vector<8x32xf32> to vector<8x32xbf16>
    %cst_57 = arith.constant dense<0.000000e+00> : vector<8x32xf32>
    %139 = tpu.matmul %136, %138, %cst_57 {dimension_numbers = #tpu.dot_dimension_numbers<[1], [0], [0], [1], [0, 0, 1, 1], [], []>} : vector<8x8xbf16>, vector<8x32xbf16>, vector<8x32xf32> -> vector<8x32xf32>
    %140 = arith.addf %115, %139 : vector<8x32xf32>
    %141 = vector.broadcast %38 : vector<1x32xf32> to vector<8x32xf32>
    %142 = arith.addf %140, %141 : vector<8x32xf32>
    %143 = arith.addf %1, %142 : vector<8x32xf32>
    %c0_58 = arith.constant 0 : index
    %c0_59 = arith.constant 0 : index
    %c0_60 = arith.constant 0 : index
    %144 = vector.load %arg9[%c0_58, %c0_59, %c0_60] : memref<1x8x32xf32, #tpu.memory_space<vmem>>, vector<1x8x32xf32>
    %145 = vector.shape_cast %144 : vector<1x8x32xf32> to vector<8x32xf32>
    %146 = vector.shape_cast %143 : vector<8x32xf32> to vector<1x8x32xf32>
    tpu.vector_store %arg9[%c0_58, %c0_59, %c0_60], %146 {strides = array<i32>} : memref<1x8x32xf32, #tpu.memory_space<vmem>>, vector<1x8x32xf32>,
    return
  }
  func.func @transform_0(%arg0: i32) -> (i32, i32, i32) {
    %c0_i32 = arith.constant 0 : i32
    %c0_i32_0 = arith.constant 0 : i32
    %c0_i32_1 = arith.constant 0 : i32
    return %arg0, %c0_i32, %c0_i32_0 : i32, i32, i32
  }
  func.func @transform_1(%arg0: i32) -> (i32, i32, i32) {
    %c0_i32 = arith.constant 0 : i32
    %c0_i32_0 = arith.constant 0 : i32
    %c0_i32_1 = arith.constant 0 : i32
    %c0_i32_2 = arith.constant 0 : i32
    return %c0_i32, %c0_i32_0, %c0_i32_1 : i32, i32, i32
  }
  func.func @transform_2(%arg0: i32) -> (i32, i32) {
    %c0_i32 = arith.constant 0 : i32
    %c0_i32_0 = arith.constant 0 : i32
    %c0_i32_1 = arith.constant 0 : i32
    return %c0_i32, %c0_i32_0 : i32, i32
  }
  func.func @transform_3(%arg0: i32) -> (i32, i32) {
    %c0_i32 = arith.constant 0 : i32
    %c0_i32_0 = arith.constant 0 : i32
    %c0_i32_1 = arith.constant 0 : i32
    return %c0_i32, %c0_i32_0 : i32, i32
  }
  func.func @transform_4(%arg0: i32) -> (i32, i32) {
    %c0_i32 = arith.constant 0 : i32
    %c0_i32_0 = arith.constant 0 : i32
    %c0_i32_1 = arith.constant 0 : i32
    return %c0_i32, %c0_i32_0 : i32, i32
  }
  func.func @transform_5(%arg0: i32) -> (i32, i32) {
    %c0_i32 = arith.constant 0 : i32
    %c0_i32_0 = arith.constant 0 : i32
    %c0_i32_1 = arith.constant 0 : i32
    return %c0_i32, %c0_i32_0 : i32, i32
  }
  func.func @transform_6(%arg0: i32) -> (i32, i32) {
    %c0_i32 = arith.constant 0 : i32
    %c0_i32_0 = arith.constant 0 : i32
    %c0_i32_1 = arith.constant 0 : i32
    return %c0_i32, %c0_i32_0 : i32, i32
  }
  func.func @transform_7(%arg0: i32) -> (i32, i32) {
    %c0_i32 = arith.constant 0 : i32
    %c0_i32_0 = arith.constant 0 : i32
    %c0_i32_1 = arith.constant 0 : i32
    return %c0_i32, %c0_i32_0 : i32, i32
  }
  func.func @transform_8(%arg0: i32) -> (i32, i32, i32) {
    %c0_i32 = arith.constant 0 : i32
    %c0_i32_0 = arith.constant 0 : i32
    %c0_i32_1 = arith.constant 0 : i32
    return %arg0, %c0_i32, %c0_i32_0 : i32, i32, i32
  }
}

module attributes {stable_mosaic.version = 11 : i64} {
  func.func @self_attn_kernel(%arg0: i32, %arg1: memref<1x8x32xf32, #tpu.memory_space<vmem>>, %arg2: memref<1x1x8xf32, #tpu.memory_space<vmem>>, %arg3: memref<1x32xf32, #tpu.memory_space<vmem>>, %arg4: memref<1x32xf32, #tpu.memory_space<vmem>>, %arg5: memref<32x96xf32, #tpu.memory_space<vmem>>, %arg6: memref<1x96xf32, #tpu.memory_space<vmem>>, %arg7: memref<32x32xf32, #tpu.memory_space<vmem>>, %arg8: memref<1x32xf32, #tpu.memory_space<vmem>>, %arg9: memref<1x8x32xf32, #tpu.memory_space<vmem>>) attributes {dimension_semantics = [#tpu.dimension_semantics<parallel>], iteration_bounds = array<i64: 2>, scalar_prefetch = 0 : i64, scratch_operands = 0 : i64, tpu.core_type = #tpu.core_type<tc>, window_params = [{transform_indices = @transform_0, window_bounds = array<i64: 1, 8, 32>}, {transform_indices = @transform_1, window_bounds = array<i64: 1, 1, 8>}, {pipeline_mode = #tpu.pipeline_mode<synchronous>, transform_indices = @transform_2, window_bounds = array<i64: 1, 32>}, {pipeline_mode = #tpu.pipeline_mode<synchronous>, transform_indices = @transform_3, window_bounds = array<i64: 1, 32>}, {pipeline_mode = #tpu.pipeline_mode<synchronous>, transform_indices = @transform_4, window_bounds = array<i64: 32, 96>}, {pipeline_mode = #tpu.pipeline_mode<synchronous>, transform_indices = @transform_5, window_bounds = array<i64: 1, 96>}, {pipeline_mode = #tpu.pipeline_mode<synchronous>, transform_indices = @transform_6, window_bounds = array<i64: 32, 32>}, {pipeline_mode = #tpu.pipeline_mode<synchronous>, transform_indices = @transform_7, window_bounds = array<i64: 1, 32>}, {transform_indices = @transform_8, window_bounds = array<i64: 1, 8, 32>}]} {
    %c0 = arith.constant 0 : index
    %c0_0 = arith.constant 0 : index
    %c0_1 = arith.constant 0 : index
    %0 = vector.load %arg1[%c0, %c0_0, %c0_1] : memref<1x8x32xf32, #tpu.memory_space<vmem>>, vector<1x8x32xf32>
    %1 = vector.shape_cast %0 : vector<1x8x32xf32> to vector<8x32xf32>
    %c0_2 = arith.constant 0 : index
    %c0_3 = arith.constant 0 : index
    %c0_4 = arith.constant 0 : index
    %2 = vector.load %arg2[%c0_2, %c0_3, %c0_4] : memref<1x1x8xf32, #tpu.memory_space<vmem>>, vector<1x1x8xf32>
    %3 = vector.shape_cast %2 : vector<1x1x8xf32> to vector<1x8xf32>
    %c0_5 = arith.constant 0 : index
    %c0_6 = arith.constant 0 : index
    %4 = vector.load %arg3[%c0_5, %c0_6] : memref<1x32xf32, #tpu.memory_space<vmem>>, vector<1x32xf32>
    %c0_7 = arith.constant 0 : index
    %c0_8 = arith.constant 0 : index
    %5 = vector.load %arg4[%c0_7, %c0_8] : memref<1x32xf32, #tpu.memory_space<vmem>>, vector<1x32xf32>
    %cst = arith.constant dense<0.000000e+00> : vector<8xf32>
    %6 = vector.multi_reduction <add>, %1, %cst [1] : vector<8x32xf32> to vector<8xf32>
    %7 = vector.shape_cast %6 : vector<8xf32> to vector<8x1xf32>
    %cst_9 = arith.constant 3.200000e+01 : f32
    %8 = vector.broadcast %cst_9 : f32 to vector<8x1xf32>
    %9 = arith.divf %7, %8 : vector<8x1xf32>
    %10 = vector.broadcast %9 : vector<8x1xf32> to vector<8x32xf32>
    %11 = arith.subf %1, %10 : vector<8x32xf32>
    %12 = arith.mulf %11, %11 : vector<8x32xf32>
    %cst_10 = arith.constant dense<0.000000e+00> : vector<8xf32>
    %13 = vector.multi_reduction <add>, %12, %cst_10 [1] : vector<8x32xf32> to vector<8xf32>
    %14 = vector.shape_cast %13 : vector<8xf32> to vector<8x1xf32>
    %cst_11 = arith.constant 3.100000e+01 : f32
    %15 = vector.broadcast %cst_11 : f32 to vector<8x1xf32>
    %16 = arith.divf %14, %15 : vector<8x1xf32>
    %17 = vector.broadcast %9 : vector<8x1xf32> to vector<8x32xf32>
    %18 = arith.subf %1, %17 : vector<8x32xf32>
    %19 = vector.broadcast %4 : vector<1x32xf32> to vector<8x32xf32>
    %20 = arith.mulf %19, %18 : vector<8x32xf32>
    %21 = math.sqrt %16 : vector<8x1xf32>
    %cst_12 = arith.constant 9.99999997E-7 : f32
    %22 = vector.broadcast %cst_12 : f32 to vector<8x1xf32>
    %23 = arith.addf %21, %22 : vector<8x1xf32>
    %24 = vector.broadcast %23 : vector<8x1xf32> to vector<8x32xf32>
    %25 = arith.divf %20, %24 : vector<8x32xf32>
    %26 = vector.broadcast %5 : vector<1x32xf32> to vector<8x32xf32>
    %27 = arith.addf %25, %26 : vector<8x32xf32>
    %28 = arith.truncf %27 : vector<8x32xf32> to vector<8x32xbf16>
    %c0_13 = arith.constant 0 : index
    %c0_14 = arith.constant 0 : index
    %29 = vector.load %arg5[%c0_13, %c0_14] : memref<32x96xf32, #tpu.memory_space<vmem>>, vector<32x96xf32>
    %30 = arith.truncf %29 : vector<32x96xf32> to vector<32x96xbf16>
    %cst_15 = arith.constant dense<0.000000e+00> : vector<8x96xf32>
    %31 = tpu.matmul %28, %30, %cst_15 {dimension_numbers = #tpu.dot_dimension_numbers<[1], [0], [0], [1], [0, 0, 1, 1], [], []>} : vector<8x32xbf16>, vector<32x96xbf16>, vector<8x96xf32> -> vector<8x96xf32>
    %c0_16 = arith.constant 0 : index
    %c0_17 = arith.constant 0 : index
    %32 = vector.load %arg6[%c0_16, %c0_17] : memref<1x96xf32, #tpu.memory_space<vmem>>, vector<1x96xf32>
    %33 = vector.broadcast %32 : vector<1x96xf32> to vector<8x96xf32>
    %34 = arith.addf %31, %33 : vector<8x96xf32>
    %35 = vector.extract_strided_slice %34 {offsets = [0, 0], sizes = [8, 32], strides = [1, 1]} : vector<8x96xf32> to vector<8x32xf32>
    %36 = vector.extract_strided_slice %34 {offsets = [0, 32], sizes = [8, 32], strides = [1, 1]} : vector<8x96xf32> to vector<8x32xf32>
    %37 = vector.extract_strided_slice %34 {offsets = [0, 64], sizes = [8, 32], strides = [1, 1]} : vector<8x96xf32> to vector<8x32xf32>
    %c0_18 = arith.constant 0 : index
    %c0_19 = arith.constant 0 : index
    %38 = vector.load %arg8[%c0_18, %c0_19] : memref<1x32xf32, #tpu.memory_space<vmem>>, vector<1x32xf32>
    %39 = tpu.transpose %36, [1, 0] : vector<8x32xf32> -> vector<32x8xf32>
    %cst_20 = arith.constant 0.000000e+00 : f32
    %40 = vector.broadcast %cst_20 : f32 to vector<8x32xf32>
    %41 = vector.extract_strided_slice %35 {offsets = [0, 0], sizes = [8, 8], strides = [1, 1]} : vector<8x32xf32> to vector<8x8xf32>
    %42 = vector.extract_strided_slice %39 {offsets = [0, 0], sizes = [8, 8], strides = [1, 1]} : vector<32x8xf32> to vector<8x8xf32>
    %cst_21 = arith.constant dense<0.000000e+00> : vector<8x8xf32>
    %43 = tpu.matmul %41, %42, %cst_21 {dimension_numbers = #tpu.dot_dimension_numbers<[1], [0], [0], [1], [0, 0, 1, 1], [], []>} : vector<8x8xf32>, vector<8x8xf32>, vector<8x8xf32> -> vector<8x8xf32>
    %cst_22 = arith.constant 0.353553385 : f32
    %44 = vector.broadcast %cst_22 : f32 to vector<8x8xf32>
    %45 = arith.mulf %43, %44 : vector<8x8xf32>
    %cst_23 = arith.constant 0.000000e+00 : f32
    %46 = vector.broadcast %cst_23 : f32 to vector<1x8xf32>
    %47 = arith.cmpf oeq, %3, %46 : vector<1x8xf32>
    %cst_24 = arith.constant -1.000000e+09 : f32
    %48 = vector.shape_cast %47 : vector<1x8xi1> to vector<1x8xi1>
    %49 = vector.broadcast %48 : vector<1x8xi1> to vector<8x8xi1>
    %50 = vector.broadcast %cst_24 : f32 to vector<8x8xf32>
    %51 = arith.select %49, %50, %45 : vector<8x8xi1>, vector<8x8xf32>
    %cst_25 = arith.constant dense<0xFF800000> : vector<8xf32>
    %52 = vector.multi_reduction <maximumf>, %51, %cst_25 [1] : vector<8x8xf32> to vector<8xf32>
    %53 = vector.shape_cast %52 : vector<8xf32> to vector<8x1xf32>
    %54 = vector.broadcast %53 : vector<8x1xf32> to vector<8x8xf32>
    %55 = arith.subf %51, %54 : vector<8x8xf32>
    %56 = math.exp %55 : vector<8x8xf32>
    %cst_26 = arith.constant dense<0.000000e+00> : vector<8xf32>
    %57 = vector.multi_reduction <add>, %56, %cst_26 [1] : vector<8x8xf32> to vector<8xf32>
    %58 = vector.shape_cast %57 : vector<8xf32> to vector<8x1xf32>
    %59 = vector.broadcast %58 : vector<8x1xf32> to vector<8x8xf32>
    %60 = arith.divf %56, %59 : vector<8x8xf32>
    %61 = vector.extract_strided_slice %37 {offsets = [0, 0], sizes = [8, 8], strides = [1, 1]} : vector<8x32xf32> to vector<8x8xf32>
    %cst_27 = arith.constant dense<0.000000e+00> : vector<8x8xf32>
    %62 = tpu.matmul %60, %61, %cst_27 {dimension_numbers = #tpu.dot_dimension_numbers<[1], [0], [0], [1], [0, 0, 1, 1], [], []>} : vector<8x8xf32>, vector<8x8xf32>, vector<8x8xf32> -> vector<8x8xf32>
    %63 = arith.truncf %62 : vector<8x8xf32> to vector<8x8xbf16>
    %c0_28 = arith.constant 0 : index
    %c0_29 = arith.constant 0 : index
    %64 = vector.load %arg7[%c0_28, %c0_29] : memref<32x32xf32, #tpu.memory_space<vmem>>, vector<8x32xf32>
    %65 = arith.truncf %64 : vector<8x32xf32> to vector<8x32xbf16>
    %cst_30 = arith.constant dense<0.000000e+00> : vector<8x32xf32>
    %66 = tpu.matmul %63, %65, %cst_30 {dimension_numbers = #tpu.dot_dimension_numbers<[1], [0], [0], [1], [0, 0, 1, 1], [], []>} : vector<8x8xbf16>, vector<8x32xbf16>, vector<8x32xf32> -> vector<8x32xf32>
    %67 = arith.addf %40, %66 : vector<8x32xf32>
    %68 = vector.extract_strided_slice %35 {offsets = [0, 8], sizes = [8, 8], strides = [1, 1]} : vector<8x32xf32> to vector<8x8xf32>
    %69 = vector.extract_strided_slice %39 {offsets = [8, 0], sizes = [8, 8], strides = [1, 1]} : vector<32x8xf32> to vector<8x8xf32>
    %cst_31 = arith.constant dense<0.000000e+00> : vector<8x8xf32>
    %70 = tpu.matmul %68, %69, %cst_31 {dimension_numbers = #tpu.dot_dimension_numbers<[1], [0], [0], [1], [0, 0, 1, 1], [], []>} : vector<8x8xf32>, vector<8x8xf32>, vector<8x8xf32> -> vector<8x8xf32>
    %cst_32 = arith.constant 0.353553385 : f32
    %71 = vector.broadcast %cst_32 : f32 to vector<8x8xf32>
    %72 = arith.mulf %70, %71 : vector<8x8xf32>
    %cst_33 = arith.constant 0.000000e+00 : f32
    %73 = vector.broadcast %cst_33 : f32 to vector<1x8xf32>
    %74 = arith.cmpf oeq, %3, %73 : vector<1x8xf32>
    %cst_34 = arith.constant -1.000000e+09 : f32
    %75 = vector.shape_cast %74 : vector<1x8xi1> to vector<1x8xi1>
    %76 = vector.broadcast %75 : vector<1x8xi1> to vector<8x8xi1>
    %77 = vector.broadcast %cst_34 : f32 to vector<8x8xf32>
    %78 = arith.select %76, %77, %72 : vector<8x8xi1>, vector<8x8xf32>
    %cst_35 = arith.constant dense<0xFF800000> : vector<8xf32>
    %79 = vector.multi_reduction <maximumf>, %78, %cst_35 [1] : vector<8x8xf32> to vector<8xf32>
    %80 = vector.shape_cast %79 : vector<8xf32> to vector<8x1xf32>
    %81 = vector.broadcast %80 : vector<8x1xf32> to vector<8x8xf32>
    %82 = arith.subf %78, %81 : vector<8x8xf32>
    %83 = math.exp %82 : vector<8x8xf32>
    %cst_36 = arith.constant dense<0.000000e+00> : vector<8xf32>
    %84 = vector.multi_reduction <add>, %83, %cst_36 [1] : vector<8x8xf32> to vector<8xf32>
    %85 = vector.shape_cast %84 : vector<8xf32> to vector<8x1xf32>
    %86 = vector.broadcast %85 : vector<8x1xf32> to vector<8x8xf32>
    %87 = arith.divf %83, %86 : vector<8x8xf32>
    %88 = vector.extract_strided_slice %37 {offsets = [0, 8], sizes = [8, 8], strides = [1, 1]} : vector<8x32xf32> to vector<8x8xf32>
    %cst_37 = arith.constant dense<0.000000e+00> : vector<8x8xf32>
    %89 = tpu.matmul %87, %88, %cst_37 {dimension_numbers = #tpu.dot_dimension_numbers<[1], [0], [0], [1], [0, 0, 1, 1], [], []>} : vector<8x8xf32>, vector<8x8xf32>, vector<8x8xf32> -> vector<8x8xf32>
    %90 = arith.truncf %89 : vector<8x8xf32> to vector<8x8xbf16>
    %c8 = arith.constant 8 : index
    %c0_38 = arith.constant 0 : index
    %91 = vector.load %arg7[%c8, %c0_38] : memref<32x32xf32, #tpu.memory_space<vmem>>, vector<8x32xf32>
    %92 = arith.truncf %91 : vector<8x32xf32> to vector<8x32xbf16>
    %cst_39 = arith.constant dense<0.000000e+00> : vector<8x32xf32>
    %93 = tpu.matmul %90, %92, %cst_39 {dimension_numbers = #tpu.dot_dimension_numbers<[1], [0], [0], [1], [0, 0, 1, 1], [], []>} : vector<8x8xbf16>, vector<8x32xbf16>, vector<8x32xf32> -> vector<8x32xf32>
    %94 = arith.addf %67, %93 : vector<8x32xf32>
    %95 = vector.extract_strided_slice %35 {offsets = [0, 16], sizes = [8, 8], strides = [1, 1]} : vector<8x32xf32> to vector<8x8xf32>
    %96 = vector.extract_strided_slice %39 {offsets = [16, 0], sizes = [8, 8], strides = [1, 1]} : vector<32x8xf32> to vector<8x8xf32>
    %cst_40 = arith.constant dense<0.000000e+00> : vector<8x8xf32>
    %97 = tpu.matmul %95, %96, %cst_40 {dimension_numbers = #tpu.dot_dimension_numbers<[1], [0], [0], [1], [0, 0, 1, 1], [], []>} : vector<8x8xf32>, vector<8x8xf32>, vector<8x8xf32> -> vector<8x8xf32>
    %cst_41 = arith.constant 0.353553385 : f32
    %98 = vector.broadcast %cst_41 : f32 to vector<8x8xf32>
    %99 = arith.mulf %97, %98 : vector<8x8xf32>
    %cst_42 = arith.constant 0.000000e+00 : f32
    %100 = vector.broadcast %cst_42 : f32 to vector<1x8xf32>
    %101 = arith.cmpf oeq, %3, %100 : vector<1x8xf32>
    %cst_43 = arith.constant -1.000000e+09 : f32
    %102 = vector.shape_cast %101 : vector<1x8xi1> to vector<1x8xi1>
    %103 = vector.broadcast %102 : vector<1x8xi1> to vector<8x8xi1>
    %104 = vector.broadcast %cst_43 : f32 to vector<8x8xf32>
    %105 = arith.select %103, %104, %99 : vector<8x8xi1>, vector<8x8xf32>
    %cst_44 = arith.constant dense<0xFF800000> : vector<8xf32>
    %106 = vector.multi_reduction <maximumf>, %105, %cst_44 [1] : vector<8x8xf32> to vector<8xf32>
    %107 = vector.shape_cast %106 : vector<8xf32> to vector<8x1xf32>
    %108 = vector.broadcast %107 : vector<8x1xf32> to vector<8x8xf32>
    %109 = arith.subf %105, %108 : vector<8x8xf32>
    %110 = math.exp %109 : vector<8x8xf32>
    %cst_45 = arith.constant dense<0.000000e+00> : vector<8xf32>
    %111 = vector.multi_reduction <add>, %110, %cst_45 [1] : vector<8x8xf32> to vector<8xf32>
    %112 = vector.shape_cast %111 : vector<8xf32> to vector<8x1xf32>
    %113 = vector.broadcast %112 : vector<8x1xf32> to vector<8x8xf32>
    %114 = arith.divf %110, %113 : vector<8x8xf32>
    %115 = vector.extract_strided_slice %37 {offsets = [0, 16], sizes = [8, 8], strides = [1, 1]} : vector<8x32xf32> to vector<8x8xf32>
    %cst_46 = arith.constant dense<0.000000e+00> : vector<8x8xf32>
    %116 = tpu.matmul %114, %115, %cst_46 {dimension_numbers = #tpu.dot_dimension_numbers<[1], [0], [0], [1], [0, 0, 1, 1], [], []>} : vector<8x8xf32>, vector<8x8xf32>, vector<8x8xf32> -> vector<8x8xf32>
    %117 = arith.truncf %116 : vector<8x8xf32> to vector<8x8xbf16>
    %c16 = arith.constant 16 : index
    %c0_47 = arith.constant 0 : index
    %118 = vector.load %arg7[%c16, %c0_47] : memref<32x32xf32, #tpu.memory_space<vmem>>, vector<8x32xf32>
    %119 = arith.truncf %118 : vector<8x32xf32> to vector<8x32xbf16>
    %cst_48 = arith.constant dense<0.000000e+00> : vector<8x32xf32>
    %120 = tpu.matmul %117, %119, %cst_48 {dimension_numbers = #tpu.dot_dimension_numbers<[1], [0], [0], [1], [0, 0, 1, 1], [], []>} : vector<8x8xbf16>, vector<8x32xbf16>, vector<8x32xf32> -> vector<8x32xf32>
    %121 = arith.addf %94, %120 : vector<8x32xf32>
    %122 = vector.extract_strided_slice %35 {offsets = [0, 24], sizes = [8, 8], strides = [1, 1]} : vector<8x32xf32> to vector<8x8xf32>
    %123 = vector.extract_strided_slice %39 {offsets = [24, 0], sizes = [8, 8], strides = [1, 1]} : vector<32x8xf32> to vector<8x8xf32>
    %cst_49 = arith.constant dense<0.000000e+00> : vector<8x8xf32>
    %124 = tpu.matmul %122, %123, %cst_49 {dimension_numbers = #tpu.dot_dimension_numbers<[1], [0], [0], [1], [0, 0, 1, 1], [], []>} : vector<8x8xf32>, vector<8x8xf32>, vector<8x8xf32> -> vector<8x8xf32>
    %cst_50 = arith.constant 0.353553385 : f32
    %125 = vector.broadcast %cst_50 : f32 to vector<8x8xf32>
    %126 = arith.mulf %124, %125 : vector<8x8xf32>
    %cst_51 = arith.constant 0.000000e+00 : f32
    %127 = vector.broadcast %cst_51 : f32 to vector<1x8xf32>
    %128 = arith.cmpf oeq, %3, %127 : vector<1x8xf32>
    %cst_52 = arith.constant -1.000000e+09 : f32
    %129 = vector.shape_cast %128 : vector<1x8xi1> to vector<1x8xi1>
    %130 = vector.broadcast %129 : vector<1x8xi1> to vector<8x8xi1>
    %131 = vector.broadcast %cst_52 : f32 to vector<8x8xf32>
    %132 = arith.select %130, %131, %126 : vector<8x8xi1>, vector<8x8xf32>
    %cst_53 = arith.constant dense<0xFF800000> : vector<8xf32>
    %133 = vector.multi_reduction <maximumf>, %132, %cst_53 [1] : vector<8x8xf32> to vector<8xf32>
    %134 = vector.shape_cast %133 : vector<8xf32> to vector<8x1xf32>
    %135 = vector.broadcast %134 : vector<8x1xf32> to vector<8x8xf32>
    %136 = arith.subf %132, %135 : vector<8x8xf32>
    %137 = math.exp %136 : vector<8x8xf32>
    %cst_54 = arith.constant dense<0.000000e+00> : vector<8xf32>
    %138 = vector.multi_reduction <add>, %137, %cst_54 [1] : vector<8x8xf32> to vector<8xf32>
    %139 = vector.shape_cast %138 : vector<8xf32> to vector<8x1xf32>
    %140 = vector.broadcast %139 : vector<8x1xf32> to vector<8x8xf32>
    %141 = arith.divf %137, %140 : vector<8x8xf32>
    %142 = vector.extract_strided_slice %37 {offsets = [0, 24], sizes = [8, 8], strides = [1, 1]} : vector<8x32xf32> to vector<8x8xf32>
    %cst_55 = arith.constant dense<0.000000e+00> : vector<8x8xf32>
    %143 = tpu.matmul %141, %142, %cst_55 {dimension_numbers = #tpu.dot_dimension_numbers<[1], [0], [0], [1], [0, 0, 1, 1], [], []>} : vector<8x8xf32>, vector<8x8xf32>, vector<8x8xf32> -> vector<8x8xf32>
    %144 = arith.truncf %143 : vector<8x8xf32> to vector<8x8xbf16>
    %c24 = arith.constant 24 : index
    %c0_56 = arith.constant 0 : index
    %145 = vector.load %arg7[%c24, %c0_56] : memref<32x32xf32, #tpu.memory_space<vmem>>, vector<8x32xf32>
    %146 = arith.truncf %145 : vector<8x32xf32> to vector<8x32xbf16>
    %cst_57 = arith.constant dense<0.000000e+00> : vector<8x32xf32>
    %147 = tpu.matmul %144, %146, %cst_57 {dimension_numbers = #tpu.dot_dimension_numbers<[1], [0], [0], [1], [0, 0, 1, 1], [], []>} : vector<8x8xbf16>, vector<8x32xbf16>, vector<8x32xf32> -> vector<8x32xf32>
    %148 = arith.addf %121, %147 : vector<8x32xf32>
    %149 = vector.broadcast %38 : vector<1x32xf32> to vector<8x32xf32>
    %150 = arith.addf %148, %149 : vector<8x32xf32>
    %151 = arith.addf %1, %150 : vector<8x32xf32>
    %c0_58 = arith.constant 0 : index
    %c0_59 = arith.constant 0 : index
    %c0_60 = arith.constant 0 : index
    %152 = vector.load %arg9[%c0_58, %c0_59, %c0_60] : memref<1x8x32xf32, #tpu.memory_space<vmem>>, vector<1x8x32xf32>
    %153 = vector.shape_cast %152 : vector<1x8x32xf32> to vector<8x32xf32>
    %154 = vector.shape_cast %151 : vector<8x32xf32> to vector<1x8x32xf32>
    tpu.vector_store %arg9[%c0_58, %c0_59, %c0_60], %154 {strides = array<i32>} : memref<1x8x32xf32, #tpu.memory_space<vmem>>, vector<1x8x32xf32>,
    return
  }
  func.func @transform_0(%arg0: i32) -> (i32, i32, i32) {
    %c0_i32 = arith.constant 0 : i32
    %c0_i32_0 = arith.constant 0 : i32
    %c0_i32_1 = arith.constant 0 : i32
    return %arg0, %c0_i32, %c0_i32_0 : i32, i32, i32
  }
  func.func @transform_1(%arg0: i32) -> (i32, i32, i32) {
    %c0_i32 = arith.constant 0 : i32
    %c0_i32_0 = arith.constant 0 : i32
    %c0_i32_1 = arith.constant 0 : i32
    return %arg0, %c0_i32, %c0_i32_0 : i32, i32, i32
  }
  func.func @transform_2(%arg0: i32) -> (i32, i32) {
    %c0_i32 = arith.constant 0 : i32
    %c0_i32_0 = arith.constant 0 : i32
    %c0_i32_1 = arith.constant 0 : i32
    return %c0_i32, %c0_i32_0 : i32, i32
  }
  func.func @transform_3(%arg0: i32) -> (i32, i32) {
    %c0_i32 = arith.constant 0 : i32
    %c0_i32_0 = arith.constant 0 : i32
    %c0_i32_1 = arith.constant 0 : i32
    return %c0_i32, %c0_i32_0 : i32, i32
  }
  func.func @transform_4(%arg0: i32) -> (i32, i32) {
    %c0_i32 = arith.constant 0 : i32
    %c0_i32_0 = arith.constant 0 : i32
    %c0_i32_1 = arith.constant 0 : i32
    return %c0_i32, %c0_i32_0 : i32, i32
  }
  func.func @transform_5(%arg0: i32) -> (i32, i32) {
    %c0_i32 = arith.constant 0 : i32
    %c0_i32_0 = arith.constant 0 : i32
    %c0_i32_1 = arith.constant 0 : i32
    return %c0_i32, %c0_i32_0 : i32, i32
  }
  func.func @transform_6(%arg0: i32) -> (i32, i32) {
    %c0_i32 = arith.constant 0 : i32
    %c0_i32_0 = arith.constant 0 : i32
    %c0_i32_1 = arith.constant 0 : i32
    return %c0_i32, %c0_i32_0 : i32, i32
  }
  func.func @transform_7(%arg0: i32) -> (i32, i32) {
    %c0_i32 = arith.constant 0 : i32
    %c0_i32_0 = arith.constant 0 : i32
    %c0_i32_1 = arith.constant 0 : i32
    return %c0_i32, %c0_i32_0 : i32, i32
  }
  func.func @transform_8(%arg0: i32) -> (i32, i32, i32) {
    %c0_i32 = arith.constant 0 : i32
    %c0_i32_0 = arith.constant 0 : i32
    %c0_i32_1 = arith.constant 0 : i32
    return %arg0, %c0_i32, %c0_i32_0 : i32, i32, i32
  }
}

module attributes {stable_mosaic.version = 11 : i64} {
  func.func @ffn_kernel(%arg0: i32, %arg1: memref<16x32xf32, #tpu.memory_space<vmem>>, %arg2: memref<1x32xf32, #tpu.memory_space<vmem>>, %arg3: memref<1x32xf32, #tpu.memory_space<vmem>>, %arg4: memref<32x64xf32, #tpu.memory_space<vmem>>, %arg5: memref<1x64xf32, #tpu.memory_space<vmem>>, %arg6: memref<64x32xf32, #tpu.memory_space<vmem>>, %arg7: memref<1x32xf32, #tpu.memory_space<vmem>>, %arg8: memref<16x32xf32, #tpu.memory_space<vmem>>) attributes {dimension_semantics = [#tpu.dimension_semantics<parallel>], iteration_bounds = array<i64: 1>, scalar_prefetch = 0 : i64, scratch_operands = 0 : i64, tpu.core_type = #tpu.core_type<tc>, window_params = [{transform_indices = @transform_0, window_bounds = array<i64: 16, 32>}, {pipeline_mode = #tpu.pipeline_mode<synchronous>, transform_indices = @transform_1, window_bounds = array<i64: 1, 32>}, {pipeline_mode = #tpu.pipeline_mode<synchronous>, transform_indices = @transform_2, window_bounds = array<i64: 1, 32>}, {pipeline_mode = #tpu.pipeline_mode<synchronous>, transform_indices = @transform_3, window_bounds = array<i64: 32, 64>}, {pipeline_mode = #tpu.pipeline_mode<synchronous>, transform_indices = @transform_4, window_bounds = array<i64: 1, 64>}, {pipeline_mode = #tpu.pipeline_mode<synchronous>, transform_indices = @transform_5, window_bounds = array<i64: 64, 32>}, {pipeline_mode = #tpu.pipeline_mode<synchronous>, transform_indices = @transform_6, window_bounds = array<i64: 1, 32>}, {transform_indices = @transform_7, window_bounds = array<i64: 16, 32>}]} {
    %c0 = arith.constant 0 : index
    %c0_0 = arith.constant 0 : index
    %0 = vector.load %arg1[%c0, %c0_0] : memref<16x32xf32, #tpu.memory_space<vmem>>, vector<16x32xf32>
    %c0_1 = arith.constant 0 : index
    %c0_2 = arith.constant 0 : index
    %1 = vector.load %arg2[%c0_1, %c0_2] : memref<1x32xf32, #tpu.memory_space<vmem>>, vector<1x32xf32>
    %c0_3 = arith.constant 0 : index
    %c0_4 = arith.constant 0 : index
    %2 = vector.load %arg3[%c0_3, %c0_4] : memref<1x32xf32, #tpu.memory_space<vmem>>, vector<1x32xf32>
    %cst = arith.constant dense<0.000000e+00> : vector<16xf32>
    %3 = vector.multi_reduction <add>, %0, %cst [1] : vector<16x32xf32> to vector<16xf32>
    %4 = vector.shape_cast %3 : vector<16xf32> to vector<16x1xf32>
    %cst_5 = arith.constant 3.200000e+01 : f32
    %5 = vector.broadcast %cst_5 : f32 to vector<16x1xf32>
    %6 = arith.divf %4, %5 : vector<16x1xf32>
    %7 = vector.broadcast %6 : vector<16x1xf32> to vector<16x32xf32>
    %8 = arith.subf %0, %7 : vector<16x32xf32>
    %9 = arith.mulf %8, %8 : vector<16x32xf32>
    %cst_6 = arith.constant dense<0.000000e+00> : vector<16xf32>
    %10 = vector.multi_reduction <add>, %9, %cst_6 [1] : vector<16x32xf32> to vector<16xf32>
    %11 = vector.shape_cast %10 : vector<16xf32> to vector<16x1xf32>
    %cst_7 = arith.constant 3.100000e+01 : f32
    %12 = vector.broadcast %cst_7 : f32 to vector<16x1xf32>
    %13 = arith.divf %11, %12 : vector<16x1xf32>
    %14 = vector.broadcast %6 : vector<16x1xf32> to vector<16x32xf32>
    %15 = arith.subf %0, %14 : vector<16x32xf32>
    %16 = vector.broadcast %1 : vector<1x32xf32> to vector<16x32xf32>
    %17 = arith.mulf %16, %15 : vector<16x32xf32>
    %18 = math.sqrt %13 : vector<16x1xf32>
    %cst_8 = arith.constant 9.99999997E-7 : f32
    %19 = vector.broadcast %cst_8 : f32 to vector<16x1xf32>
    %20 = arith.addf %18, %19 : vector<16x1xf32>
    %21 = vector.broadcast %20 : vector<16x1xf32> to vector<16x32xf32>
    %22 = arith.divf %17, %21 : vector<16x32xf32>
    %23 = vector.broadcast %2 : vector<1x32xf32> to vector<16x32xf32>
    %24 = arith.addf %22, %23 : vector<16x32xf32>
    %25 = arith.truncf %24 : vector<16x32xf32> to vector<16x32xbf16>
    %c0_9 = arith.constant 0 : index
    %c0_10 = arith.constant 0 : index
    %26 = vector.load %arg4[%c0_9, %c0_10] : memref<32x64xf32, #tpu.memory_space<vmem>>, vector<32x64xf32>
    %27 = arith.truncf %26 : vector<32x64xf32> to vector<32x64xbf16>
    %cst_11 = arith.constant dense<0.000000e+00> : vector<16x64xf32>
    %28 = tpu.matmul %25, %27, %cst_11 {dimension_numbers = #tpu.dot_dimension_numbers<[1], [0], [0], [1], [0, 0, 1, 1], [], []>} : vector<16x32xbf16>, vector<32x64xbf16>, vector<16x64xf32> -> vector<16x64xf32>
    %c0_12 = arith.constant 0 : index
    %c0_13 = arith.constant 0 : index
    %29 = vector.load %arg5[%c0_12, %c0_13] : memref<1x64xf32, #tpu.memory_space<vmem>>, vector<1x64xf32>
    %30 = vector.broadcast %29 : vector<1x64xf32> to vector<16x64xf32>
    %31 = arith.addf %28, %30 : vector<16x64xf32>
    %cst_14 = arith.constant 0.000000e+00 : f32
    %32 = vector.broadcast %cst_14 : f32 to vector<16x64xf32>
    %33 = arith.maximumf %31, %32 : vector<16x64xf32>
    %34 = arith.truncf %33 : vector<16x64xf32> to vector<16x64xbf16>
    %c0_15 = arith.constant 0 : index
    %c0_16 = arith.constant 0 : index
    %35 = vector.load %arg6[%c0_15, %c0_16] : memref<64x32xf32, #tpu.memory_space<vmem>>, vector<64x32xf32>
    %36 = arith.truncf %35 : vector<64x32xf32> to vector<64x32xbf16>
    %cst_17 = arith.constant dense<0.000000e+00> : vector<16x32xf32>
    %37 = tpu.matmul %34, %36, %cst_17 {dimension_numbers = #tpu.dot_dimension_numbers<[1], [0], [0], [1], [0, 0, 1, 1], [], []>} : vector<16x64xbf16>, vector<64x32xbf16>, vector<16x32xf32> -> vector<16x32xf32>
    %c0_18 = arith.constant 0 : index
    %c0_19 = arith.constant 0 : index
    %38 = vector.load %arg7[%c0_18, %c0_19] : memref<1x32xf32, #tpu.memory_space<vmem>>, vector<1x32xf32>
    %39 = vector.broadcast %38 : vector<1x32xf32> to vector<16x32xf32>
    %40 = arith.addf %37, %39 : vector<16x32xf32>
    %41 = arith.addf %0, %40 : vector<16x32xf32>
    %c0_20 = arith.constant 0 : index
    %c0_21 = arith.constant 0 : index
    %42 = vector.load %arg8[%c0_20, %c0_21] : memref<16x32xf32, #tpu.memory_space<vmem>>, vector<16x32xf32>
    tpu.vector_store %arg8[%c0_20, %c0_21], %41 {strides = array<i32>} : memref<16x32xf32, #tpu.memory_space<vmem>>, vector<16x32xf32>,
    return
  }
  func.func @transform_0(%arg0: i32) -> (i32, i32) {
    %c0_i32 = arith.constant 0 : i32
    %c0_i32_0 = arith.constant 0 : i32
    return %arg0, %c0_i32 : i32, i32
  }
  func.func @transform_1(%arg0: i32) -> (i32, i32) {
    %c0_i32 = arith.constant 0 : i32
    %c0_i32_0 = arith.constant 0 : i32
    %c0_i32_1 = arith.constant 0 : i32
    return %c0_i32, %c0_i32_0 : i32, i32
  }
  func.func @transform_2(%arg0: i32) -> (i32, i32) {
    %c0_i32 = arith.constant 0 : i32
    %c0_i32_0 = arith.constant 0 : i32
    %c0_i32_1 = arith.constant 0 : i32
    return %c0_i32, %c0_i32_0 : i32, i32
  }
  func.func @transform_3(%arg0: i32) -> (i32, i32) {
    %c0_i32 = arith.constant 0 : i32
    %c0_i32_0 = arith.constant 0 : i32
    %c0_i32_1 = arith.constant 0 : i32
    return %c0_i32, %c0_i32_0 : i32, i32
  }
  func.func @transform_4(%arg0: i32) -> (i32, i32) {
    %c0_i32 = arith.constant 0 : i32
    %c0_i32_0 = arith.constant 0 : i32
    %c0_i32_1 = arith.constant 0 : i32
    return %c0_i32, %c0_i32_0 : i32, i32
  }
  func.func @transform_5(%arg0: i32) -> (i32, i32) {
    %c0_i32 = arith.constant 0 : i32
    %c0_i32_0 = arith.constant 0 : i32
    %c0_i32_1 = arith.constant 0 : i32
    return %c0_i32, %c0_i32_0 : i32, i32
  }
  func.func @transform_6(%arg0: i32) -> (i32, i32) {
    %c0_i32 = arith.constant 0 : i32
    %c0_i32_0 = arith.constant 0 : i32
    %c0_i32_1 = arith.constant 0 : i32
    return %c0_i32, %c0_i32_0 : i32, i32
  }
  func.func @transform_7(%arg0: i32) -> (i32, i32) {
    %c0_i32 = arith.constant 0 : i32
    %c0_i32_0 = arith.constant 0 : i32
    return %arg0, %c0_i32 : i32, i32
  }
}

module attributes {stable_mosaic.version = 11 : i64} {
  func.func @layernorm_kernel(%arg0: i32, %arg1: memref<16x32xf32, #tpu.memory_space<vmem>>, %arg2: memref<1x32xf32, #tpu.memory_space<vmem>>, %arg3: memref<1x32xf32, #tpu.memory_space<vmem>>, %arg4: memref<16x32xf32, #tpu.memory_space<vmem>>) attributes {dimension_semantics = [#tpu.dimension_semantics<parallel>], iteration_bounds = array<i64: 1>, scalar_prefetch = 0 : i64, scratch_operands = 0 : i64, tpu.core_type = #tpu.core_type<tc>, window_params = [{transform_indices = @transform_0, window_bounds = array<i64: 16, 32>}, {pipeline_mode = #tpu.pipeline_mode<synchronous>, transform_indices = @transform_1, window_bounds = array<i64: 1, 32>}, {pipeline_mode = #tpu.pipeline_mode<synchronous>, transform_indices = @transform_2, window_bounds = array<i64: 1, 32>}, {transform_indices = @transform_3, window_bounds = array<i64: 16, 32>}]} {
    %c0 = arith.constant 0 : index
    %c0_0 = arith.constant 0 : index
    %0 = vector.load %arg1[%c0, %c0_0] : memref<16x32xf32, #tpu.memory_space<vmem>>, vector<16x32xf32>
    %c0_1 = arith.constant 0 : index
    %c0_2 = arith.constant 0 : index
    %1 = vector.load %arg2[%c0_1, %c0_2] : memref<1x32xf32, #tpu.memory_space<vmem>>, vector<1x32xf32>
    %c0_3 = arith.constant 0 : index
    %c0_4 = arith.constant 0 : index
    %2 = vector.load %arg3[%c0_3, %c0_4] : memref<1x32xf32, #tpu.memory_space<vmem>>, vector<1x32xf32>
    %cst = arith.constant dense<0.000000e+00> : vector<16xf32>
    %3 = vector.multi_reduction <add>, %0, %cst [1] : vector<16x32xf32> to vector<16xf32>
    %4 = vector.shape_cast %3 : vector<16xf32> to vector<16x1xf32>
    %cst_5 = arith.constant 3.200000e+01 : f32
    %5 = vector.broadcast %cst_5 : f32 to vector<16x1xf32>
    %6 = arith.divf %4, %5 : vector<16x1xf32>
    %7 = vector.broadcast %6 : vector<16x1xf32> to vector<16x32xf32>
    %8 = arith.subf %0, %7 : vector<16x32xf32>
    %9 = arith.mulf %8, %8 : vector<16x32xf32>
    %cst_6 = arith.constant dense<0.000000e+00> : vector<16xf32>
    %10 = vector.multi_reduction <add>, %9, %cst_6 [1] : vector<16x32xf32> to vector<16xf32>
    %11 = vector.shape_cast %10 : vector<16xf32> to vector<16x1xf32>
    %cst_7 = arith.constant 3.100000e+01 : f32
    %12 = vector.broadcast %cst_7 : f32 to vector<16x1xf32>
    %13 = arith.divf %11, %12 : vector<16x1xf32>
    %14 = vector.broadcast %6 : vector<16x1xf32> to vector<16x32xf32>
    %15 = arith.subf %0, %14 : vector<16x32xf32>
    %16 = vector.broadcast %1 : vector<1x32xf32> to vector<16x32xf32>
    %17 = arith.mulf %16, %15 : vector<16x32xf32>
    %18 = math.sqrt %13 : vector<16x1xf32>
    %cst_8 = arith.constant 9.99999997E-7 : f32
    %19 = vector.broadcast %cst_8 : f32 to vector<16x1xf32>
    %20 = arith.addf %18, %19 : vector<16x1xf32>
    %21 = vector.broadcast %20 : vector<16x1xf32> to vector<16x32xf32>
    %22 = arith.divf %17, %21 : vector<16x32xf32>
    %23 = vector.broadcast %2 : vector<1x32xf32> to vector<16x32xf32>
    %24 = arith.addf %22, %23 : vector<16x32xf32>
    %c0_9 = arith.constant 0 : index
    %c0_10 = arith.constant 0 : index
    %25 = vector.load %arg4[%c0_9, %c0_10] : memref<16x32xf32, #tpu.memory_space<vmem>>, vector<16x32xf32>
    tpu.vector_store %arg4[%c0_9, %c0_10], %24 {strides = array<i32>} : memref<16x32xf32, #tpu.memory_space<vmem>>, vector<16x32xf32>,
    return
  }
  func.func @transform_0(%arg0: i32) -> (i32, i32) {
    %c0_i32 = arith.constant 0 : i32
    %c0_i32_0 = arith.constant 0 : i32
    return %arg0, %c0_i32 : i32, i32
  }
  func.func @transform_1(%arg0: i32) -> (i32, i32) {
    %c0_i32 = arith.constant 0 : i32
    %c0_i32_0 = arith.constant 0 : i32
    %c0_i32_1 = arith.constant 0 : i32
    return %c0_i32, %c0_i32_0 : i32, i32
  }
  func.func @transform_2(%arg0: i32) -> (i32, i32) {
    %c0_i32 = arith.constant 0 : i32
    %c0_i32_0 = arith.constant 0 : i32
    %c0_i32_1 = arith.constant 0 : i32
    return %c0_i32, %c0_i32_0 : i32, i32
  }
  func.func @transform_3(%arg0: i32) -> (i32, i32) {
    %c0_i32 = arith.constant 0 : i32
    %c0_i32_0 = arith.constant 0 : i32
    return %arg0, %c0_i32 : i32, i32
  }
}

module attributes {stable_mosaic.version = 11 : i64} {
  func.func @src_attn_kernel(%arg0: i32, %arg1: memref<1x8x32xf32, #tpu.memory_space<vmem>>, %arg2: memref<1x8x32xf32, #tpu.memory_space<vmem>>, %arg3: memref<1x1x8xf32, #tpu.memory_space<vmem>>, %arg4: memref<1x32xf32, #tpu.memory_space<vmem>>, %arg5: memref<1x32xf32, #tpu.memory_space<vmem>>, %arg6: memref<32x32xf32, #tpu.memory_space<vmem>>, %arg7: memref<1x32xf32, #tpu.memory_space<vmem>>, %arg8: memref<32x64xf32, #tpu.memory_space<vmem>>, %arg9: memref<1x64xf32, #tpu.memory_space<vmem>>, %arg10: memref<32x32xf32, #tpu.memory_space<vmem>>, %arg11: memref<1x32xf32, #tpu.memory_space<vmem>>, %arg12: memref<1x8x32xf32, #tpu.memory_space<vmem>>) attributes {dimension_semantics = [#tpu.dimension_semantics<parallel>], iteration_bounds = array<i64: 2>, scalar_prefetch = 0 : i64, scratch_operands = 0 : i64, tpu.core_type = #tpu.core_type<tc>, window_params = [{transform_indices = @transform_0, window_bounds = array<i64: 1, 8, 32>}, {transform_indices = @transform_1, window_bounds = array<i64: 1, 8, 32>}, {transform_indices = @transform_2, window_bounds = array<i64: 1, 1, 8>}, {pipeline_mode = #tpu.pipeline_mode<synchronous>, transform_indices = @transform_3, window_bounds = array<i64: 1, 32>}, {pipeline_mode = #tpu.pipeline_mode<synchronous>, transform_indices = @transform_4, window_bounds = array<i64: 1, 32>}, {pipeline_mode = #tpu.pipeline_mode<synchronous>, transform_indices = @transform_5, window_bounds = array<i64: 32, 32>}, {pipeline_mode = #tpu.pipeline_mode<synchronous>, transform_indices = @transform_6, window_bounds = array<i64: 1, 32>}, {pipeline_mode = #tpu.pipeline_mode<synchronous>, transform_indices = @transform_7, window_bounds = array<i64: 32, 64>}, {pipeline_mode = #tpu.pipeline_mode<synchronous>, transform_indices = @transform_8, window_bounds = array<i64: 1, 64>}, {pipeline_mode = #tpu.pipeline_mode<synchronous>, transform_indices = @transform_9, window_bounds = array<i64: 32, 32>}, {pipeline_mode = #tpu.pipeline_mode<synchronous>, transform_indices = @transform_10, window_bounds = array<i64: 1, 32>}, {transform_indices = @transform_11, window_bounds = array<i64: 1, 8, 32>}]} {
    %c0 = arith.constant 0 : index
    %c0_0 = arith.constant 0 : index
    %c0_1 = arith.constant 0 : index
    %0 = vector.load %arg1[%c0, %c0_0, %c0_1] : memref<1x8x32xf32, #tpu.memory_space<vmem>>, vector<1x8x32xf32>
    %1 = vector.shape_cast %0 : vector<1x8x32xf32> to vector<8x32xf32>
    %c0_2 = arith.constant 0 : index
    %c0_3 = arith.constant 0 : index
    %c0_4 = arith.constant 0 : index
    %2 = vector.load %arg2[%c0_2, %c0_3, %c0_4] : memref<1x8x32xf32, #tpu.memory_space<vmem>>, vector<1x8x32xf32>
    %3 = vector.shape_cast %2 : vector<1x8x32xf32> to vector<8x32xf32>
    %c0_5 = arith.constant 0 : index
    %c0_6 = arith.constant 0 : index
    %c0_7 = arith.constant 0 : index
    %4 = vector.load %arg3[%c0_5, %c0_6, %c0_7] : memref<1x1x8xf32, #tpu.memory_space<vmem>>, vector<1x1x8xf32>
    %5 = vector.shape_cast %4 : vector<1x1x8xf32> to vector<1x8xf32>
    %c0_8 = arith.constant 0 : index
    %c0_9 = arith.constant 0 : index
    %6 = vector.load %arg4[%c0_8, %c0_9] : memref<1x32xf32, #tpu.memory_space<vmem>>, vector<1x32xf32>
    %c0_10 = arith.constant 0 : index
    %c0_11 = arith.constant 0 : index
    %7 = vector.load %arg5[%c0_10, %c0_11] : memref<1x32xf32, #tpu.memory_space<vmem>>, vector<1x32xf32>
    %cst = arith.constant dense<0.000000e+00> : vector<8xf32>
    %8 = vector.multi_reduction <add>, %1, %cst [1] : vector<8x32xf32> to vector<8xf32>
    %9 = vector.shape_cast %8 : vector<8xf32> to vector<8x1xf32>
    %cst_12 = arith.constant 3.200000e+01 : f32
    %10 = vector.broadcast %cst_12 : f32 to vector<8x1xf32>
    %11 = arith.divf %9, %10 : vector<8x1xf32>
    %12 = vector.broadcast %11 : vector<8x1xf32> to vector<8x32xf32>
    %13 = arith.subf %1, %12 : vector<8x32xf32>
    %14 = arith.mulf %13, %13 : vector<8x32xf32>
    %cst_13 = arith.constant dense<0.000000e+00> : vector<8xf32>
    %15 = vector.multi_reduction <add>, %14, %cst_13 [1] : vector<8x32xf32> to vector<8xf32>
    %16 = vector.shape_cast %15 : vector<8xf32> to vector<8x1xf32>
    %cst_14 = arith.constant 3.100000e+01 : f32
    %17 = vector.broadcast %cst_14 : f32 to vector<8x1xf32>
    %18 = arith.divf %16, %17 : vector<8x1xf32>
    %19 = vector.broadcast %11 : vector<8x1xf32> to vector<8x32xf32>
    %20 = arith.subf %1, %19 : vector<8x32xf32>
    %21 = vector.broadcast %6 : vector<1x32xf32> to vector<8x32xf32>
    %22 = arith.mulf %21, %20 : vector<8x32xf32>
    %23 = math.sqrt %18 : vector<8x1xf32>
    %cst_15 = arith.constant 9.99999997E-7 : f32
    %24 = vector.broadcast %cst_15 : f32 to vector<8x1xf32>
    %25 = arith.addf %23, %24 : vector<8x1xf32>
    %26 = vector.broadcast %25 : vector<8x1xf32> to vector<8x32xf32>
    %27 = arith.divf %22, %26 : vector<8x32xf32>
    %28 = vector.broadcast %7 : vector<1x32xf32> to vector<8x32xf32>
    %29 = arith.addf %27, %28 : vector<8x32xf32>
    %30 = arith.truncf %29 : vector<8x32xf32> to vector<8x32xbf16>
    %c0_16 = arith.constant 0 : index
    %c0_17 = arith.constant 0 : index
    %31 = vector.load %arg6[%c0_16, %c0_17] : memref<32x32xf32, #tpu.memory_space<vmem>>, vector<32x32xf32>
    %32 = arith.truncf %31 : vector<32x32xf32> to vector<32x32xbf16>
    %cst_18 = arith.constant dense<0.000000e+00> : vector<8x32xf32>
    %33 = tpu.matmul %30, %32, %cst_18 {dimension_numbers = #tpu.dot_dimension_numbers<[1], [0], [0], [1], [0, 0, 1, 1], [], []>} : vector<8x32xbf16>, vector<32x32xbf16>, vector<8x32xf32> -> vector<8x32xf32>
    %c0_19 = arith.constant 0 : index
    %c0_20 = arith.constant 0 : index
    %34 = vector.load %arg7[%c0_19, %c0_20] : memref<1x32xf32, #tpu.memory_space<vmem>>, vector<1x32xf32>
    %35 = vector.broadcast %34 : vector<1x32xf32> to vector<8x32xf32>
    %36 = arith.addf %33, %35 : vector<8x32xf32>
    %37 = arith.truncf %3 : vector<8x32xf32> to vector<8x32xbf16>
    %c0_21 = arith.constant 0 : index
    %c0_22 = arith.constant 0 : index
    %38 = vector.load %arg8[%c0_21, %c0_22] : memref<32x64xf32, #tpu.memory_space<vmem>>, vector<32x64xf32>
    %39 = arith.truncf %38 : vector<32x64xf32> to vector<32x64xbf16>
    %cst_23 = arith.constant dense<0.000000e+00> : vector<8x64xf32>
    %40 = tpu.matmul %37, %39, %cst_23 {dimension_numbers = #tpu.dot_dimension_numbers<[1], [0], [0], [1], [0, 0, 1, 1], [], []>} : vector<8x32xbf16>, vector<32x64xbf16>, vector<8x64xf32> -> vector<8x64xf32>
    %c0_24 = arith.constant 0 : index
    %c0_25 = arith.constant 0 : index
    %41 = vector.load %arg9[%c0_24, %c0_25] : memref<1x64xf32, #tpu.memory_space<vmem>>, vector<1x64xf32>
    %42 = vector.broadcast %41 : vector<1x64xf32> to vector<8x64xf32>
    %43 = arith.addf %40, %42 : vector<8x64xf32>
    %44 = vector.extract_strided_slice %43 {offsets = [0, 0], sizes = [8, 32], strides = [1, 1]} : vector<8x64xf32> to vector<8x32xf32>
    %45 = vector.extract_strided_slice %43 {offsets = [0, 32], sizes = [8, 32], strides = [1, 1]} : vector<8x64xf32> to vector<8x32xf32>
    %c0_26 = arith.constant 0 : index
    %c0_27 = arith.constant 0 : index
    %46 = vector.load %arg11[%c0_26, %c0_27] : memref<1x32xf32, #tpu.memory_space<vmem>>, vector<1x32xf32>
    %47 = tpu.transpose %44, [1, 0] : vector<8x32xf32> -> vector<32x8xf32>
    %cst_28 = arith.constant 0.000000e+00 : f32
    %48 = vector.broadcast %cst_28 : f32 to vector<8x32xf32>
    %49 = vector.extract_strided_slice %36 {offsets = [0, 0], sizes = [8, 8], strides = [1, 1]} : vector<8x32xf32> to vector<8x8xf32>
    %50 = vector.extract_strided_slice %47 {offsets = [0, 0], sizes = [8, 8], strides = [1, 1]} : vector<32x8xf32> to vector<8x8xf32>
    %cst_29 = arith.constant dense<0.000000e+00> : vector<8x8xf32>
    %51 = tpu.matmul %49, %50, %cst_29 {dimension_numbers = #tpu.dot_dimension_numbers<[1], [0], [0], [1], [0, 0, 1, 1], [], []>} : vector<8x8xf32>, vector<8x8xf32>, vector<8x8xf32> -> vector<8x8xf32>
    %cst_30 = arith.constant 0.353553385 : f32
    %52 = vector.broadcast %cst_30 : f32 to vector<8x8xf32>
    %53 = arith.mulf %51, %52 : vector<8x8xf32>
    %cst_31 = arith.constant 0.000000e+00 : f32
    %54 = vector.broadcast %cst_31 : f32 to vector<1x8xf32>
    %55 = arith.cmpf oeq, %5, %54 : vector<1x8xf32>
    %cst_32 = arith.constant -1.000000e+09 : f32
    %56 = vector.shape_cast %55 : vector<1x8xi1> to vector<1x8xi1>
    %57 = vector.broadcast %56 : vector<1x8xi1> to vector<8x8xi1>
    %58 = vector.broadcast %cst_32 : f32 to vector<8x8xf32>
    %59 = arith.select %57, %58, %53 : vector<8x8xi1>, vector<8x8xf32>
    %cst_33 = arith.constant dense<0xFF800000> : vector<8xf32>
    %60 = vector.multi_reduction <maximumf>, %59, %cst_33 [1] : vector<8x8xf32> to vector<8xf32>
    %61 = vector.shape_cast %60 : vector<8xf32> to vector<8x1xf32>
    %62 = vector.broadcast %61 : vector<8x1xf32> to vector<8x8xf32>
    %63 = arith.subf %59, %62 : vector<8x8xf32>
    %64 = math.exp %63 : vector<8x8xf32>
    %cst_34 = arith.constant dense<0.000000e+00> : vector<8xf32>
    %65 = vector.multi_reduction <add>, %64, %cst_34 [1] : vector<8x8xf32> to vector<8xf32>
    %66 = vector.shape_cast %65 : vector<8xf32> to vector<8x1xf32>
    %67 = vector.broadcast %66 : vector<8x1xf32> to vector<8x8xf32>
    %68 = arith.divf %64, %67 : vector<8x8xf32>
    %69 = vector.extract_strided_slice %45 {offsets = [0, 0], sizes = [8, 8], strides = [1, 1]} : vector<8x32xf32> to vector<8x8xf32>
    %cst_35 = arith.constant dense<0.000000e+00> : vector<8x8xf32>
    %70 = tpu.matmul %68, %69, %cst_35 {dimension_numbers = #tpu.dot_dimension_numbers<[1], [0], [0], [1], [0, 0, 1, 1], [], []>} : vector<8x8xf32>, vector<8x8xf32>, vector<8x8xf32> -> vector<8x8xf32>
    %71 = arith.truncf %70 : vector<8x8xf32> to vector<8x8xbf16>
    %c0_36 = arith.constant 0 : index
    %c0_37 = arith.constant 0 : index
    %72 = vector.load %arg10[%c0_36, %c0_37] : memref<32x32xf32, #tpu.memory_space<vmem>>, vector<8x32xf32>
    %73 = arith.truncf %72 : vector<8x32xf32> to vector<8x32xbf16>
    %cst_38 = arith.constant dense<0.000000e+00> : vector<8x32xf32>
    %74 = tpu.matmul %71, %73, %cst_38 {dimension_numbers = #tpu.dot_dimension_numbers<[1], [0], [0], [1], [0, 0, 1, 1], [], []>} : vector<8x8xbf16>, vector<8x32xbf16>, vector<8x32xf32> -> vector<8x32xf32>
    %75 = arith.addf %48, %74 : vector<8x32xf32>
    %76 = vector.extract_strided_slice %36 {offsets = [0, 8], sizes = [8, 8], strides = [1, 1]} : vector<8x32xf32> to vector<8x8xf32>
    %77 = vector.extract_strided_slice %47 {offsets = [8, 0], sizes = [8, 8], strides = [1, 1]} : vector<32x8xf32> to vector<8x8xf32>
    %cst_39 = arith.constant dense<0.000000e+00> : vector<8x8xf32>
    %78 = tpu.matmul %76, %77, %cst_39 {dimension_numbers = #tpu.dot_dimension_numbers<[1], [0], [0], [1], [0, 0, 1, 1], [], []>} : vector<8x8xf32>, vector<8x8xf32>, vector<8x8xf32> -> vector<8x8xf32>
    %cst_40 = arith.constant 0.353553385 : f32
    %79 = vector.broadcast %cst_40 : f32 to vector<8x8xf32>
    %80 = arith.mulf %78, %79 : vector<8x8xf32>
    %cst_41 = arith.constant 0.000000e+00 : f32
    %81 = vector.broadcast %cst_41 : f32 to vector<1x8xf32>
    %82 = arith.cmpf oeq, %5, %81 : vector<1x8xf32>
    %cst_42 = arith.constant -1.000000e+09 : f32
    %83 = vector.shape_cast %82 : vector<1x8xi1> to vector<1x8xi1>
    %84 = vector.broadcast %83 : vector<1x8xi1> to vector<8x8xi1>
    %85 = vector.broadcast %cst_42 : f32 to vector<8x8xf32>
    %86 = arith.select %84, %85, %80 : vector<8x8xi1>, vector<8x8xf32>
    %cst_43 = arith.constant dense<0xFF800000> : vector<8xf32>
    %87 = vector.multi_reduction <maximumf>, %86, %cst_43 [1] : vector<8x8xf32> to vector<8xf32>
    %88 = vector.shape_cast %87 : vector<8xf32> to vector<8x1xf32>
    %89 = vector.broadcast %88 : vector<8x1xf32> to vector<8x8xf32>
    %90 = arith.subf %86, %89 : vector<8x8xf32>
    %91 = math.exp %90 : vector<8x8xf32>
    %cst_44 = arith.constant dense<0.000000e+00> : vector<8xf32>
    %92 = vector.multi_reduction <add>, %91, %cst_44 [1] : vector<8x8xf32> to vector<8xf32>
    %93 = vector.shape_cast %92 : vector<8xf32> to vector<8x1xf32>
    %94 = vector.broadcast %93 : vector<8x1xf32> to vector<8x8xf32>
    %95 = arith.divf %91, %94 : vector<8x8xf32>
    %96 = vector.extract_strided_slice %45 {offsets = [0, 8], sizes = [8, 8], strides = [1, 1]} : vector<8x32xf32> to vector<8x8xf32>
    %cst_45 = arith.constant dense<0.000000e+00> : vector<8x8xf32>
    %97 = tpu.matmul %95, %96, %cst_45 {dimension_numbers = #tpu.dot_dimension_numbers<[1], [0], [0], [1], [0, 0, 1, 1], [], []>} : vector<8x8xf32>, vector<8x8xf32>, vector<8x8xf32> -> vector<8x8xf32>
    %98 = arith.truncf %97 : vector<8x8xf32> to vector<8x8xbf16>
    %c8 = arith.constant 8 : index
    %c0_46 = arith.constant 0 : index
    %99 = vector.load %arg10[%c8, %c0_46] : memref<32x32xf32, #tpu.memory_space<vmem>>, vector<8x32xf32>
    %100 = arith.truncf %99 : vector<8x32xf32> to vector<8x32xbf16>
    %cst_47 = arith.constant dense<0.000000e+00> : vector<8x32xf32>
    %101 = tpu.matmul %98, %100, %cst_47 {dimension_numbers = #tpu.dot_dimension_numbers<[1], [0], [0], [1], [0, 0, 1, 1], [], []>} : vector<8x8xbf16>, vector<8x32xbf16>, vector<8x32xf32> -> vector<8x32xf32>
    %102 = arith.addf %75, %101 : vector<8x32xf32>
    %103 = vector.extract_strided_slice %36 {offsets = [0, 16], sizes = [8, 8], strides = [1, 1]} : vector<8x32xf32> to vector<8x8xf32>
    %104 = vector.extract_strided_slice %47 {offsets = [16, 0], sizes = [8, 8], strides = [1, 1]} : vector<32x8xf32> to vector<8x8xf32>
    %cst_48 = arith.constant dense<0.000000e+00> : vector<8x8xf32>
    %105 = tpu.matmul %103, %104, %cst_48 {dimension_numbers = #tpu.dot_dimension_numbers<[1], [0], [0], [1], [0, 0, 1, 1], [], []>} : vector<8x8xf32>, vector<8x8xf32>, vector<8x8xf32> -> vector<8x8xf32>
    %cst_49 = arith.constant 0.353553385 : f32
    %106 = vector.broadcast %cst_49 : f32 to vector<8x8xf32>
    %107 = arith.mulf %105, %106 : vector<8x8xf32>
    %cst_50 = arith.constant 0.000000e+00 : f32
    %108 = vector.broadcast %cst_50 : f32 to vector<1x8xf32>
    %109 = arith.cmpf oeq, %5, %108 : vector<1x8xf32>
    %cst_51 = arith.constant -1.000000e+09 : f32
    %110 = vector.shape_cast %109 : vector<1x8xi1> to vector<1x8xi1>
    %111 = vector.broadcast %110 : vector<1x8xi1> to vector<8x8xi1>
    %112 = vector.broadcast %cst_51 : f32 to vector<8x8xf32>
    %113 = arith.select %111, %112, %107 : vector<8x8xi1>, vector<8x8xf32>
    %cst_52 = arith.constant dense<0xFF800000> : vector<8xf32>
    %114 = vector.multi_reduction <maximumf>, %113, %cst_52 [1] : vector<8x8xf32> to vector<8xf32>
    %115 = vector.shape_cast %114 : vector<8xf32> to vector<8x1xf32>
    %116 = vector.broadcast %115 : vector<8x1xf32> to vector<8x8xf32>
    %117 = arith.subf %113, %116 : vector<8x8xf32>
    %118 = math.exp %117 : vector<8x8xf32>
    %cst_53 = arith.constant dense<0.000000e+00> : vector<8xf32>
    %119 = vector.multi_reduction <add>, %118, %cst_53 [1] : vector<8x8xf32> to vector<8xf32>
    %120 = vector.shape_cast %119 : vector<8xf32> to vector<8x1xf32>
    %121 = vector.broadcast %120 : vector<8x1xf32> to vector<8x8xf32>
    %122 = arith.divf %118, %121 : vector<8x8xf32>
    %123 = vector.extract_strided_slice %45 {offsets = [0, 16], sizes = [8, 8], strides = [1, 1]} : vector<8x32xf32> to vector<8x8xf32>
    %cst_54 = arith.constant dense<0.000000e+00> : vector<8x8xf32>
    %124 = tpu.matmul %122, %123, %cst_54 {dimension_numbers = #tpu.dot_dimension_numbers<[1], [0], [0], [1], [0, 0, 1, 1], [], []>} : vector<8x8xf32>, vector<8x8xf32>, vector<8x8xf32> -> vector<8x8xf32>
    %125 = arith.truncf %124 : vector<8x8xf32> to vector<8x8xbf16>
    %c16 = arith.constant 16 : index
    %c0_55 = arith.constant 0 : index
    %126 = vector.load %arg10[%c16, %c0_55] : memref<32x32xf32, #tpu.memory_space<vmem>>, vector<8x32xf32>
    %127 = arith.truncf %126 : vector<8x32xf32> to vector<8x32xbf16>
    %cst_56 = arith.constant dense<0.000000e+00> : vector<8x32xf32>
    %128 = tpu.matmul %125, %127, %cst_56 {dimension_numbers = #tpu.dot_dimension_numbers<[1], [0], [0], [1], [0, 0, 1, 1], [], []>} : vector<8x8xbf16>, vector<8x32xbf16>, vector<8x32xf32> -> vector<8x32xf32>
    %129 = arith.addf %102, %128 : vector<8x32xf32>
    %130 = vector.extract_strided_slice %36 {offsets = [0, 24], sizes = [8, 8], strides = [1, 1]} : vector<8x32xf32> to vector<8x8xf32>
    %131 = vector.extract_strided_slice %47 {offsets = [24, 0], sizes = [8, 8], strides = [1, 1]} : vector<32x8xf32> to vector<8x8xf32>
    %cst_57 = arith.constant dense<0.000000e+00> : vector<8x8xf32>
    %132 = tpu.matmul %130, %131, %cst_57 {dimension_numbers = #tpu.dot_dimension_numbers<[1], [0], [0], [1], [0, 0, 1, 1], [], []>} : vector<8x8xf32>, vector<8x8xf32>, vector<8x8xf32> -> vector<8x8xf32>
    %cst_58 = arith.constant 0.353553385 : f32
    %133 = vector.broadcast %cst_58 : f32 to vector<8x8xf32>
    %134 = arith.mulf %132, %133 : vector<8x8xf32>
    %cst_59 = arith.constant 0.000000e+00 : f32
    %135 = vector.broadcast %cst_59 : f32 to vector<1x8xf32>
    %136 = arith.cmpf oeq, %5, %135 : vector<1x8xf32>
    %cst_60 = arith.constant -1.000000e+09 : f32
    %137 = vector.shape_cast %136 : vector<1x8xi1> to vector<1x8xi1>
    %138 = vector.broadcast %137 : vector<1x8xi1> to vector<8x8xi1>
    %139 = vector.broadcast %cst_60 : f32 to vector<8x8xf32>
    %140 = arith.select %138, %139, %134 : vector<8x8xi1>, vector<8x8xf32>
    %cst_61 = arith.constant dense<0xFF800000> : vector<8xf32>
    %141 = vector.multi_reduction <maximumf>, %140, %cst_61 [1] : vector<8x8xf32> to vector<8xf32>
    %142 = vector.shape_cast %141 : vector<8xf32> to vector<8x1xf32>
    %143 = vector.broadcast %142 : vector<8x1xf32> to vector<8x8xf32>
    %144 = arith.subf %140, %143 : vector<8x8xf32>
    %145 = math.exp %144 : vector<8x8xf32>
    %cst_62 = arith.constant dense<0.000000e+00> : vector<8xf32>
    %146 = vector.multi_reduction <add>, %145, %cst_62 [1] : vector<8x8xf32> to vector<8xf32>
    %147 = vector.shape_cast %146 : vector<8xf32> to vector<8x1xf32>
    %148 = vector.broadcast %147 : vector<8x1xf32> to vector<8x8xf32>
    %149 = arith.divf %145, %148 : vector<8x8xf32>
    %150 = vector.extract_strided_slice %45 {offsets = [0, 24], sizes = [8, 8], strides = [1, 1]} : vector<8x32xf32> to vector<8x8xf32>
    %cst_63 = arith.constant dense<0.000000e+00> : vector<8x8xf32>
    %151 = tpu.matmul %149, %150, %cst_63 {dimension_numbers = #tpu.dot_dimension_numbers<[1], [0], [0], [1], [0, 0, 1, 1], [], []>} : vector<8x8xf32>, vector<8x8xf32>, vector<8x8xf32> -> vector<8x8xf32>
    %152 = arith.truncf %151 : vector<8x8xf32> to vector<8x8xbf16>
    %c24 = arith.constant 24 : index
    %c0_64 = arith.constant 0 : index
    %153 = vector.load %arg10[%c24, %c0_64] : memref<32x32xf32, #tpu.memory_space<vmem>>, vector<8x32xf32>
    %154 = arith.truncf %153 : vector<8x32xf32> to vector<8x32xbf16>
    %cst_65 = arith.constant dense<0.000000e+00> : vector<8x32xf32>
    %155 = tpu.matmul %152, %154, %cst_65 {dimension_numbers = #tpu.dot_dimension_numbers<[1], [0], [0], [1], [0, 0, 1, 1], [], []>} : vector<8x8xbf16>, vector<8x32xbf16>, vector<8x32xf32> -> vector<8x32xf32>
    %156 = arith.addf %129, %155 : vector<8x32xf32>
    %157 = vector.broadcast %46 : vector<1x32xf32> to vector<8x32xf32>
    %158 = arith.addf %156, %157 : vector<8x32xf32>
    %159 = arith.addf %1, %158 : vector<8x32xf32>
    %c0_66 = arith.constant 0 : index
    %c0_67 = arith.constant 0 : index
    %c0_68 = arith.constant 0 : index
    %160 = vector.load %arg12[%c0_66, %c0_67, %c0_68] : memref<1x8x32xf32, #tpu.memory_space<vmem>>, vector<1x8x32xf32>
    %161 = vector.shape_cast %160 : vector<1x8x32xf32> to vector<8x32xf32>
    %162 = vector.shape_cast %159 : vector<8x32xf32> to vector<1x8x32xf32>
    tpu.vector_store %arg12[%c0_66, %c0_67, %c0_68], %162 {strides = array<i32>} : memref<1x8x32xf32, #tpu.memory_space<vmem>>, vector<1x8x32xf32>,
    return
  }
  func.func @transform_0(%arg0: i32) -> (i32, i32, i32) {
    %c0_i32 = arith.constant 0 : i32
    %c0_i32_0 = arith.constant 0 : i32
    %c0_i32_1 = arith.constant 0 : i32
    return %arg0, %c0_i32, %c0_i32_0 : i32, i32, i32
  }
  func.func @transform_1(%arg0: i32) -> (i32, i32, i32) {
    %c0_i32 = arith.constant 0 : i32
    %c0_i32_0 = arith.constant 0 : i32
    %c0_i32_1 = arith.constant 0 : i32
    return %arg0, %c0_i32, %c0_i32_0 : i32, i32, i32
  }
  func.func @transform_2(%arg0: i32) -> (i32, i32, i32) {
    %c0_i32 = arith.constant 0 : i32
    %c0_i32_0 = arith.constant 0 : i32
    %c0_i32_1 = arith.constant 0 : i32
    return %arg0, %c0_i32, %c0_i32_0 : i32, i32, i32
  }
  func.func @transform_3(%arg0: i32) -> (i32, i32) {
    %c0_i32 = arith.constant 0 : i32
    %c0_i32_0 = arith.constant 0 : i32
    %c0_i32_1 = arith.constant 0 : i32
    return %c0_i32, %c0_i32_0 : i32, i32
  }
  func.func @transform_4(%arg0: i32) -> (i32, i32) {
    %c0_i32 = arith.constant 0 : i32
    %c0_i32_0 = arith.constant 0 : i32
    %c0_i32_1 = arith.constant 0 : i32
    return %c0_i32, %c0_i32_0 : i32, i32
  }
  func.func @transform_5(%arg0: i32) -> (i32, i32) {
    %c0_i32 = arith.constant 0 : i32
    %c0_i32_0 = arith.constant 0 : i32
    %c0_i32_1 = arith.constant 0 : i32
    return %c0_i32, %c0_i32_0 : i32, i32
  }
  func.func @transform_6(%arg0: i32) -> (i32, i32) {
    %c0_i32 = arith.constant 0 : i32
    %c0_i32_0 = arith.constant 0 : i32
    %c0_i32_1 = arith.constant 0 : i32
    return %c0_i32, %c0_i32_0 : i32, i32
  }
  func.func @transform_7(%arg0: i32) -> (i32, i32) {
    %c0_i32 = arith.constant 0 : i32
    %c0_i32_0 = arith.constant 0 : i32
    %c0_i32_1 = arith.constant 0 : i32
    return %c0_i32, %c0_i32_0 : i32, i32
  }
  func.func @transform_8(%arg0: i32) -> (i32, i32) {
    %c0_i32 = arith.constant 0 : i32
    %c0_i32_0 = arith.constant 0 : i32
    %c0_i32_1 = arith.constant 0 : i32
    return %c0_i32, %c0_i32_0 : i32, i32
  }
  func.func @transform_9(%arg0: i32) -> (i32, i32) {
    %c0_i32 = arith.constant 0 : i32
    %c0_i32_0 = arith.constant 0 : i32
    %c0_i32_1 = arith.constant 0 : i32
    return %c0_i32, %c0_i32_0 : i32, i32
  }
  func.func @transform_10(%arg0: i32) -> (i32, i32) {
    %c0_i32 = arith.constant 0 : i32
    %c0_i32_0 = arith.constant 0 : i32
    %c0_i32_1 = arith.constant 0 : i32
    return %c0_i32, %c0_i32_0 : i32, i32
  }
  func.func @transform_11(%arg0: i32) -> (i32, i32, i32) {
    %c0_i32 = arith.constant 0 : i32
    %c0_i32_0 = arith.constant 0 : i32
    %c0_i32_1 = arith.constant 0 : i32
    return %arg0, %c0_i32, %c0_i32_0 : i32, i32, i32
  }
}

module attributes {stable_mosaic.version = 11 : i64} {
  func.func @layernorm_kernel(%arg0: i32, %arg1: memref<16x32xf32, #tpu.memory_space<vmem>>, %arg2: memref<1x32xf32, #tpu.memory_space<vmem>>, %arg3: memref<1x32xf32, #tpu.memory_space<vmem>>, %arg4: memref<16x32xf32, #tpu.memory_space<vmem>>) attributes {dimension_semantics = [#tpu.dimension_semantics<parallel>], iteration_bounds = array<i64: 1>, scalar_prefetch = 0 : i64, scratch_operands = 0 : i64, tpu.core_type = #tpu.core_type<tc>, window_params = [{transform_indices = @transform_0, window_bounds = array<i64: 16, 32>}, {pipeline_mode = #tpu.pipeline_mode<synchronous>, transform_indices = @transform_1, window_bounds = array<i64: 1, 32>}, {pipeline_mode = #tpu.pipeline_mode<synchronous>, transform_indices = @transform_2, window_bounds = array<i64: 1, 32>}, {transform_indices = @transform_3, window_bounds = array<i64: 16, 32>}]} {
    %c0 = arith.constant 0 : index
    %c0_0 = arith.constant 0 : index
    %0 = vector.load %arg1[%c0, %c0_0] : memref<16x32xf32, #tpu.memory_space<vmem>>, vector<16x32xf32>
    %c0_1 = arith.constant 0 : index
    %c0_2 = arith.constant 0 : index
    %1 = vector.load %arg2[%c0_1, %c0_2] : memref<1x32xf32, #tpu.memory_space<vmem>>, vector<1x32xf32>
    %c0_3 = arith.constant 0 : index
    %c0_4 = arith.constant 0 : index
    %2 = vector.load %arg3[%c0_3, %c0_4] : memref<1x32xf32, #tpu.memory_space<vmem>>, vector<1x32xf32>
    %cst = arith.constant dense<0.000000e+00> : vector<16xf32>
    %3 = vector.multi_reduction <add>, %0, %cst [1] : vector<16x32xf32> to vector<16xf32>
    %4 = vector.shape_cast %3 : vector<16xf32> to vector<16x1xf32>
    %cst_5 = arith.constant 3.200000e+01 : f32
    %5 = vector.broadcast %cst_5 : f32 to vector<16x1xf32>
    %6 = arith.divf %4, %5 : vector<16x1xf32>
    %7 = vector.broadcast %6 : vector<16x1xf32> to vector<16x32xf32>
    %8 = arith.subf %0, %7 : vector<16x32xf32>
    %9 = arith.mulf %8, %8 : vector<16x32xf32>
    %cst_6 = arith.constant dense<0.000000e+00> : vector<16xf32>
    %10 = vector.multi_reduction <add>, %9, %cst_6 [1] : vector<16x32xf32> to vector<16xf32>
    %11 = vector.shape_cast %10 : vector<16xf32> to vector<16x1xf32>
    %cst_7 = arith.constant 3.100000e+01 : f32
    %12 = vector.broadcast %cst_7 : f32 to vector<16x1xf32>
    %13 = arith.divf %11, %12 : vector<16x1xf32>
    %14 = vector.broadcast %6 : vector<16x1xf32> to vector<16x32xf32>
    %15 = arith.subf %0, %14 : vector<16x32xf32>
    %16 = vector.broadcast %1 : vector<1x32xf32> to vector<16x32xf32>
    %17 = arith.mulf %16, %15 : vector<16x32xf32>
    %18 = math.sqrt %13 : vector<16x1xf32>
    %cst_8 = arith.constant 9.99999997E-7 : f32
    %19 = vector.broadcast %cst_8 : f32 to vector<16x1xf32>
    %20 = arith.addf %18, %19 : vector<16x1xf32>
    %21 = vector.broadcast %20 : vector<16x1xf32> to vector<16x32xf32>
    %22 = arith.divf %17, %21 : vector<16x32xf32>
    %23 = vector.broadcast %2 : vector<1x32xf32> to vector<16x32xf32>
    %24 = arith.addf %22, %23 : vector<16x32xf32>
    %c0_9 = arith.constant 0 : index
    %c0_10 = arith.constant 0 : index
    %25 = vector.load %arg4[%c0_9, %c0_10] : memref<16x32xf32, #tpu.memory_space<vmem>>, vector<16x32xf32>
    tpu.vector_store %arg4[%c0_9, %c0_10], %24 {strides = array<i32>} : memref<16x32xf32, #tpu.memory_space<vmem>>, vector<16x32xf32>,
    return
  }
  func.func @transform_0(%arg0: i32) -> (i32, i32) {
    %c0_i32 = arith.constant 0 : i32
    %c0_i32_0 = arith.constant 0 : i32
    return %arg0, %c0_i32 : i32, i32
  }
  func.func @transform_1(%arg0: i32) -> (i32, i32) {
    %c0_i32 = arith.constant 0 : i32
    %c0_i32_0 = arith.constant 0 : i32
    %c0_i32_1 = arith.constant 0 : i32
    return %c0_i32, %c0_i32_0 : i32, i32
  }
  func.func @transform_2(%arg0: i32) -> (i32, i32) {
    %c0_i32 = arith.constant 0 : i32
    %c0_i32_0 = arith.constant 0 : i32
    %c0_i32_1 = arith.constant 0 : i32
    return %c0_i32, %c0_i32_0 : i32, i32
  }
  func.func @transform_3(%arg0: i32) -> (i32, i32) {
    %c0_i32 = arith.constant 0 : i32
    %c0_i32_0 = arith.constant 0 : i32
    return %arg0, %c0_i32 : i32, i32
  }
}

</mosaic_0001>

<llo_original>
// kernel: encoder_decoder_forward.16
$region0: #{encoder_decoder_forward.16}
  #allocation0 [shape = 'u32[]', space=smem, size = 0x4, offset = 0x4, fixed_abs, tag = 'smem constant byte address 0x4 - core index']
  #allocation1 [shape = 'u32[144,128]{1,0:T(1,128)}', space=vmem, size = 0x12000, scoped, tag = 'internal scratch']
  %s0 = inlined_call_operand.vmem [shape: f32[16,32], index: 0, kind: input, shape index: {}]
  %s1 = inlined_call_operand.vmem [shape: f32[1,32], index: 1, kind: input, shape index: {}]
  %s2 = inlined_call_operand.vmem [shape: f32[1,32], index: 2, kind: input, shape index: {}]
  %s3 = inlined_call_operand.vmem [shape: f32[16,32], index: 3, kind: output, shape index: {}]
  %s4 = sld [smem:[#allocation0]]
  $region22: #{encoder_decoder_forward.16} parent=0
    _
  %s6 = ssub.s32 1, %s4
  %s7 = scalar_select 0, %s6, %s4
  // Predicated region
  $region2: #{encoder_decoder_forward.16} parent=0 // pred_check
    _
  $region3: #{encoder_decoder_forward.16} parent=0 // pred_check_branch
    %9 = sbr.rel (0) target = $region5
  $region4: #{encoder_decoder_forward.16} parent=0 // pred_region
    _
  $region5: #{encoder_decoder_forward.16} parent=0 // pred_fallthru
    _
  // Predicated region
  $region6: #{encoder_decoder_forward.16} parent=0 // pred_check
    _
  $region7: #{encoder_decoder_forward.16} parent=0 // pred_check_branch
    %11 = sbr.rel (0) target = $region9
  $region8: #{encoder_decoder_forward.16} parent=0 // pred_region
    _
  $region9: #{encoder_decoder_forward.16} parent=0 // pred_fallthru
    _
  // Predicated region
  $region10: #{encoder_decoder_forward.16} parent=0 // pred_check
    _
  $region11: #{encoder_decoder_forward.16} parent=0 // pred_check_branch
    %13 = sbr.rel (0) target = $region13
  $region12: #{encoder_decoder_forward.16} parent=0 // pred_region
    _
  $region13: #{encoder_decoder_forward.16} parent=0 // pred_fallthru
    _
  %v14 = vld [vmem:[%s0] sm:$0xff]
  %v15 = vld [vmem:[%s0 + $0x8] sm:$0xff]
  %v16 = vld [vmem:[%s1] sm:$0x1]
  %v17 = vld [vmem:[%s2] sm:$0x1]
  %vm18 = vcmask 261120
  %v19 = vsel %vm18, %v14, 0.0
  %20 = vadd.xlane.f32.xlu0 %v19
  %v21 = vpop.xlane.xlu0 %20
  %v22 = vsel %vm18, %v15, 0.0
  %23 = vadd.xlane.f32.xlu0 %v22
  %v24 = vpop.xlane.xlu0 %23
  %v25 = vrcp.pop 32.0
  %v26 = vmul.f32 %v21, %v25
  %v27 = vmul.f32 %v24, %v25
  %v28 = vsub.f32 %v14, %v26
  %v29 = vsub.f32 %v15, %v27
  %v30 = vmul.f32 %v28, %v28
  %v31 = vmul.f32 %v29, %v29
  %v32 = vsel %vm18, %v30, 0.0
  %33 = vadd.xlane.f32.xlu0 %v32
  %v34 = vpop.xlane.xlu0 %33
  %v35 = vsel %vm18, %v31, 0.0
  %36 = vadd.xlane.f32.xlu0 %v35
  %v37 = vpop.xlane.xlu0 %36
  %v38 = vrcp.pop 31.0
  %v39 = vmul.f32 %v34, %v38
  %v40 = vmul.f32 %v37, %v38
  %v42 = vlaneseq
  %v43 = vshrl.u32 %v42, 7
  %v44 = vsub.s32 0, %v43
  %v45 = vrot.slane %v16, %v44
  %v47 = vmul.f32 %v45, %v28
  %v48 = vmul.f32 %v45, %v29
  %v49 = vrsqrt.pop %v39
  %v50 = vmul.f32 %v39, %v49
  %vm51 = vcmp.eq.f32.partialorder %v39, inf
  %v52 = vsel %vm51, %v39, %v50
  %vm53 = vcmp.eq.f32.partialorder %v39, 0.0
  %v54 = vand.u32 %v39, 2147483648
  %v55 = vsel %vm53, %v54, %v52
  %v56 = vrsqrt.pop %v40
  %v57 = vmul.f32 %v40, %v56
  %vm58 = vcmp.eq.f32.partialorder %v40, inf
  %v59 = vsel %vm58, %v40, %v57
  %vm60 = vcmp.eq.f32.partialorder %v40, 0.0
  %v61 = vand.u32 %v40, 2147483648
  %v62 = vsel %vm60, %v61, %v59
  %v63 = vadd.f32 %v55, 1e-06
  %v64 = vadd.f32 %v62, 1e-06
  %v65 = vrcp.pop %v63
  %v66 = vmul.f32 %v47, %v65
  %v67 = vrcp.pop %v64
  %v68 = vmul.f32 %v48, %v67
  %v70 = vlaneseq
  %v71 = vshrl.u32 %v70, 7
  %v72 = vsub.s32 0, %v71
  %v73 = vrot.slane %v17, %v72
  %v75 = vadd.f32 %v66, %v73
  %v76 = vadd.f32 %v68, %v73
  %77 = vst.msk [vmem:[%s3] sm:$0xff] %vm18, %v75
  %78 = vst.msk [vmem:[%s3 + $0x8] sm:$0xff] %vm18, %v76
  // Predicated region
  $region14: #{encoder_decoder_forward.16} parent=0 // pred_check
    _
  $region15: #{encoder_decoder_forward.16} parent=0 // pred_check_branch
    %80 = sbr.rel (0) target = $region17
  $region16: #{encoder_decoder_forward.16} parent=0 // pred_region
    _
  $region17: #{encoder_decoder_forward.16} parent=0 // pred_fallthru
    _
  // Predicated region
  $region18: #{encoder_decoder_forward.16} parent=0 // pred_check
    _
  $region19: #{encoder_decoder_forward.16} parent=0 // pred_check_branch
    %82 = sbr.rel (0) target = $region21
  $region20: #{encoder_decoder_forward.16} parent=0 // pred_region
    _
  $region21: #{encoder_decoder_forward.16} parent=0 // pred_fallthru
    _

// kernel: encoder_decoder_forward.13
$region0: #{encoder_decoder_forward.13}
  #allocation0 [shape = 'u32[]', space=smem, size = 0x4, offset = 0x4, fixed_abs, tag = 'smem constant byte address 0x4 - core index']
  #allocation1 [shape = 'u32[144,128]{1,0:T(1,128)}', space=vmem, size = 0x12000, scoped, tag = 'internal scratch']
  %s0 = inlined_call_operand.vmem [shape: f32[16,32], index: 0, kind: input, shape index: {}]
  %s1 = inlined_call_operand.vmem [shape: f32[1,32], index: 1, kind: input, shape index: {}]
  %s2 = inlined_call_operand.vmem [shape: f32[1,32], index: 2, kind: input, shape index: {}]
  %s3 = inlined_call_operand.vmem [shape: f32[32,64], index: 3, kind: input, shape index: {}]
  %s4 = inlined_call_operand.vmem [shape: f32[1,64], index: 4, kind: input, shape index: {}]
  %s5 = inlined_call_operand.vmem [shape: f32[64,32], index: 5, kind: input, shape index: {}]
  %s6 = inlined_call_operand.vmem [shape: f32[1,32], index: 6, kind: input, shape index: {}]
  %s7 = inlined_call_operand.vmem [shape: f32[16,32], index: 7, kind: output, shape index: {}]
  %s8 = sld [smem:[#allocation0]]
  $region38: #{encoder_decoder_forward.13} parent=0
    _
  %s10 = ssub.s32 1, %s8
  %s11 = scalar_select 0, %s10, %s8
  // Predicated region
  $region2: #{encoder_decoder_forward.13} parent=0 // pred_check
    _
  $region3: #{encoder_decoder_forward.13} parent=0 // pred_check_branch
    %13 = sbr.rel (0) target = $region5
  $region4: #{encoder_decoder_forward.13} parent=0 // pred_region
    _
  $region5: #{encoder_decoder_forward.13} parent=0 // pred_fallthru
    _
  // Predicated region
  $region6: #{encoder_decoder_forward.13} parent=0 // pred_check
    _
  $region7: #{encoder_decoder_forward.13} parent=0 // pred_check_branch
    %15 = sbr.rel (0) target = $region9
  $region8: #{encoder_decoder_forward.13} parent=0 // pred_region
    _
  $region9: #{encoder_decoder_forward.13} parent=0 // pred_fallthru
    _
  // Predicated region
  $region10: #{encoder_decoder_forward.13} parent=0 // pred_check
    _
  $region11: #{encoder_decoder_forward.13} parent=0 // pred_check_branch
    %17 = sbr.rel (0) target = $region13
  $region12: #{encoder_decoder_forward.13} parent=0 // pred_region
    _
  $region13: #{encoder_decoder_forward.13} parent=0 // pred_fallthru
    _
  // Predicated region
  $region14: #{encoder_decoder_forward.13} parent=0 // pred_check
    _
  $region15: #{encoder_decoder_forward.13} parent=0 // pred_check_branch
    %19 = sbr.rel (0) target = $region17
  $region16: #{encoder_decoder_forward.13} parent=0 // pred_region
    _
  $region17: #{encoder_decoder_forward.13} parent=0 // pred_fallthru
    _
  // Predicated region
  $region18: #{encoder_decoder_forward.13} parent=0 // pred_check
    _
  $region19: #{encoder_decoder_forward.13} parent=0 // pred_check_branch
    %21 = sbr.rel (0) target = $region21
  $region20: #{encoder_decoder_forward.13} parent=0 // pred_region
    _
  $region21: #{encoder_decoder_forward.13} parent=0 // pred_fallthru
    _
  // Predicated region
  $region22: #{encoder_decoder_forward.13} parent=0 // pred_check
    _
  $region23: #{encoder_decoder_forward.13} parent=0 // pred_check_branch
    %23 = sbr.rel (0) target = $region25
  $region24: #{encoder_decoder_forward.13} parent=0 // pred_region
    _
  $region25: #{encoder_decoder_forward.13} parent=0 // pred_fallthru
    _
  // Predicated region
  $region26: #{encoder_decoder_forward.13} parent=0 // pred_check
    _
  $region27: #{encoder_decoder_forward.13} parent=0 // pred_check_branch
    %25 = sbr.rel (0) target = $region29
  $region28: #{encoder_decoder_forward.13} parent=0 // pred_region
    _
  $region29: #{encoder_decoder_forward.13} parent=0 // pred_fallthru
    _
  %v27 = vld [vmem:[%s0] sm:$0xff]
  %v28 = vld [vmem:[%s0 + $0x8] sm:$0xff]
  %v29 = vld [vmem:[%s1] sm:$0x1]
  %v30 = vld [vmem:[%s2] sm:$0x1]
  %vm31 = vcmask 261120
  %v32 = vsel %vm31, %v27, 0.0
  %33 = vadd.xlane.f32.xlu0 %v32
  %v34 = vpop.xlane.xlu0 %33
  %v35 = vsel %vm31, %v28, 0.0
  %36 = vadd.xlane.f32.xlu0 %v35
  %v37 = vpop.xlane.xlu0 %36
  %v38 = vrcp.pop 32.0
  %v39 = vmul.f32 %v34, %v38
  %v40 = vmul.f32 %v37, %v38
  %v41 = vsub.f32 %v27, %v39
  %v42 = vsub.f32 %v28, %v40
  %v43 = vmul.f32 %v41, %v41
  %v44 = vmul.f32 %v42, %v42
  %v45 = vsel %vm31, %v43, 0.0
  %46 = vadd.xlane.f32.xlu0 %v45
  %v47 = vpop.xlane.xlu0 %46
  %v48 = vsel %vm31, %v44, 0.0
  %49 = vadd.xlane.f32.xlu0 %v48
  %v50 = vpop.xlane.xlu0 %49
  %v51 = vrcp.pop 31.0
  %v52 = vmul.f32 %v47, %v51
  %v53 = vmul.f32 %v50, %v51
  %v55 = vlaneseq
  %v56 = vshrl.u32 %v55, 7
  %v57 = vsub.s32 0, %v56
  %v58 = vrot.slane %v29, %v57
  %v60 = vmul.f32 %v58, %v41
  %v61 = vmul.f32 %v58, %v42
  %v62 = vrsqrt.pop %v52
  %v63 = vmul.f32 %v52, %v62
  %vm64 = vcmp.eq.f32.partialorder %v52, inf
  %v65 = vsel %vm64, %v52, %v63
  %vm66 = vcmp.eq.f32.partialorder %v52, 0.0
  %v67 = vand.u32 %v52, 2147483648
  %v68 = vsel %vm66, %v67, %v65
  %v69 = vrsqrt.pop %v53
  %v70 = vmul.f32 %v53, %v69
  %vm71 = vcmp.eq.f32.partialorder %v53, inf
  %v72 = vsel %vm71, %v53, %v70
  %vm73 = vcmp.eq.f32.partialorder %v53, 0.0
  %v74 = vand.u32 %v53, 2147483648
  %v75 = vsel %vm73, %v74, %v72
  %v76 = vadd.f32 %v68, 1e-06
  %v77 = vadd.f32 %v75, 1e-06
  %v78 = vrcp.pop %v76
  %v79 = vmul.f32 %v60, %v78
  %v80 = vrcp.pop %v77
  %v81 = vmul.f32 %v61, %v80
  %v83 = vlaneseq
  %v84 = vshrl.u32 %v83, 7
  %v85 = vsub.s32 0, %v84
  %v86 = vrot.slane %v30, %v85
  %v88 = vadd.f32 %v79, %v86
  %v89 = vadd.f32 %v81, %v86
  %v90 = vpack.c.bf16 %v89, %v88
  %v91 = vld [vmem:[%s3] sm:$0xff]
  %v92 = vld [vmem:[%s3 + $0x8] sm:$0xff]
  %v93 = vld [vmem:[%s3 + $0x10] sm:$0xff]
  %v94 = vld [vmem:[%s3 + $0x18] sm:$0xff]
  %v95 = vpack.c.bf16 %v92, %v91
  %v96 = vpack.c.bf16 %v94, %v93
  %v97 = vld [vmem:[%s4] sm:$0x1]
  %v99 = vlaneseq
  %v100 = vshrl.u32 %v99, 7
  %v101 = vsub.s32 0, %v100
  %v102 = vrot.slane %v97, %v101
  %v105 = vsel %vm31, %v90, 0
  %107 = vmatprep.subr.bf16.mxu0 0
  %108 = vmatpush1.bf16.msra.mxu0 %v95
  %109 = vmatprep.subr.bf16.mxu0 0
  %110 = vmatpush1.bf16.msra.mxu0 %v96
  %111 = vmatprep.subr.bf16.mxu0 0
  %112 = vmatpush1.bf16.msra.mxu0 0
  %113 = vmatprep.subr.bf16.mxu0 0
  %114 = vmatpush1.bf16.msra.mxu0 0
  %115 = vmatprep.subr.bf16.mxu0 0
  %116 = vmatpush1.bf16.msra.mxu0 0
  %117 = vmatprep.subr.bf16.mxu0 0
  %118 = vmatpush1.bf16.msra.mxu0 0
  %119 = vmatprep.subr.bf16.mxu0 0
  %120 = vmatpush1.bf16.msra.mxu0 0
  %121 = vmatprep.subr.bf16.mxu0 0
  %122 = vmatpush1.bf16.msra.mxu0 0
  %123 = vmatprep.subr.bf16.mxu0 0
  %124 = vmatpush1.bf16.msra.mxu0 0
  %125 = vmatprep.subr.bf16.mxu0 0
  %126 = vmatpush1.bf16.msra.mxu0 0
  %127 = vmatprep.subr.bf16.mxu0 0
  %128 = vmatpush1.bf16.msra.mxu0 0
  %129 = vmatprep.subr.bf16.mxu0 0
  %130 = vmatpush1.bf16.msra.mxu0 0
  %131 = vmatprep.subr.bf16.mxu0 0
  %132 = vmatpush1.bf16.msra.mxu0 0
  %133 = vmatprep.subr.bf16.mxu0 0
  %134 = vmatpush1.bf16.msra.mxu0 0
  %135 = vmatprep.subr.bf16.mxu0 0
  %136 = vmatpush1.bf16.msra.mxu0 0
  %137 = vmatprep.subr.bf16.mxu0 0
  %138 = vmatpush1.bf16.msra.mxu0 0
  %139 = vmatprep.mubr.bf16.mxu0 0
  %140 = vmatmul.mubr.bf16.gmra.mrb[0].mxu0 %v105
  %v141 = vpop.f32.mrb[0].mxu0
  %v142 = vadd.f32 %v102, %v141
  %v143 = vpop.f32.mrb[0].mxu0
  %v144 = vpop.f32.mrb[0].mxu0
  %v145 = vadd.f32 %v102, %v144
  %v146 = vpop.f32.mrb[0].mxu0
  %147 = vdwg.mxu0
  %v148 = vmax.f32 %v142, 0.0
  %v149 = vmax.f32 %v145, 0.0
  %v150 = vpack.c.bf16 %v149, %v148
  %v151 = vld [vmem:[%s5] sm:$0xff]
  %v152 = vld [vmem:[%s5 + $0x8] sm:$0xff]
  %v153 = vld [vmem:[%s5 + $0x10] sm:$0xff]
  %v154 = vld [vmem:[%s5 + $0x18] sm:$0xff]
  %v155 = vld [vmem:[%s5 + $0x20] sm:$0xff]
  %v156 = vld [vmem:[%s5 + $0x28] sm:$0xff]
  %v157 = vld [vmem:[%s5 + $0x30] sm:$0xff]
  %v158 = vld [vmem:[%s5 + $0x38] sm:$0xff]
  %v159 = vpack.c.bf16 %v152, %v151
  %v160 = vpack.c.bf16 %v154, %v153
  %v161 = vpack.c.bf16 %v156, %v155
  %v162 = vpack.c.bf16 %v158, %v157
  %v163 = vld [vmem:[%s6] sm:$0x1]
  %v165 = vlaneseq
  %v166 = vshrl.u32 %v165, 7
  %v167 = vsub.s32 0, %v166
  %v168 = vrot.slane %v163, %v167
  %vm170 = vcmask 523264
  %v172 = vsel %vm170, %v150, 0
  %174 = vmatprep.subr.bf16.mxu0 0
  %175 = vmatpush1.bf16.msra.mxu0 %v159
  %176 = vmatprep.subr.bf16.mxu0 0
  %177 = vmatpush1.bf16.msra.mxu0 %v160
  %178 = vmatprep.subr.bf16.mxu0 0
  %179 = vmatpush1.bf16.msra.mxu0 %v161
  %180 = vmatprep.subr.bf16.mxu0 0
  %181 = vmatpush1.bf16.msra.mxu0 %v162
  %182 = vmatprep.subr.bf16.mxu0 0
  %183 = vmatpush1.bf16.msra.mxu0 0
  %184 = vmatprep.subr.bf16.mxu0 0
  %185 = vmatpush1.bf16.msra.mxu0 0
  %186 = vmatprep.subr.bf16.mxu0 0
  %187 = vmatpush1.bf16.msra.mxu0 0
  %188 = vmatprep.subr.bf16.mxu0 0
  %189 = vmatpush1.bf16.msra.mxu0 0
  %190 = vmatprep.subr.bf16.mxu0 0
  %191 = vmatpush1.bf16.msra.mxu0 0
  %192 = vmatprep.subr.bf16.mxu0 0
  %193 = vmatpush1.bf16.msra.mxu0 0
  %194 = vmatprep.subr.bf16.mxu0 0
  %195 = vmatpush1.bf16.msra.mxu0 0
  %196 = vmatprep.subr.bf16.mxu0 0
  %197 = vmatpush1.bf16.msra.mxu0 0
  %198 = vmatprep.subr.bf16.mxu0 0
  %199 = vmatpush1.bf16.msra.mxu0 0
  %200 = vmatprep.subr.bf16.mxu0 0
  %201 = vmatpush1.bf16.msra.mxu0 0
  %202 = vmatprep.subr.bf16.mxu0 0
  %203 = vmatpush1.bf16.msra.mxu0 0
  %204 = vmatprep.subr.bf16.mxu0 0
  %205 = vmatpush1.bf16.msra.mxu0 0
  %206 = vmatprep.mubr.bf16.mxu0 0
  %207 = vmatmul.mubr.bf16.gmra.mrb[0].mxu0 %v172
  %v208 = vpop.f32.mrb[0].mxu0
  %v209 = vadd.f32 %v168, %v208
  %v210 = vpop.f32.mrb[0].mxu0
  %v211 = vpop.f32.mrb[0].mxu0
  %v212 = vadd.f32 %v168, %v211
  %v213 = vpop.f32.mrb[0].mxu0
  %214 = vdwg.mxu0
  %v215 = vadd.f32 %v27, %v209
  %v216 = vadd.f32 %v28, %v212
  %217 = vst.msk [vmem:[%s7] sm:$0xff] %vm31, %v215
  %218 = vst.msk [vmem:[%s7 + $0x8] sm:$0xff] %vm31, %v216
  // Predicated region
  $region30: #{encoder_decoder_forward.13} parent=0 // pred_check
    _
  $region31: #{encoder_decoder_forward.13} parent=0 // pred_check_branch
    %220 = sbr.rel (0) target = $region33
  $region32: #{encoder_decoder_forward.13} parent=0 // pred_region
    _
  $region33: #{encoder_decoder_forward.13} parent=0 // pred_fallthru
    _
  // Predicated region
  $region34: #{encoder_decoder_forward.13} parent=0 // pred_check
    _
  $region35: #{encoder_decoder_forward.13} parent=0 // pred_check_branch
    %222 = sbr.rel (0) target = $region37
  $region36: #{encoder_decoder_forward.13} parent=0 // pred_region
    _
  $region37: #{encoder_decoder_forward.13} parent=0 // pred_fallthru
    _

// kernel: encoder_decoder_forward.12
$region0: #{encoder_decoder_forward.12}
  #allocation0 [shape = 'u32[]', space=smem, size = 0x4, offset = 0x4, fixed_abs, tag = 'smem constant byte address 0x4 - core index']
  #allocation1 [shape = 'u32[144,128]{1,0:T(1,128)}', space=vmem, size = 0x12000, scoped, tag = 'internal scratch']
  %s0 = inlined_call_operand.vmem [shape: f32[2,8,32], index: 0, kind: input, shape index: {}]
  %s1 = inlined_call_operand.vmem [shape: f32[2,1,8], index: 1, kind: input, shape index: {}]
  %s2 = inlined_call_operand.vmem [shape: f32[1,32], index: 2, kind: input, shape index: {}]
  %s3 = inlined_call_operand.vmem [shape: f32[1,32], index: 3, kind: input, shape index: {}]
  %s4 = inlined_call_operand.vmem [shape: f32[32,96], index: 4, kind: input, shape index: {}]
  %s5 = inlined_call_operand.vmem [shape: f32[1,96], index: 5, kind: input, shape index: {}]
  %s6 = inlined_call_operand.vmem [shape: f32[32,32], index: 6, kind: input, shape index: {}]
  %s7 = inlined_call_operand.vmem [shape: f32[1,32], index: 7, kind: input, shape index: {}]
  %s8 = inlined_call_operand.vmem [shape: f32[2,8,32], index: 8, kind: output, shape index: {}]
  %s9 = sld [smem:[#allocation0]]
  $region65: #{encoder_decoder_forward.12} parent=0
    _
  %s11 = ssub.s32 1, %s9
  %s12 = scalar_select 0, %s11, %s9
  loop: start=0, step=1, limit=4
  $region2: #{encoder_decoder_forward.12} parent=0 // loop_pre_header
    _
  $region3: #{encoder_decoder_forward.12} parent=0 // loop_header
    %s14 = sphi 0, %s18
    %p15 = scmp.ge.s32.totalorder %s14, 4
    %s24 = sphi 0, %s26
    %s27 = sphi 0, %s24
    %s28 = sphi 0, %s27
    %s44 = sphi 0, %s28
    %s50 = sphi 0, %s52
    %s53 = sphi 0, %s50
    %s54 = sphi 0, %s53
    %s70 = sphi 0, %s54
    %s74 = sphi 0, %s74
    %s76 = sphi 0, %s74
    %s77 = sphi 0, %s76
    %s91 = sphi 0, %s77
    %s95 = sphi 0, %s95
    %s97 = sphi 0, %s95
    %s98 = sphi 0, %s97
    %s112 = sphi 0, %s98
    %s116 = sphi 0, %s116
    %s118 = sphi 0, %s116
    %s119 = sphi 0, %s118
    %s133 = sphi 0, %s119
    %s137 = sphi 0, %s137
    %s139 = sphi 0, %s137
    %s140 = sphi 0, %s139
    %s154 = sphi 0, %s140
    %s158 = sphi 0, %s158
    %s160 = sphi 0, %s158
    %s161 = sphi 0, %s160
    %s175 = sphi 0, %s161
    %s179 = sphi 0, %s179
    %s181 = sphi 0, %s179
    %s182 = sphi 0, %s181
    %s196 = sphi 0, %s182
    %s202 = sphi 0, %s204
    %s205 = sphi 0, %s202
    %s206 = sphi 0, %s205
    %s222 = sphi 0, %s206
  $region4: #{encoder_decoder_forward.12} parent=0 // loop_header_branch
    %17 = sbr.rel (%p15) target = $region8
  $region5: #{encoder_decoder_forward.12} parent=0 // loop_body
    %s19 = ssub.s32 %s14, 1
    %s20 = ssub.s32 %s14, 2
    %s21 = sadd.s32 %s14, 1
    %s22 = ssub.s32 %s14, %s21
    %p23 = scmp.eq.s32.totalorder %s22, 0
    %s25 = sadd.s32 %s24, 1
    %s26 = scalar_select %p23, %s24, %s25
    %p29 = pneg %p23
    %p30 = scmp.eq.s32.totalorder %s14, 1
    %p31 = por %p29, %p30
    %p32 = scmp.ne.s32.totalorder %s24, %s27
    %p33 = scmp.eq.s32.totalorder %s14, 0
    %p34 = por %p32, %p33
    %p35 = scmp.ne.s32.totalorder %s24, %s27
    %p36 = scmp.eq.s32.totalorder %s19, 1
    %p37 = por %p35, %p36
    %p38 = scmp.ne.s32.totalorder %s27, %s28
    %p39 = scmp.eq.s32.totalorder %s19, 0
    %p40 = por %p38, %p39
    %p41 = scmp.ne.s32.totalorder %s27, %s28
    %p42 = scmp.eq.s32.totalorder %s20, 1
    %p43 = por %p41, %p42
    %p45 = scmp.ne.s32.totalorder %s28, %s44
    %p46 = scmp.eq.s32.totalorder %s20, 0
    %p47 = por %p45, %p46
    %s48 = ssub.s32 %s14, %s21
    %p49 = scmp.eq.s32.totalorder %s48, 0
    %s51 = sadd.s32 %s50, 1
    %s52 = scalar_select %p49, %s50, %s51
    %p55 = pneg %p49
    %p56 = scmp.eq.s32.totalorder %s14, 1
    %p57 = por %p55, %p56
    %p58 = scmp.ne.s32.totalorder %s50, %s53
    %p59 = scmp.eq.s32.totalorder %s14, 0
    %p60 = por %p58, %p59
    %p61 = scmp.ne.s32.totalorder %s50, %s53
    %p62 = scmp.eq.s32.totalorder %s19, 1
    %p63 = por %p61, %p62
    %p64 = scmp.ne.s32.totalorder %s53, %s54
    %p65 = scmp.eq.s32.totalorder %s19, 0
    %p66 = por %p64, %p65
    %p67 = scmp.ne.s32.totalorder %s53, %s54
    %p68 = scmp.eq.s32.totalorder %s20, 1
    %p69 = por %p67, %p68
    %p71 = scmp.ne.s32.totalorder %s54, %s70
    %p72 = scmp.eq.s32.totalorder %s20, 0
    %p73 = por %p71, %p72
    %s75 = sadd.s32 %s74, 1
    %p78 = scmp.eq.s32.totalorder %s14, 1
    %p79 = scmp.ne.s32.totalorder %s74, %s76
    %p80 = scmp.eq.s32.totalorder %s14, 0
    %p81 = por %p79, %p80
    %p82 = scmp.ne.s32.totalorder %s74, %s76
    %p83 = scmp.eq.s32.totalorder %s19, 1
    %p84 = por %p82, %p83
    %p85 = scmp.ne.s32.totalorder %s76, %s77
    %p86 = scmp.eq.s32.totalorder %s19, 0
    %p87 = por %p85, %p86
    %p88 = scmp.ne.s32.totalorder %s76, %s77
    %p89 = scmp.eq.s32.totalorder %s20, 1
    %p90 = por %p88, %p89
    %p92 = scmp.ne.s32.totalorder %s77, %s91
    %p93 = scmp.eq.s32.totalorder %s20, 0
    %p94 = por %p92, %p93
    %s96 = sadd.s32 %s95, 1
    %p99 = scmp.eq.s32.totalorder %s14, 1
    %p100 = scmp.ne.s32.totalorder %s95, %s97
    %p101 = scmp.eq.s32.totalorder %s14, 0
    %p102 = por %p100, %p101
    %p103 = scmp.ne.s32.totalorder %s95, %s97
    %p104 = scmp.eq.s32.totalorder %s19, 1
    %p105 = por %p103, %p104
    %p106 = scmp.ne.s32.totalorder %s97, %s98
    %p107 = scmp.eq.s32.totalorder %s19, 0
    %p108 = por %p106, %p107
    %p109 = scmp.ne.s32.totalorder %s97, %s98
    %p110 = scmp.eq.s32.totalorder %s20, 1
    %p111 = por %p109, %p110
    %p113 = scmp.ne.s32.totalorder %s98, %s112
    %p114 = scmp.eq.s32.totalorder %s20, 0
    %p115 = por %p113, %p114
    %s117 = sadd.s32 %s116, 1
    %p120 = scmp.eq.s32.totalorder %s14, 1
    %p121 = scmp.ne.s32.totalorder %s116, %s118
    %p122 = scmp.eq.s32.totalorder %s14, 0
    %p123 = por %p121, %p122
    %p124 = scmp.ne.s32.totalorder %s116, %s118
    %p125 = scmp.eq.s32.totalorder %s19, 1
    %p126 = por %p124, %p125
    %p127 = scmp.ne.s32.totalorder %s118, %s119
    %p128 = scmp.eq.s32.totalorder %s19, 0
    %p129 = por %p127, %p128
    %p130 = scmp.ne.s32.totalorder %s118, %s119
    %p131 = scmp.eq.s32.totalorder %s20, 1
    %p132 = por %p130, %p131
    %p134 = scmp.ne.s32.totalorder %s119, %s133
    %p135 = scmp.eq.s32.totalorder %s20, 0
    %p136 = por %p134, %p135
    %s138 = sadd.s32 %s137, 1
    %p141 = scmp.eq.s32.totalorder %s14, 1
    %p142 = scmp.ne.s32.totalorder %s137, %s139
    %p143 = scmp.eq.s32.totalorder %s14, 0
    %p144 = por %p142, %p143
    %p145 = scmp.ne.s32.totalorder %s137, %s139
    %p146 = scmp.eq.s32.totalorder %s19, 1
    %p147 = por %p145, %p146
    %p148 = scmp.ne.s32.totalorder %s139, %s140
    %p149 = scmp.eq.s32.totalorder %s19, 0
    %p150 = por %p148, %p149
    %p151 = scmp.ne.s32.totalorder %s139, %s140
    %p152 = scmp.eq.s32.totalorder %s20, 1
    %p153 = por %p151, %p152
    %p155 = scmp.ne.s32.totalorder %s140, %s154
    %p156 = scmp.eq.s32.totalorder %s20, 0
    %p157 = por %p155, %p156
    %s159 = sadd.s32 %s158, 1
    %p162 = scmp.eq.s32.totalorder %s14, 1
    %p163 = scmp.ne.s32.totalorder %s158, %s160
    %p164 = scmp.eq.s32.totalorder %s14, 0
    %p165 = por %p163, %p164
    %p166 = scmp.ne.s32.totalorder %s158, %s160
    %p167 = scmp.eq.s32.totalorder %s19, 1
    %p168 = por %p166, %p167
    %p169 = scmp.ne.s32.totalorder %s160, %s161
    %p170 = scmp.eq.s32.totalorder %s19, 0
    %p171 = por %p169, %p170
    %p172 = scmp.ne.s32.totalorder %s160, %s161
    %p173 = scmp.eq.s32.totalorder %s20, 1
    %p174 = por %p172, %p173
    %p176 = scmp.ne.s32.totalorder %s161, %s175
    %p177 = scmp.eq.s32.totalorder %s20, 0
    %p178 = por %p176, %p177
    %s180 = sadd.s32 %s179, 1
    %p183 = scmp.eq.s32.totalorder %s14, 1
    %p184 = scmp.ne.s32.totalorder %s179, %s181
    %p185 = scmp.eq.s32.totalorder %s14, 0
    %p186 = por %p184, %p185
    %p187 = scmp.ne.s32.totalorder %s179, %s181
    %p188 = scmp.eq.s32.totalorder %s19, 1
    %p189 = por %p187, %p188
    %p190 = scmp.ne.s32.totalorder %s181, %s182
    %p191 = scmp.eq.s32.totalorder %s19, 0
    %p192 = por %p190, %p191
    %p193 = scmp.ne.s32.totalorder %s181, %s182
    %p194 = scmp.eq.s32.totalorder %s20, 1
    %p195 = por %p193, %p194
    %p197 = scmp.ne.s32.totalorder %s182, %s196
    %p198 = scmp.eq.s32.totalorder %s20, 0
    %p199 = por %p197, %p198
    %s200 = ssub.s32 %s14, %s21
    %p201 = scmp.eq.s32.totalorder %s200, 0
    %s203 = sadd.s32 %s202, 1
    %s204 = scalar_select %p201, %s202, %s203
    %p207 = pneg %p201
    %p208 = scmp.eq.s32.totalorder %s14, 1
    %p209 = por %p207, %p208
    %p210 = scmp.ne.s32.totalorder %s202, %s205
    %p211 = scmp.eq.s32.totalorder %s14, 0
    %p212 = por %p210, %p211
    %p213 = scmp.ne.s32.totalorder %s202, %s205
    %p214 = scmp.eq.s32.totalorder %s19, 1
    %p215 = por %p213, %p214
    %p216 = scmp.ne.s32.totalorder %s205, %s206
    %p217 = scmp.eq.s32.totalorder %s19, 0
    %p218 = por %p216, %p217
    %p219 = scmp.ne.s32.totalorder %s205, %s206
    %p220 = scmp.eq.s32.totalorder %s20, 1
    %p221 = por %p219, %p220
    %p223 = scmp.ne.s32.totalorder %s206, %s222
    %p224 = scmp.eq.s32.totalorder %s20, 0
    %p225 = por %p223, %p224
    %p226 = scmp.le.s32.totalorder 1, %s14
    %p227 = scmp.lt.s32.totalorder %s14, 3
    %p228 = pnand %p226, %p227
    %p229 = pneg %p228
    // Predicated region
    $region9: #{encoder_decoder_forward.12} parent=5 // pred_check
      _
    $region10: #{encoder_decoder_forward.12} parent=5 // pred_check_branch
      %231 = sbr.rel (%p228) target = $region12
    $region11: #{encoder_decoder_forward.12} parent=5 // pred_region
      %s232 = ssub.s32 %s14, 1
      // Predicated region
      $region13: #{encoder_decoder_forward.12} parent=11 // pred_check
        %p233 = pneg %p87
      $region14: #{encoder_decoder_forward.12} parent=11 // pred_check_branch
        %235 = sbr.rel (%p233) target = $region16
      $region15: #{encoder_decoder_forward.12} parent=11 // pred_region
        _
      $region16: #{encoder_decoder_forward.12} parent=11 // pred_fallthru
        _
      // Predicated region
      $region17: #{encoder_decoder_forward.12} parent=11 // pred_check
        %p236 = pneg %p108
      $region18: #{encoder_decoder_forward.12} parent=11 // pred_check_branch
        %238 = sbr.rel (%p236) target = $region20
      $region19: #{encoder_decoder_forward.12} parent=11 // pred_region
        _
      $region20: #{encoder_decoder_forward.12} parent=11 // pred_fallthru
        _
      // Predicated region
      $region21: #{encoder_decoder_forward.12} parent=11 // pred_check
        %p239 = pneg %p129
      $region22: #{encoder_decoder_forward.12} parent=11 // pred_check_branch
        %241 = sbr.rel (%p239) target = $region24
      $region23: #{encoder_decoder_forward.12} parent=11 // pred_region
        _
      $region24: #{encoder_decoder_forward.12} parent=11 // pred_fallthru
        _
      // Predicated region
      $region25: #{encoder_decoder_forward.12} parent=11 // pred_check
        %p242 = pneg %p150
      $region26: #{encoder_decoder_forward.12} parent=11 // pred_check_branch
        %244 = sbr.rel (%p242) target = $region28
      $region27: #{encoder_decoder_forward.12} parent=11 // pred_region
        _
      $region28: #{encoder_decoder_forward.12} parent=11 // pred_fallthru
        _
      // Predicated region
      $region29: #{encoder_decoder_forward.12} parent=11 // pred_check
        %p245 = pneg %p171
      $region30: #{encoder_decoder_forward.12} parent=11 // pred_check_branch
        %247 = sbr.rel (%p245) target = $region32
      $region31: #{encoder_decoder_forward.12} parent=11 // pred_region
        _
      $region32: #{encoder_decoder_forward.12} parent=11 // pred_fallthru
        _
      // Predicated region
      $region33: #{encoder_decoder_forward.12} parent=11 // pred_check
        %p248 = pneg %p192
      $region34: #{encoder_decoder_forward.12} parent=11 // pred_check_branch
        %250 = sbr.rel (%p248) target = $region36
      $region35: #{encoder_decoder_forward.12} parent=11 // pred_region
        _
      $region36: #{encoder_decoder_forward.12} parent=11 // pred_fallthru
        _
    $region12: #{encoder_decoder_forward.12} parent=5 // pred_fallthru
      _
    %p251 = scmp.lt.s32.totalorder %s14, 2
    // Predicated region
    $region37: #{encoder_decoder_forward.12} parent=5 // pred_check
      %p252 = pneg %p251
    $region38: #{encoder_decoder_forward.12} parent=5 // pred_check_branch
      %254 = sbr.rel (%p252) target = $region40
    $region39: #{encoder_decoder_forward.12} parent=5 // pred_region
      // Predicated region
      $region41: #{encoder_decoder_forward.12} parent=39 // pred_check
        %p255 = pneg %p34
      $region42: #{encoder_decoder_forward.12} parent=39 // pred_check_branch
        %257 = sbr.rel (%p255) target = $region44
      $region43: #{encoder_decoder_forward.12} parent=39 // pred_region
        %p258 = scmp.lt.s32.totalorder %s14, 1
        %s259 = scalar_select %p258, %s14, 1
        %s260 = smul.addr %s259, 8
        %s261 = scalar_lea.vmem %s0, %s260
      $region44: #{encoder_decoder_forward.12} parent=39 // pred_fallthru
        _
      // Predicated region
      $region45: #{encoder_decoder_forward.12} parent=39 // pred_check
        %p262 = pneg %p60
      $region46: #{encoder_decoder_forward.12} parent=39 // pred_check_branch
        %264 = sbr.rel (%p262) target = $region48
      $region47: #{encoder_decoder_forward.12} parent=39 // pred_region
        %p265 = scmp.lt.s32.totalorder %s14, 1
        %s266 = scalar_select %p265, %s14, 1
        %s267 = scalar_lea.vmem %s1, %s266
      $region48: #{encoder_decoder_forward.12} parent=39 // pred_fallthru
        _
    $region40: #{encoder_decoder_forward.12} parent=5 // pred_fallthru
      _
    %p268 = scmp.le.s32.totalorder 1, %s14
    %p269 = scmp.lt.s32.totalorder %s14, 3
    %p270 = pnand %p268, %p269
    %p271 = pneg %p270
    // Predicated region
    $region49: #{encoder_decoder_forward.12} parent=5 // pred_check
      _
    $region50: #{encoder_decoder_forward.12} parent=5 // pred_check_branch
      %273 = sbr.rel (%p270) target = $region52
    $region51: #{encoder_decoder_forward.12} parent=5 // pred_region
      %s274 = ssub.s32 %s14, 1
      %p275 = scmp.lt.s32.totalorder %s19, 1
      %s276 = scalar_select %p275, %s19, 1
      %s277 = smul.addr %s276, 8
      %s278 = scalar_lea.vmem %s0, %s277
      %p279 = pneg %p40
      %p280 = pneg %p37
      %p281 = scmp.lt.s32.totalorder %s19, 1
      %s282 = scalar_select %p281, %s19, 1
      %s283 = scalar_lea.vmem %s1, %s282
      %p284 = pneg %p66
      %p285 = pneg %p63
      %p286 = pneg %p87
      %p287 = pneg %p84
      %p288 = pneg %p108
      %p289 = pneg %p105
      %p290 = pneg %p129
      %p291 = pneg %p126
      %p292 = pneg %p150
      %p293 = pneg %p147
      %p294 = pneg %p171
      %p295 = pneg %p168
      %p296 = pneg %p192
      %p297 = pneg %p189
      %p298 = pneg %p218
      %p299 = pneg %p215
      %p300 = scmp.lt.s32.totalorder %s19, 1
      %s301 = scalar_select %p300, %s19, 1
      %s302 = smul.addr %s301, 8
      %s303 = scalar_lea.vmem %s8, %s302
      %p304 = scmp.lt.s32.totalorder %s19, 1
      %s305 = scalar_select %p304, %s19, 1
      %s306 = smul.addr %s305, 8
      %s307 = scalar_lea.vmem %s0, %s306
      %p308 = scmp.lt.s32.totalorder %s19, 1
      %s309 = scalar_select %p308, %s19, 1
      %s310 = scalar_lea.vmem %s1, %s309
      %p311 = scmp.lt.s32.totalorder %s19, 1
      %s312 = scalar_select %p311, %s19, 1
      %s313 = smul.addr %s312, 8
      %s314 = scalar_lea.vmem %s8, %s313
      %v316 = vld [vmem:[%s307] sm:$0xff]
      %v317 = vld [vmem:[%s310] sm:$0x1]
      %v318 = vld [vmem:[%s2] sm:$0x1]
      %v319 = vld [vmem:[%s3] sm:$0x1]
      %vm320 = vcmask 261120
      %v321 = vsel %vm320, %v316, 0.0
      %322 = vadd.xlane.f32.xlu0 %v321
      %v323 = vpop.xlane.xlu0 %322
      %v324 = vrcp.pop 32.0
      %v325 = vmul.f32 %v323, %v324
      %v326 = vsub.f32 %v316, %v325
      %v327 = vmul.f32 %v326, %v326
      %v328 = vsel %vm320, %v327, 0.0
      %329 = vadd.xlane.f32.xlu0 %v328
      %v330 = vpop.xlane.xlu0 %329
      %v331 = vrcp.pop 31.0
      %v332 = vmul.f32 %v330, %v331
      %v334 = vlaneseq
      %v335 = vshrl.u32 %v334, 7
      %v336 = vsub.s32 0, %v335
      %v337 = vrot.slane %v318, %v336
      %v339 = vmul.f32 %v337, %v326
      %v340 = vrsqrt.pop %v332
      %v341 = vmul.f32 %v332, %v340
      %vm342 = vcmp.eq.f32.partialorder %v332, inf
      %v343 = vsel %vm342, %v332, %v341
      %vm344 = vcmp.eq.f32.partialorder %v332, 0.0
      %v345 = vand.u32 %v332, 2147483648
      %v346 = vsel %vm344, %v345, %v343
      %v347 = vadd.f32 %v346, 1e-06
      %v348 = vrcp.pop %v347
      %v349 = vmul.f32 %v339, %v348
      %v351 = vlaneseq
      %v352 = vshrl.u32 %v351, 7
      %v353 = vsub.s32 0, %v352
      %v354 = vrot.slane %v319, %v353
      %v356 = vadd.f32 %v349, %v354
      %v357 = vpack.c.bf16 %v356, %v356
      %v358 = vld [vmem:[%s4] sm:$0xff]
      %v359 = vld [vmem:[%s4 + $0x8] sm:$0xff]
      %v360 = vld [vmem:[%s4 + $0x10] sm:$0xff]
      %v361 = vld [vmem:[%s4 + $0x18] sm:$0xff]
      %v362 = vpack.c.bf16 %v359, %v358
      %v363 = vpack.c.bf16 %v361, %v360
      %v364 = vld [vmem:[%s5] sm:$0x1]
      %v366 = vlaneseq
      %v367 = vshrl.u32 %v366, 7
      %v368 = vsub.s32 0, %v367
      %v369 = vrot.slane %v364, %v368
      %v372 = vsel %vm320, %v357, 0
      %374 = vmatprep.subr.bf16.mxu0 0
      %375 = vmatpush1.bf16.msra.mxu0 %v362
      %376 = vmatprep.subr.bf16.mxu0 0
      %377 = vmatpush1.bf16.msra.mxu0 %v363
      %378 = vmatprep.subr.bf16.mxu0 0
      %379 = vmatpush1.bf16.msra.mxu0 0
      %380 = vmatprep.subr.bf16.mxu0 0
      %381 = vmatpush1.bf16.msra.mxu0 0
      %382 = vmatprep.subr.bf16.mxu0 0
      %383 = vmatpush1.bf16.msra.mxu0 0
      %384 = vmatprep.subr.bf16.mxu0 0
      %385 = vmatpush1.bf16.msra.mxu0 0
      %386 = vmatprep.subr.bf16.mxu0 0
      %387 = vmatpush1.bf16.msra.mxu0 0
      %388 = vmatprep.subr.bf16.mxu0 0
      %389 = vmatpush1.bf16.msra.mxu0 0
      %390 = vmatprep.subr.bf16.mxu0 0
      %391 = vmatpush1.bf16.msra.mxu0 0
      %392 = vmatprep.subr.bf16.mxu0 0
      %393 = vmatpush1.bf16.msra.mxu0 0
      %394 = vmatprep.subr.bf16.mxu0 0
      %395 = vmatpush1.bf16.msra.mxu0 0
      %396 = vmatprep.subr.bf16.mxu0 0
      %397 = vmatpush1.bf16.msra.mxu0 0
      %398 = vmatprep.subr.bf16.mxu0 0
      %399 = vmatpush1.bf16.msra.mxu0 0
      %400 = vmatprep.subr.bf16.mxu0 0
      %401 = vmatpush1.bf16.msra.mxu0 0
      %402 = vmatprep.subr.bf16.mxu0 0
      %403 = vmatpush1.bf16.msra.mxu0 0
      %404 = vmatprep.subr.bf16.mxu0 0
      %405 = vmatpush1.bf16.msra.mxu0 0
      %406 = vmatprep.mubr.bf16.mxu0 0
      %407 = vmatmul.mubr.bf16.gmra.mrb[0].mxu0 %v372
      %v408 = vpop.f32.mrb[0].mxu0
      %v409 = vadd.f32 %v369, %v408
      %v410 = vpop.f32.mrb[0].mxu0
      %v411 = vpop.f32.mrb[0].mxu0
      %v412 = vpop.f32.mrb[0].mxu0
      %413 = vdwg.mxu0
      %v414 = vld [vmem:[%s7] sm:$0x1]
      %416 = vrot.lane.b32.xlu0 %v409, 96
      %v417 = vpop.permute.xlu0 %416
      %vm418 = vcmask 64512
      %v419 = vsel %vm418, %v409, 0
      %v421 = vsel %vm418, %v417, 0
      %423 = vmatprep.subr.mxu0 0.0
      %424 = vmatpush1.xpose.msra.mxu0 %v421
      %425 = vmatprep.subr.mxu0 0.0
      %426 = vmatpush1.xpose.msra.mxu0 0.0
      %427 = vmatprep.subr.mxu0 0.0
      %428 = vmatpush1.xpose.msra.mxu0 0.0
      %429 = vmatprep.subr.mxu0 0.0
      %430 = vmatpush1.xpose.msra.mxu0 0.0
      %431 = vmatprep.subr.mxu0 0.0
      %432 = vmatpush1.xpose.msra.mxu0 0.0
      %433 = vmatprep.subr.mxu0 0.0
      %434 = vmatpush1.xpose.msra.mxu0 0.0
      %435 = vmatprep.subr.mxu0 0.0
      %436 = vmatpush1.xpose.msra.mxu0 0.0
      %437 = vmatprep.subr.mxu0 0.0
      %438 = vmatpush1.xpose.msra.mxu0 0.0
      %439 = vmatprep.subr.mxu0 0.0
      %440 = vmatpush1.xpose.msra.mxu0 0.0
      %441 = vmatprep.subr.mxu0 0.0
      %442 = vmatpush1.xpose.msra.mxu0 0.0
      %443 = vmatprep.subr.mxu0 0.0
      %444 = vmatpush1.xpose.msra.mxu0 0.0
      %445 = vmatprep.subr.mxu0 0.0
      %446 = vmatpush1.xpose.msra.mxu0 0.0
      %447 = vmatprep.subr.mxu0 0.0
      %448 = vmatpush1.xpose.msra.mxu0 0.0
      %449 = vmatprep.subr.mxu0 0.0
      %450 = vmatpush1.xpose.msra.mxu0 0.0
      %451 = vmatprep.subr.mxu0 0.0
      %452 = vmatpush1.xpose.msra.mxu0 0.0
      %453 = vmatprep.subr.mxu0 0.0
      %454 = vmatpush1.xpose.msra.mxu0 0.0
      %455 = vmatprep.subr.mxu0 0.0
      %456 = vmatpush1.xpose.msra.mxu0 0.0
      %457 = vmatprep.subr.mxu0 0.0
      %458 = vmatpush1.xpose.msra.mxu0 0.0
      %459 = vmatprep.subr.mxu0 0.0
      %460 = vmatpush1.xpose.msra.mxu0 0.0
      %461 = vmatprep.subr.mxu0 0.0
      %462 = vmatpush1.xpose.msra.mxu0 0.0
      %463 = vmatprep.subr.mxu0 0.0
      %464 = vmatpush1.xpose.msra.mxu0 0.0
      %465 = vmatprep.subr.mxu0 0.0
      %466 = vmatpush1.xpose.msra.mxu0 0.0
      %467 = vmatprep.subr.mxu0 0.0
      %468 = vmatpush1.xpose.msra.mxu0 0.0
      %469 = vmatprep.subr.mxu0 0.0
      %470 = vmatpush1.xpose.msra.mxu0 0.0
      %471 = vmatprep.subr.mxu0 0.0
      %472 = vmatpush1.xpose.msra.mxu0 0.0
      %473 = vmatprep.subr.mxu0 0.0
      %474 = vmatpush1.xpose.msra.mxu0 0.0
      %475 = vmatprep.subr.mxu0 0.0
      %476 = vmatpush1.xpose.msra.mxu0 0.0
      %477 = vmatprep.subr.mxu0 0.0
      %478 = vmatpush1.xpose.msra.mxu0 0.0
      %479 = vmatprep.subr.mxu0 0.0
      %480 = vmatpush1.xpose.msra.mxu0 0.0
      %481 = vmatprep.subr.mxu0 0.0
      %482 = vmatpush1.xpose.msra.mxu0 0.0
      %483 = vmatprep.subr.mxu0 0.0
      %484 = vmatpush1.xpose.msra.mxu0 0.0
      %485 = vmatprep.subr.mxu0 0.0
      %486 = vmatpush1.xpose.msra.mxu0 0.0
      %487 = vmatprep.mubr.f32.mxu0 0.0
      %488 = vmatmul.mubr.f32.gmra.mrb[0].mxu0 %v419
      %v489 = vpop.f32.mrb[0].mxu0
      %v490 = vadd.f32 0.0, %v489
      %v491 = vpop.f32.mrb[0].mxu0
      %492 = vdwg.mxu0
      %v493 = vmul.f32 %v490, 0.35355338
      %vm494 = vcmp.eq.f32.partialorder %v317, 0.0
      %v495 = vsel %vm494, 1, 0
      %v496 = vlaneseq
      %v497 = vshrl.u32 %v496, 7
      %v498 = vsub.s32 0, %v497
      %v499 = vrot.slane %v495, %v498
      %vm500 = vcmp.eq.s32.totalorder %v499, 1
      %v501 = vsel %vm500, -1e+09, %v493
      %v502 = vsel %vm418, %v501, -inf
      %503 = vmax.xlane.f32.xlu0 %v502
      %v504 = vpop.xlane.xlu0 %503
      %v505 = vsub.f32 %v501, %v504
      %v506 = vmul.f32 %v505, 1.442695
      %v507 = vpow.pop %v506
      %v508 = vsel %vm418, %v507, 0.0
      %509 = vadd.xlane.f32.xlu0 %v508
      %v510 = vpop.xlane.xlu0 %509
      %v511 = vrcp.pop %v510
      %v512 = vmul.f32 %v507, %v511
      %513 = vrot.lane.b32.xlu0 %v409, 64
      %v514 = vpop.permute.xlu0 %513
      %v517 = vsel %vm418, %v512, 0
      %519 = vmatprep.subr.mxu0 0.0
      %520 = vmatpush1.msra.mxu0 %v514
      %521 = vmatprep.subr.mxu0 0.0
      %522 = vmatpush1.msra.mxu0 0.0
      %523 = vmatprep.subr.mxu0 0.0
      %524 = vmatpush1.msra.mxu0 0.0
      %525 = vmatprep.subr.mxu0 0.0
      %526 = vmatpush1.msra.mxu0 0.0
      %527 = vmatprep.subr.mxu0 0.0
      %528 = vmatpush1.msra.mxu0 0.0
      %529 = vmatprep.subr.mxu0 0.0
      %530 = vmatpush1.msra.mxu0 0.0
      %531 = vmatprep.subr.mxu0 0.0
      %532 = vmatpush1.msra.mxu0 0.0
      %533 = vmatprep.subr.mxu0 0.0
      %534 = vmatpush1.msra.mxu0 0.0
      %535 = vmatprep.subr.mxu0 0.0
      %536 = vmatpush1.msra.mxu0 0.0
      %537 = vmatprep.subr.mxu0 0.0
      %538 = vmatpush1.msra.mxu0 0.0
      %539 = vmatprep.subr.mxu0 0.0
      %540 = vmatpush1.msra.mxu0 0.0
      %541 = vmatprep.subr.mxu0 0.0
      %542 = vmatpush1.msra.mxu0 0.0
      %543 = vmatprep.subr.mxu0 0.0
      %544 = vmatpush1.msra.mxu0 0.0
      %545 = vmatprep.subr.mxu0 0.0
      %546 = vmatpush1.msra.mxu0 0.0
      %547 = vmatprep.subr.mxu0 0.0
      %548 = vmatpush1.msra.mxu0 0.0
      %549 = vmatprep.subr.mxu0 0.0
      %550 = vmatpush1.msra.mxu0 0.0
      %551 = vmatprep.subr.mxu0 0.0
      %552 = vmatpush1.msra.mxu0 0.0
      %553 = vmatprep.subr.mxu0 0.0
      %554 = vmatpush1.msra.mxu0 0.0
      %555 = vmatprep.subr.mxu0 0.0
      %556 = vmatpush1.msra.mxu0 0.0
      %557 = vmatprep.subr.mxu0 0.0
      %558 = vmatpush1.msra.mxu0 0.0
      %559 = vmatprep.subr.mxu0 0.0
      %560 = vmatpush1.msra.mxu0 0.0
      %561 = vmatprep.subr.mxu0 0.0
      %562 = vmatpush1.msra.mxu0 0.0
      %563 = vmatprep.subr.mxu0 0.0
      %564 = vmatpush1.msra.mxu0 0.0
      %565 = vmatprep.subr.mxu0 0.0
      %566 = vmatpush1.msra.mxu0 0.0
      %567 = vmatprep.subr.mxu0 0.0
      %568 = vmatpush1.msra.mxu0 0.0
      %569 = vmatprep.subr.mxu0 0.0
      %570 = vmatpush1.msra.mxu0 0.0
      %571 = vmatprep.subr.mxu0 0.0
      %572 = vmatpush1.msra.mxu0 0.0
      %573 = vmatprep.subr.mxu0 0.0
      %574 = vmatpush1.msra.mxu0 0.0
      %575 = vmatprep.subr.mxu0 0.0
      %576 = vmatpush1.msra.mxu0 0.0
      %577 = vmatprep.subr.mxu0 0.0
      %578 = vmatpush1.msra.mxu0 0.0
      %579 = vmatprep.subr.mxu0 0.0
      %580 = vmatpush1.msra.mxu0 0.0
      %581 = vmatprep.subr.mxu0 0.0
      %582 = vmatpush1.msra.mxu0 0.0
      %583 = vmatprep.mubr.f32.mxu0 0.0
      %584 = vmatmul.mubr.f32.gmra.mrb[0].mxu0 %v517
      %v585 = vpop.f32.mrb[0].mxu0
      %v586 = vadd.f32 0.0, %v585
      %v587 = vpop.f32.mrb[0].mxu0
      %588 = vdwg.mxu0
      %v589 = vpack.c.bf16 %v586, %v586
      %v590 = vld [vmem:[%s6] sm:$0xff]
      %v591 = vpack.c.bf16 %v590, %v590
      %592 = vrot.lane.b32.xlu0 %v409, 120
      %v593 = vpop.permute.xlu0 %592
      %594 = vrot.lane.b32.xlu0 %v409, 88
      %v595 = vpop.permute.xlu0 %594
      %v596 = vsel %vm418, %v593, 0
      %v598 = vsel %vm418, %v595, 0
      %600 = vmatprep.subr.mxu0 0.0
      %601 = vmatpush1.xpose.msra.mxu0 %v598
      %602 = vmatprep.subr.mxu0 0.0
      %603 = vmatpush1.xpose.msra.mxu0 0.0
      %604 = vmatprep.subr.mxu0 0.0
      %605 = vmatpush1.xpose.msra.mxu0 0.0
      %606 = vmatprep.subr.mxu0 0.0
      %607 = vmatpush1.xpose.msra.mxu0 0.0
      %608 = vmatprep.subr.mxu0 0.0
      %609 = vmatpush1.xpose.msra.mxu0 0.0
      %610 = vmatprep.subr.mxu0 0.0
      %611 = vmatpush1.xpose.msra.mxu0 0.0
      %612 = vmatprep.subr.mxu0 0.0
      %613 = vmatpush1.xpose.msra.mxu0 0.0
      %614 = vmatprep.subr.mxu0 0.0
      %615 = vmatpush1.xpose.msra.mxu0 0.0
      %616 = vmatprep.subr.mxu0 0.0
      %617 = vmatpush1.xpose.msra.mxu0 0.0
      %618 = vmatprep.subr.mxu0 0.0
      %619 = vmatpush1.xpose.msra.mxu0 0.0
      %620 = vmatprep.subr.mxu0 0.0
      %621 = vmatpush1.xpose.msra.mxu0 0.0
      %622 = vmatprep.subr.mxu0 0.0
      %623 = vmatpush1.xpose.msra.mxu0 0.0
      %624 = vmatprep.subr.mxu0 0.0
      %625 = vmatpush1.xpose.msra.mxu0 0.0
      %626 = vmatprep.subr.mxu0 0.0
      %627 = vmatpush1.xpose.msra.mxu0 0.0
      %628 = vmatprep.subr.mxu0 0.0
      %629 = vmatpush1.xpose.msra.mxu0 0.0
      %630 = vmatprep.subr.mxu0 0.0
      %631 = vmatpush1.xpose.msra.mxu0 0.0
      %632 = vmatprep.subr.mxu0 0.0
      %633 = vmatpush1.xpose.msra.mxu0 0.0
      %634 = vmatprep.subr.mxu0 0.0
      %635 = vmatpush1.xpose.msra.mxu0 0.0
      %636 = vmatprep.subr.mxu0 0.0
      %637 = vmatpush1.xpose.msra.mxu0 0.0
      %638 = vmatprep.subr.mxu0 0.0
      %639 = vmatpush1.xpose.msra.mxu0 0.0
      %640 = vmatprep.subr.mxu0 0.0
      %641 = vmatpush1.xpose.msra.mxu0 0.0
      %642 = vmatprep.subr.mxu0 0.0
      %643 = vmatpush1.xpose.msra.mxu0 0.0
      %644 = vmatprep.subr.mxu0 0.0
      %645 = vmatpush1.xpose.msra.mxu0 0.0
      %646 = vmatprep.subr.mxu0 0.0
      %647 = vmatpush1.xpose.msra.mxu0 0.0
      %648 = vmatprep.subr.mxu0 0.0
      %649 = vmatpush1.xpose.msra.mxu0 0.0
      %650 = vmatprep.subr.mxu0 0.0
      %651 = vmatpush1.xpose.msra.mxu0 0.0
      %652 = vmatprep.subr.mxu0 0.0
      %653 = vmatpush1.xpose.msra.mxu0 0.0
      %654 = vmatprep.subr.mxu0 0.0
      %655 = vmatpush1.xpose.msra.mxu0 0.0
      %656 = vmatprep.subr.mxu0 0.0
      %657 = vmatpush1.xpose.msra.mxu0 0.0
      %658 = vmatprep.subr.mxu0 0.0
      %659 = vmatpush1.xpose.msra.mxu0 0.0
      %660 = vmatprep.subr.mxu0 0.0
      %661 = vmatpush1.xpose.msra.mxu0 0.0
      %662 = vmatprep.subr.mxu0 0.0
      %663 = vmatpush1.xpose.msra.mxu0 0.0
      %664 = vmatprep.mubr.f32.mxu0 0.0
      %665 = vmatmul.mubr.f32.gmra.mrb[0].mxu0 %v596
      %v666 = vpop.f32.mrb[0].mxu0
      %v667 = vadd.f32 0.0, %v666
      %v668 = vpop.f32.mrb[0].mxu0
      %669 = vdwg.mxu0
      %v670 = vmul.f32 %v667, 0.35355338
      %v671 = vsel %vm500, -1e+09, %v670
      %v672 = vsel %vm418, %v671, -inf
      %673 = vmax.xlane.f32.xlu0 %v672
      %v674 = vpop.xlane.xlu0 %673
      %v675 = vsub.f32 %v671, %v674
      %v676 = vmul.f32 %v675, 1.442695
      %v677 = vpow.pop %v676
      %v678 = vsel %vm418, %v677, 0.0
      %679 = vadd.xlane.f32.xlu0 %v678
      %v680 = vpop.xlane.xlu0 %679
      %v681 = vrcp.pop %v680
      %v682 = vmul.f32 %v677, %v681
      %683 = vrot.lane.b32.xlu0 %v409, 56
      %v684 = vpop.permute.xlu0 %683
      %v687 = vsel %vm418, %v682, 0
      %689 = vmatprep.subr.mxu0 0.0
      %690 = vmatpush1.msra.mxu0 %v684
      %691 = vmatprep.subr.mxu0 0.0
      %692 = vmatpush1.msra.mxu0 0.0
      %693 = vmatprep.subr.mxu0 0.0
      %694 = vmatpush1.msra.mxu0 0.0
      %695 = vmatprep.subr.mxu0 0.0
      %696 = vmatpush1.msra.mxu0 0.0
      %697 = vmatprep.subr.mxu0 0.0
      %698 = vmatpush1.msra.mxu0 0.0
      %699 = vmatprep.subr.mxu0 0.0
      %700 = vmatpush1.msra.mxu0 0.0
      %701 = vmatprep.subr.mxu0 0.0
      %702 = vmatpush1.msra.mxu0 0.0
      %703 = vmatprep.subr.mxu0 0.0
      %704 = vmatpush1.msra.mxu0 0.0
      %705 = vmatprep.subr.mxu0 0.0
      %706 = vmatpush1.msra.mxu0 0.0
      %707 = vmatprep.subr.mxu0 0.0
      %708 = vmatpush1.msra.mxu0 0.0
      %709 = vmatprep.subr.mxu0 0.0
      %710 = vmatpush1.msra.mxu0 0.0
      %711 = vmatprep.subr.mxu0 0.0
      %712 = vmatpush1.msra.mxu0 0.0
      %713 = vmatprep.subr.mxu0 0.0
      %714 = vmatpush1.msra.mxu0 0.0
      %715 = vmatprep.subr.mxu0 0.0
      %716 = vmatpush1.msra.mxu0 0.0
      %717 = vmatprep.subr.mxu0 0.0
      %718 = vmatpush1.msra.mxu0 0.0
      %719 = vmatprep.subr.mxu0 0.0
      %720 = vmatpush1.msra.mxu0 0.0
      %721 = vmatprep.subr.mxu0 0.0
      %722 = vmatpush1.msra.mxu0 0.0
      %723 = vmatprep.subr.mxu0 0.0
      %724 = vmatpush1.msra.mxu0 0.0
      %725 = vmatprep.subr.mxu0 0.0
      %726 = vmatpush1.msra.mxu0 0.0
      %727 = vmatprep.subr.mxu0 0.0
      %728 = vmatpush1.msra.mxu0 0.0
      %729 = vmatprep.subr.mxu0 0.0
      %730 = vmatpush1.msra.mxu0 0.0
      %731 = vmatprep.subr.mxu0 0.0
      %732 = vmatpush1.msra.mxu0 0.0
      %733 = vmatprep.subr.mxu0 0.0
      %734 = vmatpush1.msra.mxu0 0.0
      %735 = vmatprep.subr.mxu0 0.0
      %736 = vmatpush1.msra.mxu0 0.0
      %737 = vmatprep.subr.mxu0 0.0
      %738 = vmatpush1.msra.mxu0 0.0
      %739 = vmatprep.subr.mxu0 0.0
      %740 = vmatpush1.msra.mxu0 0.0
      %741 = vmatprep.subr.mxu0 0.0
      %742 = vmatpush1.msra.mxu0 0.0
      %743 = vmatprep.subr.mxu0 0.0
      %744 = vmatpush1.msra.mxu0 0.0
      %745 = vmatprep.subr.mxu0 0.0
      %746 = vmatpush1.msra.mxu0 0.0
      %747 = vmatprep.subr.mxu0 0.0
      %748 = vmatpush1.msra.mxu0 0.0
      %749 = vmatprep.subr.mxu0 0.0
      %750 = vmatpush1.msra.mxu0 0.0
      %751 = vmatprep.subr.mxu0 0.0
      %752 = vmatpush1.msra.mxu0 0.0
      %753 = vmatprep.mubr.f32.mxu0 0.0
      %754 = vmatmul.mubr.f32.gmra.mrb[0].mxu0 %v687
      %v755 = vpop.f32.mrb[0].mxu0
      %v756 = vadd.f32 0.0, %v755
      %v757 = vpop.f32.mrb[0].mxu0
      %758 = vdwg.mxu0
      %v759 = vpack.c.bf16 %v756, %v756
      %v760 = vld [vmem:[%s6 + $0x8] sm:$0xff]
      %v761 = vpack.c.bf16 %v760, %v760
      %v763 = vsel %vm418, %v759, 0
      %vm765 = vcmask 1043456
      %v767 = vsel %vm765, %v761, 0
      %769 = vmatprep.subr.bf16.mxu0 0
      %770 = vmatpush1.bf16.msra.mxu0 %v767
      %771 = vmatprep.subr.bf16.mxu0 0
      %772 = vmatpush1.bf16.msra.mxu0 0
      %773 = vmatprep.subr.bf16.mxu0 0
      %774 = vmatpush1.bf16.msra.mxu0 0
      %775 = vmatprep.subr.bf16.mxu0 0
      %776 = vmatpush1.bf16.msra.mxu0 0
      %777 = vmatprep.subr.bf16.mxu0 0
      %778 = vmatpush1.bf16.msra.mxu0 0
      %779 = vmatprep.subr.bf16.mxu0 0
      %780 = vmatpush1.bf16.msra.mxu0 0
      %781 = vmatprep.subr.bf16.mxu0 0
      %782 = vmatpush1.bf16.msra.mxu0 0
      %783 = vmatprep.subr.bf16.mxu0 0
      %784 = vmatpush1.bf16.msra.mxu0 0
      %785 = vmatprep.subr.bf16.mxu0 0
      %786 = vmatpush1.bf16.msra.mxu0 0
      %787 = vmatprep.subr.bf16.mxu0 0
      %788 = vmatpush1.bf16.msra.mxu0 0
      %789 = vmatprep.subr.bf16.mxu0 0
      %790 = vmatpush1.bf16.msra.mxu0 0
      %791 = vmatprep.subr.bf16.mxu0 0
      %792 = vmatpush1.bf16.msra.mxu0 0
      %793 = vmatprep.subr.bf16.mxu0 0
      %794 = vmatpush1.bf16.msra.mxu0 0
      %795 = vmatprep.subr.bf16.mxu0 0
      %796 = vmatpush1.bf16.msra.mxu0 0
      %797 = vmatprep.subr.bf16.mxu0 0
      %798 = vmatpush1.bf16.msra.mxu0 0
      %799 = vmatprep.subr.bf16.mxu0 0
      %800 = vmatpush1.bf16.msra.mxu0 0
      %801 = vmatprep.mubr.bf16.mxu0 0
      %802 = vmatmul.mubr.bf16.gmra.mrb[0].mxu0 %v763
      %v803 = vpop.f32.mrb[0].mxu0
      %v804 = vadd.f32 0.0, %v803
      %v805 = vpop.f32.mrb[0].mxu0
      %v806 = vpop.f32.mrb[0].mxu0
      %v807 = vpop.f32.mrb[0].mxu0
      %808 = vdwg.mxu0
      %v810 = vsel %vm418, %v589, 0
      %v813 = vsel %vm765, %v591, 0
      %815 = vmatprep.subr.bf16.mxu0 0
      %816 = vmatpush1.bf16.msra.mxu0 %v813
      %817 = vmatprep.subr.bf16.mxu0 0
      %818 = vmatpush1.bf16.msra.mxu0 0
      %819 = vmatprep.subr.bf16.mxu0 0
      %820 = vmatpush1.bf16.msra.mxu0 0
      %821 = vmatprep.subr.bf16.mxu0 0
      %822 = vmatpush1.bf16.msra.mxu0 0
      %823 = vmatprep.subr.bf16.mxu0 0
      %824 = vmatpush1.bf16.msra.mxu0 0
      %825 = vmatprep.subr.bf16.mxu0 0
      %826 = vmatpush1.bf16.msra.mxu0 0
      %827 = vmatprep.subr.bf16.mxu0 0
      %828 = vmatpush1.bf16.msra.mxu0 0
      %829 = vmatprep.subr.bf16.mxu0 0
      %830 = vmatpush1.bf16.msra.mxu0 0
      %831 = vmatprep.subr.bf16.mxu0 0
      %832 = vmatpush1.bf16.msra.mxu0 0
      %833 = vmatprep.subr.bf16.mxu0 0
      %834 = vmatpush1.bf16.msra.mxu0 0
      %835 = vmatprep.subr.bf16.mxu0 0
      %836 = vmatpush1.bf16.msra.mxu0 0
      %837 = vmatprep.subr.bf16.mxu0 0
      %838 = vmatpush1.bf16.msra.mxu0 0
      %839 = vmatprep.subr.bf16.mxu0 0
      %840 = vmatpush1.bf16.msra.mxu0 0
      %841 = vmatprep.subr.bf16.mxu0 0
      %842 = vmatpush1.bf16.msra.mxu0 0
      %843 = vmatprep.subr.bf16.mxu0 0
      %844 = vmatpush1.bf16.msra.mxu0 0
      %845 = vmatprep.subr.bf16.mxu0 0
      %846 = vmatpush1.bf16.msra.mxu0 0
      %847 = vmatprep.mubr.bf16.mxu0 0
      %848 = vmatmul.mubr.bf16.gmra.mrb[0].mxu0 %v810
      %v849 = vpop.f32.mrb[0].mxu0
      %v850 = vadd.f32 %v804, %v849
      %v851 = vpop.f32.mrb[0].mxu0
      %v852 = vpop.f32.mrb[0].mxu0
      %v853 = vpop.f32.mrb[0].mxu0
      %854 = vdwg.mxu0
      %855 = vrot.lane.b32.xlu0 %v409, 112
      %v856 = vpop.permute.xlu0 %855
      %857 = vrot.lane.b32.xlu0 %v409, 80
      %v858 = vpop.permute.xlu0 %857
      %v859 = vsel %vm418, %v856, 0
      %v861 = vsel %vm418, %v858, 0
      %863 = vmatprep.subr.mxu0 0.0
      %864 = vmatpush1.xpose.msra.mxu0 %v861
      %865 = vmatprep.subr.mxu0 0.0
      %866 = vmatpush1.xpose.msra.mxu0 0.0
      %867 = vmatprep.subr.mxu0 0.0
      %868 = vmatpush1.xpose.msra.mxu0 0.0
      %869 = vmatprep.subr.mxu0 0.0
      %870 = vmatpush1.xpose.msra.mxu0 0.0
      %871 = vmatprep.subr.mxu0 0.0
      %872 = vmatpush1.xpose.msra.mxu0 0.0
      %873 = vmatprep.subr.mxu0 0.0
      %874 = vmatpush1.xpose.msra.mxu0 0.0
      %875 = vmatprep.subr.mxu0 0.0
      %876 = vmatpush1.xpose.msra.mxu0 0.0
      %877 = vmatprep.subr.mxu0 0.0
      %878 = vmatpush1.xpose.msra.mxu0 0.0
      %879 = vmatprep.subr.mxu0 0.0
      %880 = vmatpush1.xpose.msra.mxu0 0.0
      %881 = vmatprep.subr.mxu0 0.0
      %882 = vmatpush1.xpose.msra.mxu0 0.0
      %883 = vmatprep.subr.mxu0 0.0
      %884 = vmatpush1.xpose.msra.mxu0 0.0
      %885 = vmatprep.subr.mxu0 0.0
      %886 = vmatpush1.xpose.msra.mxu0 0.0
      %887 = vmatprep.subr.mxu0 0.0
      %888 = vmatpush1.xpose.msra.mxu0 0.0
      %889 = vmatprep.subr.mxu0 0.0
      %890 = vmatpush1.xpose.msra.mxu0 0.0
      %891 = vmatprep.subr.mxu0 0.0
      %892 = vmatpush1.xpose.msra.mxu0 0.0
      %893 = vmatprep.subr.mxu0 0.0
      %894 = vmatpush1.xpose.msra.mxu0 0.0
      %895 = vmatprep.subr.mxu0 0.0
      %896 = vmatpush1.xpose.msra.mxu0 0.0
      %897 = vmatprep.subr.mxu0 0.0
      %898 = vmatpush1.xpose.msra.mxu0 0.0
      %899 = vmatprep.subr.mxu0 0.0
      %900 = vmatpush1.xpose.msra.mxu0 0.0
      %901 = vmatprep.subr.mxu0 0.0
      %902 = vmatpush1.xpose.msra.mxu0 0.0
      %903 = vmatprep.subr.mxu0 0.0
      %904 = vmatpush1.xpose.msra.mxu0 0.0
      %905 = vmatprep.subr.mxu0 0.0
      %906 = vmatpush1.xpose.msra.mxu0 0.0
      %907 = vmatprep.subr.mxu0 0.0
      %908 = vmatpush1.xpose.msra.mxu0 0.0
      %909 = vmatprep.subr.mxu0 0.0
      %910 = vmatpush1.xpose.msra.mxu0 0.0
      %911 = vmatprep.subr.mxu0 0.0
      %912 = vmatpush1.xpose.msra.mxu0 0.0
      %913 = vmatprep.subr.mxu0 0.0
      %914 = vmatpush1.xpose.msra.mxu0 0.0
      %915 = vmatprep.subr.mxu0 0.0
      %916 = vmatpush1.xpose.msra.mxu0 0.0
      %917 = vmatprep.subr.mxu0 0.0
      %918 = vmatpush1.xpose.msra.mxu0 0.0
      %919 = vmatprep.subr.mxu0 0.0
      %920 = vmatpush1.xpose.msra.mxu0 0.0
      %921 = vmatprep.subr.mxu0 0.0
      %922 = vmatpush1.xpose.msra.mxu0 0.0
      %923 = vmatprep.subr.mxu0 0.0
      %924 = vmatpush1.xpose.msra.mxu0 0.0
      %925 = vmatprep.subr.mxu0 0.0
      %926 = vmatpush1.xpose.msra.mxu0 0.0
      %927 = vmatprep.mubr.f32.mxu0 0.0
      %928 = vmatmul.mubr.f32.gmra.mrb[0].mxu0 %v859
      %v929 = vpop.f32.mrb[0].mxu0
      %v930 = vadd.f32 0.0, %v929
      %v931 = vpop.f32.mrb[0].mxu0
      %932 = vdwg.mxu0
      %v933 = vmul.f32 %v930, 0.35355338
      %v934 = vsel %vm500, -1e+09, %v933
      %v935 = vsel %vm418, %v934, -inf
      %936 = vmax.xlane.f32.xlu0 %v935
      %v937 = vpop.xlane.xlu0 %936
      %v938 = vsub.f32 %v934, %v937
      %v939 = vmul.f32 %v938, 1.442695
      %v940 = vpow.pop %v939
      %v941 = vsel %vm418, %v940, 0.0
      %942 = vadd.xlane.f32.xlu0 %v941
      %v943 = vpop.xlane.xlu0 %942
      %v944 = vrcp.pop %v943
      %v945 = vmul.f32 %v940, %v944
      %946 = vrot.lane.b32.xlu0 %v409, 48
      %v947 = vpop.permute.xlu0 %946
      %v950 = vsel %vm418, %v945, 0
      %952 = vmatprep.subr.mxu0 0.0
      %953 = vmatpush1.msra.mxu0 %v947
      %954 = vmatprep.subr.mxu0 0.0
      %955 = vmatpush1.msra.mxu0 0.0
      %956 = vmatprep.subr.mxu0 0.0
      %957 = vmatpush1.msra.mxu0 0.0
      %958 = vmatprep.subr.mxu0 0.0
      %959 = vmatpush1.msra.mxu0 0.0
      %960 = vmatprep.subr.mxu0 0.0
      %961 = vmatpush1.msra.mxu0 0.0
      %962 = vmatprep.subr.mxu0 0.0
      %963 = vmatpush1.msra.mxu0 0.0
      %964 = vmatprep.subr.mxu0 0.0
      %965 = vmatpush1.msra.mxu0 0.0
      %966 = vmatprep.subr.mxu0 0.0
      %967 = vmatpush1.msra.mxu0 0.0
      %968 = vmatprep.subr.mxu0 0.0
      %969 = vmatpush1.msra.mxu0 0.0
      %970 = vmatprep.subr.mxu0 0.0
      %971 = vmatpush1.msra.mxu0 0.0
      %972 = vmatprep.subr.mxu0 0.0
      %973 = vmatpush1.msra.mxu0 0.0
      %974 = vmatprep.subr.mxu0 0.0
      %975 = vmatpush1.msra.mxu0 0.0
      %976 = vmatprep.subr.mxu0 0.0
      %977 = vmatpush1.msra.mxu0 0.0
      %978 = vmatprep.subr.mxu0 0.0
      %979 = vmatpush1.msra.mxu0 0.0
      %980 = vmatprep.subr.mxu0 0.0
      %981 = vmatpush1.msra.mxu0 0.0
      %982 = vmatprep.subr.mxu0 0.0
      %983 = vmatpush1.msra.mxu0 0.0
      %984 = vmatprep.subr.mxu0 0.0
      %985 = vmatpush1.msra.mxu0 0.0
      %986 = vmatprep.subr.mxu0 0.0
      %987 = vmatpush1.msra.mxu0 0.0
      %988 = vmatprep.subr.mxu0 0.0
      %989 = vmatpush1.msra.mxu0 0.0
      %990 = vmatprep.subr.mxu0 0.0
      %991 = vmatpush1.msra.mxu0 0.0
      %992 = vmatprep.subr.mxu0 0.0
      %993 = vmatpush1.msra.mxu0 0.0
      %994 = vmatprep.subr.mxu0 0.0
      %995 = vmatpush1.msra.mxu0 0.0
      %996 = vmatprep.subr.mxu0 0.0
      %997 = vmatpush1.msra.mxu0 0.0
      %998 = vmatprep.subr.mxu0 0.0
      %999 = vmatpush1.msra.mxu0 0.0
      %1000 = vmatprep.subr.mxu0 0.0
      %1001 = vmatpush1.msra.mxu0 0.0
      %1002 = vmatprep.subr.mxu0 0.0
      %1003 = vmatpush1.msra.mxu0 0.0
      %1004 = vmatprep.subr.mxu0 0.0
      %1005 = vmatpush1.msra.mxu0 0.0
      %1006 = vmatprep.subr.mxu0 0.0
      %1007 = vmatpush1.msra.mxu0 0.0
      %1008 = vmatprep.subr.mxu0 0.0
      %1009 = vmatpush1.msra.mxu0 0.0
      %1010 = vmatprep.subr.mxu0 0.0
      %1011 = vmatpush1.msra.mxu0 0.0
      %1012 = vmatprep.subr.mxu0 0.0
      %1013 = vmatpush1.msra.mxu0 0.0
      %1014 = vmatprep.subr.mxu0 0.0
      %1015 = vmatpush1.msra.mxu0 0.0
      %1016 = vmatprep.mubr.f32.mxu0 0.0
      %1017 = vmatmul.mubr.f32.gmra.mrb[0].mxu0 %v950
      %v1018 = vpop.f32.mrb[0].mxu0
      %v1019 = vadd.f32 0.0, %v1018
      %v1020 = vpop.f32.mrb[0].mxu0
      %1021 = vdwg.mxu0
      %v1022 = vpack.c.bf16 %v1019, %v1019
      %v1023 = vld [vmem:[%s6 + $0x10] sm:$0xff]
      %v1024 = vpack.c.bf16 %v1023, %v1023
      %v1026 = vsel %vm418, %v1022, 0
      %v1029 = vsel %vm765, %v1024, 0
      %1031 = vmatprep.subr.bf16.mxu0 0
      %1032 = vmatpush1.bf16.msra.mxu0 %v1029
      %1033 = vmatprep.subr.bf16.mxu0 0
      %1034 = vmatpush1.bf16.msra.mxu0 0
      %1035 = vmatprep.subr.bf16.mxu0 0
      %1036 = vmatpush1.bf16.msra.mxu0 0
      %1037 = vmatprep.subr.bf16.mxu0 0
      %1038 = vmatpush1.bf16.msra.mxu0 0
      %1039 = vmatprep.subr.bf16.mxu0 0
      %1040 = vmatpush1.bf16.msra.mxu0 0
      %1041 = vmatprep.subr.bf16.mxu0 0
      %1042 = vmatpush1.bf16.msra.mxu0 0
      %1043 = vmatprep.subr.bf16.mxu0 0
      %1044 = vmatpush1.bf16.msra.mxu0 0
      %1045 = vmatprep.subr.bf16.mxu0 0
      %1046 = vmatpush1.bf16.msra.mxu0 0
      %1047 = vmatprep.subr.bf16.mxu0 0
      %1048 = vmatpush1.bf16.msra.mxu0 0
      %1049 = vmatprep.subr.bf16.mxu0 0
      %1050 = vmatpush1.bf16.msra.mxu0 0
      %1051 = vmatprep.subr.bf16.mxu0 0
      %1052 = vmatpush1.bf16.msra.mxu0 0
      %1053 = vmatprep.subr.bf16.mxu0 0
      %1054 = vmatpush1.bf16.msra.mxu0 0
      %1055 = vmatprep.subr.bf16.mxu0 0
      %1056 = vmatpush1.bf16.msra.mxu0 0
      %1057 = vmatprep.subr.bf16.mxu0 0
      %1058 = vmatpush1.bf16.msra.mxu0 0
      %1059 = vmatprep.subr.bf16.mxu0 0
      %1060 = vmatpush1.bf16.msra.mxu0 0
      %1061 = vmatprep.subr.bf16.mxu0 0
      %1062 = vmatpush1.bf16.msra.mxu0 0
      %1063 = vmatprep.mubr.bf16.mxu0 0
      %1064 = vmatmul.mubr.bf16.gmra.mrb[0].mxu0 %v1026
      %v1065 = vpop.f32.mrb[0].mxu0
      %v1066 = vadd.f32 0.0, %v1065
      %v1067 = vpop.f32.mrb[0].mxu0
      %v1068 = vpop.f32.mrb[0].mxu0
      %v1069 = vpop.f32.mrb[0].mxu0
      %1070 = vdwg.mxu0
      %v1071 = vadd.f32 %v850, %v1066
      %1072 = vrot.lane.b32.xlu0 %v409, 104
      %v1073 = vpop.permute.xlu0 %1072
      %1074 = vrot.lane.b32.xlu0 %v409, 72
      %v1075 = vpop.permute.xlu0 %1074
      %v1076 = vsel %vm418, %v1073, 0
      %v1078 = vsel %vm418, %v1075, 0
      %1080 = vmatprep.subr.mxu0 0.0
      %1081 = vmatpush1.xpose.msra.mxu0 %v1078
      %1082 = vmatprep.subr.mxu0 0.0
      %1083 = vmatpush1.xpose.msra.mxu0 0.0
      %1084 = vmatprep.subr.mxu0 0.0
      %1085 = vmatpush1.xpose.msra.mxu0 0.0
      %1086 = vmatprep.subr.mxu0 0.0
      %1087 = vmatpush1.xpose.msra.mxu0 0.0
      %1088 = vmatprep.subr.mxu0 0.0
      %1089 = vmatpush1.xpose.msra.mxu0 0.0
      %1090 = vmatprep.subr.mxu0 0.0
      %1091 = vmatpush1.xpose.msra.mxu0 0.0
      %1092 = vmatprep.subr.mxu0 0.0
      %1093 = vmatpush1.xpose.msra.mxu0 0.0
      %1094 = vmatprep.subr.mxu0 0.0
      %1095 = vmatpush1.xpose.msra.mxu0 0.0
      %1096 = vmatprep.subr.mxu0 0.0
      %1097 = vmatpush1.xpose.msra.mxu0 0.0
      %1098 = vmatprep.subr.mxu0 0.0
      %1099 = vmatpush1.xpose.msra.mxu0 0.0
      %1100 = vmatprep.subr.mxu0 0.0
      %1101 = vmatpush1.xpose.msra.mxu0 0.0
      %1102 = vmatprep.subr.mxu0 0.0
      %1103 = vmatpush1.xpose.msra.mxu0 0.0
      %1104 = vmatprep.subr.mxu0 0.0
      %1105 = vmatpush1.xpose.msra.mxu0 0.0
      %1106 = vmatprep.subr.mxu0 0.0
      %1107 = vmatpush1.xpose.msra.mxu0 0.0
      %1108 = vmatprep.subr.mxu0 0.0
      %1109 = vmatpush1.xpose.msra.mxu0 0.0
      %1110 = vmatprep.subr.mxu0 0.0
      %1111 = vmatpush1.xpose.msra.mxu0 0.0
      %1112 = vmatprep.subr.mxu0 0.0
      %1113 = vmatpush1.xpose.msra.mxu0 0.0
      %1114 = vmatprep.subr.mxu0 0.0
      %1115 = vmatpush1.xpose.msra.mxu0 0.0
      %1116 = vmatprep.subr.mxu0 0.0
      %1117 = vmatpush1.xpose.msra.mxu0 0.0
      %1118 = vmatprep.subr.mxu0 0.0
      %1119 = vmatpush1.xpose.msra.mxu0 0.0
      %1120 = vmatprep.subr.mxu0 0.0
      %1121 = vmatpush1.xpose.msra.mxu0 0.0
      %1122 = vmatprep.subr.mxu0 0.0
      %1123 = vmatpush1.xpose.msra.mxu0 0.0
      %1124 = vmatprep.subr.mxu0 0.0
      %1125 = vmatpush1.xpose.msra.mxu0 0.0
      %1126 = vmatprep.subr.mxu0 0.0
      %1127 = vmatpush1.xpose.msra.mxu0 0.0
      %1128 = vmatprep.subr.mxu0 0.0
      %1129 = vmatpush1.xpose.msra.mxu0 0.0
      %1130 = vmatprep.subr.mxu0 0.0
      %1131 = vmatpush1.xpose.msra.mxu0 0.0
      %1132 = vmatprep.subr.mxu0 0.0
      %1133 = vmatpush1.xpose.msra.mxu0 0.0
      %1134 = vmatprep.subr.mxu0 0.0
      %1135 = vmatpush1.xpose.msra.mxu0 0.0
      %1136 = vmatprep.subr.mxu0 0.0
      %1137 = vmatpush1.xpose.msra.mxu0 0.0
      %1138 = vmatprep.subr.mxu0 0.0
      %1139 = vmatpush1.xpose.msra.mxu0 0.0
      %1140 = vmatprep.subr.mxu0 0.0
      %1141 = vmatpush1.xpose.msra.mxu0 0.0
      %1142 = vmatprep.subr.mxu0 0.0
      %1143 = vmatpush1.xpose.msra.mxu0 0.0
      %1144 = vmatprep.mubr.f32.mxu0 0.0
      %1145 = vmatmul.mubr.f32.gmra.mrb[0].mxu0 %v1076
      %v1146 = vpop.f32.mrb[0].mxu0
      %v1147 = vadd.f32 0.0, %v1146
      %v1148 = vpop.f32.mrb[0].mxu0
      %1149 = vdwg.mxu0
      %v1150 = vmul.f32 %v1147, 0.35355338
      %v1151 = vsel %vm500, -1e+09, %v1150
      %v1152 = vsel %vm418, %v1151, -inf
      %1153 = vmax.xlane.f32.xlu0 %v1152
      %v1154 = vpop.xlane.xlu0 %1153
      %v1155 = vsub.f32 %v1151, %v1154
      %v1156 = vmul.f32 %v1155, 1.442695
      %v1157 = vpow.pop %v1156
      %v1158 = vsel %vm418, %v1157, 0.0
      %1159 = vadd.xlane.f32.xlu0 %v1158
      %v1160 = vpop.xlane.xlu0 %1159
      %v1161 = vrcp.pop %v1160
      %v1162 = vmul.f32 %v1157, %v1161
      %1163 = vrot.lane.b32.xlu0 %v409, 40
      %v1164 = vpop.permute.xlu0 %1163
      %v1167 = vsel %vm418, %v1162, 0
      %1169 = vmatprep.subr.mxu0 0.0
      %1170 = vmatpush1.msra.mxu0 %v1164
      %1171 = vmatprep.subr.mxu0 0.0
      %1172 = vmatpush1.msra.mxu0 0.0
      %1173 = vmatprep.subr.mxu0 0.0
      %1174 = vmatpush1.msra.mxu0 0.0
      %1175 = vmatprep.subr.mxu0 0.0
      %1176 = vmatpush1.msra.mxu0 0.0
      %1177 = vmatprep.subr.mxu0 0.0
      %1178 = vmatpush1.msra.mxu0 0.0
      %1179 = vmatprep.subr.mxu0 0.0
      %1180 = vmatpush1.msra.mxu0 0.0
      %1181 = vmatprep.subr.mxu0 0.0
      %1182 = vmatpush1.msra.mxu0 0.0
      %1183 = vmatprep.subr.mxu0 0.0
      %1184 = vmatpush1.msra.mxu0 0.0
      %1185 = vmatprep.subr.mxu0 0.0
      %1186 = vmatpush1.msra.mxu0 0.0
      %1187 = vmatprep.subr.mxu0 0.0
      %1188 = vmatpush1.msra.mxu0 0.0
      %1189 = vmatprep.subr.mxu0 0.0
      %1190 = vmatpush1.msra.mxu0 0.0
      %1191 = vmatprep.subr.mxu0 0.0
      %1192 = vmatpush1.msra.mxu0 0.0
      %1193 = vmatprep.subr.mxu0 0.0
      %1194 = vmatpush1.msra.mxu0 0.0
      %1195 = vmatprep.subr.mxu0 0.0
      %1196 = vmatpush1.msra.mxu0 0.0
      %1197 = vmatprep.subr.mxu0 0.0
      %1198 = vmatpush1.msra.mxu0 0.0
      %1199 = vmatprep.subr.mxu0 0.0
      %1200 = vmatpush1.msra.mxu0 0.0
      %1201 = vmatprep.subr.mxu0 0.0
      %1202 = vmatpush1.msra.mxu0 0.0
      %1203 = vmatprep.subr.mxu0 0.0
      %1204 = vmatpush1.msra.mxu0 0.0
      %1205 = vmatprep.subr.mxu0 0.0
      %1206 = vmatpush1.msra.mxu0 0.0
      %1207 = vmatprep.subr.mxu0 0.0
      %1208 = vmatpush1.msra.mxu0 0.0
      %1209 = vmatprep.subr.mxu0 0.0
      %1210 = vmatpush1.msra.mxu0 0.0
      %1211 = vmatprep.subr.mxu0 0.0
      %1212 = vmatpush1.msra.mxu0 0.0
      %1213 = vmatprep.subr.mxu0 0.0
      %1214 = vmatpush1.msra.mxu0 0.0
      %1215 = vmatprep.subr.mxu0 0.0
      %1216 = vmatpush1.msra.mxu0 0.0
      %1217 = vmatprep.subr.mxu0 0.0
      %1218 = vmatpush1.msra.mxu0 0.0
      %1219 = vmatprep.subr.mxu0 0.0
      %1220 = vmatpush1.msra.mxu0 0.0
      %1221 = vmatprep.subr.mxu0 0.0
      %1222 = vmatpush1.msra.mxu0 0.0
      %1223 = vmatprep.subr.mxu0 0.0
      %1224 = vmatpush1.msra.mxu0 0.0
      %1225 = vmatprep.subr.mxu0 0.0
      %1226 = vmatpush1.msra.mxu0 0.0
      %1227 = vmatprep.subr.mxu0 0.0
      %1228 = vmatpush1.msra.mxu0 0.0
      %1229 = vmatprep.subr.mxu0 0.0
      %1230 = vmatpush1.msra.mxu0 0.0
      %1231 = vmatprep.subr.mxu0 0.0
      %1232 = vmatpush1.msra.mxu0 0.0
      %1233 = vmatprep.mubr.f32.mxu0 0.0
      %1234 = vmatmul.mubr.f32.gmra.mrb[0].mxu0 %v1167
      %v1235 = vpop.f32.mrb[0].mxu0
      %v1236 = vadd.f32 0.0, %v1235
      %v1237 = vpop.f32.mrb[0].mxu0
      %1238 = vdwg.mxu0
      %v1239 = vpack.c.bf16 %v1236, %v1236
      %v1240 = vld [vmem:[%s6 + $0x18] sm:$0xff]
      %v1241 = vpack.c.bf16 %v1240, %v1240
      %v1243 = vsel %vm418, %v1239, 0
      %v1246 = vsel %vm765, %v1241, 0
      %1248 = vmatprep.subr.bf16.mxu0 0
      %1249 = vmatpush1.bf16.msra.mxu0 %v1246
      %1250 = vmatprep.subr.bf16.mxu0 0
      %1251 = vmatpush1.bf16.msra.mxu0 0
      %1252 = vmatprep.subr.bf16.mxu0 0
      %1253 = vmatpush1.bf16.msra.mxu0 0
      %1254 = vmatprep.subr.bf16.mxu0 0
      %1255 = vmatpush1.bf16.msra.mxu0 0
      %1256 = vmatprep.subr.bf16.mxu0 0
      %1257 = vmatpush1.bf16.msra.mxu0 0
      %1258 = vmatprep.subr.bf16.mxu0 0
      %1259 = vmatpush1.bf16.msra.mxu0 0
      %1260 = vmatprep.subr.bf16.mxu0 0
      %1261 = vmatpush1.bf16.msra.mxu0 0
      %1262 = vmatprep.subr.bf16.mxu0 0
      %1263 = vmatpush1.bf16.msra.mxu0 0
      %1264 = vmatprep.subr.bf16.mxu0 0
      %1265 = vmatpush1.bf16.msra.mxu0 0
      %1266 = vmatprep.subr.bf16.mxu0 0
      %1267 = vmatpush1.bf16.msra.mxu0 0
      %1268 = vmatprep.subr.bf16.mxu0 0
      %1269 = vmatpush1.bf16.msra.mxu0 0
      %1270 = vmatprep.subr.bf16.mxu0 0
      %1271 = vmatpush1.bf16.msra.mxu0 0
      %1272 = vmatprep.subr.bf16.mxu0 0
      %1273 = vmatpush1.bf16.msra.mxu0 0
      %1274 = vmatprep.subr.bf16.mxu0 0
      %1275 = vmatpush1.bf16.msra.mxu0 0
      %1276 = vmatprep.subr.bf16.mxu0 0
      %1277 = vmatpush1.bf16.msra.mxu0 0
      %1278 = vmatprep.subr.bf16.mxu0 0
      %1279 = vmatpush1.bf16.msra.mxu0 0
      %1280 = vmatprep.mubr.bf16.mxu0 0
      %1281 = vmatmul.mubr.bf16.gmra.mrb[0].mxu0 %v1243
      %v1282 = vpop.f32.mrb[0].mxu0
      %v1283 = vadd.f32 0.0, %v1282
      %v1284 = vpop.f32.mrb[0].mxu0
      %v1285 = vpop.f32.mrb[0].mxu0
      %v1286 = vpop.f32.mrb[0].mxu0
      %1287 = vdwg.mxu0
      %v1288 = vadd.f32 %v1071, %v1283
      %v1290 = vlaneseq
      %v1291 = vshrl.u32 %v1290, 7
      %v1292 = vsub.s32 0, %v1291
      %v1293 = vrot.slane %v414, %v1292
      %v1295 = vadd.f32 %v1288, %v1293
      %v1296 = vadd.f32 %v316, %v1295
      %1297 = vst.msk [vmem:[%s314] sm:$0xff] %vm320, %v1296
      %p1298 = scmp.lt.s32.totalorder %s19, 1
      %s1299 = scalar_select %p1298, %s19, 1
      %s1300 = smul.addr %s1299, 8
      %s1301 = scalar_lea.vmem %s8, %s1300
      // Predicated region
      $region53: #{encoder_decoder_forward.12} parent=51 // pred_check
        %p1302 = pneg %p215
      $region54: #{encoder_decoder_forward.12} parent=51 // pred_check_branch
        %1304 = sbr.rel (%p1302) target = $region56
      $region55: #{encoder_decoder_forward.12} parent=51 // pred_region
        _
      $region56: #{encoder_decoder_forward.12} parent=51 // pred_fallthru
        _
    $region52: #{encoder_decoder_forward.12} parent=5 // pred_fallthru
      _
    %p1305 = scmp.le.s32.totalorder 2, %s14
    // Predicated region
    $region57: #{encoder_decoder_forward.12} parent=5 // pred_check
      %p1306 = pneg %p1305
    $region58: #{encoder_decoder_forward.12} parent=5 // pred_check_branch
      %1308 = sbr.rel (%p1306) target = $region60
    $region59: #{encoder_decoder_forward.12} parent=5 // pred_region
      %s1309 = ssub.s32 %s14, 2
      // Predicated region
      $region61: #{encoder_decoder_forward.12} parent=59 // pred_check
        %p1310 = pneg %p221
      $region62: #{encoder_decoder_forward.12} parent=59 // pred_check_branch
        %1312 = sbr.rel (%p1310) target = $region64
      $region63: #{encoder_decoder_forward.12} parent=59 // pred_region
        %p1313 = scmp.lt.s32.totalorder %s20, 1
        %s1314 = scalar_select %p1313, %s20, 1
        %s1315 = smul.addr %s1314, 8
        %s1316 = scalar_lea.vmem %s8, %s1315
      $region64: #{encoder_decoder_forward.12} parent=59 // pred_fallthru
        _
    $region60: #{encoder_decoder_forward.12} parent=5 // pred_fallthru
      _
  $region6: #{encoder_decoder_forward.12} parent=0 // loop_footer
    %s18 = sadd.s32 1, %s14
  $region7: #{encoder_decoder_forward.12} parent=0 // loop_footer_branch
    %13 = sbr.rel target = $region3
  $region8: #{encoder_decoder_forward.12} parent=0 // loop_exit
    _

// kernel: encoder_decoder_forward.17
$region0: #{encoder_decoder_forward.17}
  #allocation0 [shape = 'u32[]', space=smem, size = 0x4, offset = 0x4, fixed_abs, tag = 'smem constant byte address 0x4 - core index']
  #allocation1 [shape = 'u32[144,128]{1,0:T(1,128)}', space=vmem, size = 0x12000, scoped, tag = 'internal scratch']
  %s0 = inlined_call_operand.vmem [shape: f32[2,8,32], index: 0, kind: input, shape index: {}]
  %s1 = inlined_call_operand.vmem [shape: f32[1,8,8], index: 1, kind: input, shape index: {}]
  %s2 = inlined_call_operand.vmem [shape: f32[1,32], index: 2, kind: input, shape index: {}]
  %s3 = inlined_call_operand.vmem [shape: f32[1,32], index: 3, kind: input, shape index: {}]
  %s4 = inlined_call_operand.vmem [shape: f32[32,96], index: 4, kind: input, shape index: {}]
  %s5 = inlined_call_operand.vmem [shape: f32[1,96], index: 5, kind: input, shape index: {}]
  %s6 = inlined_call_operand.vmem [shape: f32[32,32], index: 6, kind: input, shape index: {}]
  %s7 = inlined_call_operand.vmem [shape: f32[1,32], index: 7, kind: input, shape index: {}]
  %s8 = inlined_call_operand.vmem [shape: f32[2,8,32], index: 8, kind: output, shape index: {}]
  %s9 = sld [smem:[#allocation0]]
  $region65: #{encoder_decoder_forward.17} parent=0
    _
  %s11 = ssub.s32 1, %s9
  %s12 = scalar_select 0, %s11, %s9
  loop: start=0, step=1, limit=4
  $region2: #{encoder_decoder_forward.17} parent=0 // loop_pre_header
    _
  $region3: #{encoder_decoder_forward.17} parent=0 // loop_header
    %s14 = sphi 0, %s18
    %p15 = scmp.ge.s32.totalorder %s14, 4
    %s24 = sphi 0, %s26
    %s27 = sphi 0, %s24
    %s28 = sphi 0, %s27
    %s44 = sphi 0, %s28
    %s48 = sphi 0, %s48
    %s50 = sphi 0, %s48
    %s51 = sphi 0, %s50
    %s65 = sphi 0, %s51
    %s69 = sphi 0, %s69
    %s71 = sphi 0, %s69
    %s72 = sphi 0, %s71
    %s86 = sphi 0, %s72
    %s90 = sphi 0, %s90
    %s92 = sphi 0, %s90
    %s93 = sphi 0, %s92
    %s107 = sphi 0, %s93
    %s111 = sphi 0, %s111
    %s113 = sphi 0, %s111
    %s114 = sphi 0, %s113
    %s128 = sphi 0, %s114
    %s132 = sphi 0, %s132
    %s134 = sphi 0, %s132
    %s135 = sphi 0, %s134
    %s149 = sphi 0, %s135
    %s153 = sphi 0, %s153
    %s155 = sphi 0, %s153
    %s156 = sphi 0, %s155
    %s170 = sphi 0, %s156
    %s174 = sphi 0, %s174
    %s176 = sphi 0, %s174
    %s177 = sphi 0, %s176
    %s191 = sphi 0, %s177
    %s197 = sphi 0, %s199
    %s200 = sphi 0, %s197
    %s201 = sphi 0, %s200
    %s217 = sphi 0, %s201
  $region4: #{encoder_decoder_forward.17} parent=0 // loop_header_branch
    %17 = sbr.rel (%p15) target = $region8
  $region5: #{encoder_decoder_forward.17} parent=0 // loop_body
    %s19 = ssub.s32 %s14, 1
    %s20 = ssub.s32 %s14, 2
    %s21 = sadd.s32 %s14, 1
    %s22 = ssub.s32 %s14, %s21
    %p23 = scmp.eq.s32.totalorder %s22, 0
    %s25 = sadd.s32 %s24, 1
    %s26 = scalar_select %p23, %s24, %s25
    %p29 = pneg %p23
    %p30 = scmp.eq.s32.totalorder %s14, 1
    %p31 = por %p29, %p30
    %p32 = scmp.ne.s32.totalorder %s24, %s27
    %p33 = scmp.eq.s32.totalorder %s14, 0
    %p34 = por %p32, %p33
    %p35 = scmp.ne.s32.totalorder %s24, %s27
    %p36 = scmp.eq.s32.totalorder %s19, 1
    %p37 = por %p35, %p36
    %p38 = scmp.ne.s32.totalorder %s27, %s28
    %p39 = scmp.eq.s32.totalorder %s19, 0
    %p40 = por %p38, %p39
    %p41 = scmp.ne.s32.totalorder %s27, %s28
    %p42 = scmp.eq.s32.totalorder %s20, 1
    %p43 = por %p41, %p42
    %p45 = scmp.ne.s32.totalorder %s28, %s44
    %p46 = scmp.eq.s32.totalorder %s20, 0
    %p47 = por %p45, %p46
    %s49 = sadd.s32 %s48, 1
    %p52 = scmp.eq.s32.totalorder %s14, 1
    %p53 = scmp.ne.s32.totalorder %s48, %s50
    %p54 = scmp.eq.s32.totalorder %s14, 0
    %p55 = por %p53, %p54
    %p56 = scmp.ne.s32.totalorder %s48, %s50
    %p57 = scmp.eq.s32.totalorder %s19, 1
    %p58 = por %p56, %p57
    %p59 = scmp.ne.s32.totalorder %s50, %s51
    %p60 = scmp.eq.s32.totalorder %s19, 0
    %p61 = por %p59, %p60
    %p62 = scmp.ne.s32.totalorder %s50, %s51
    %p63 = scmp.eq.s32.totalorder %s20, 1
    %p64 = por %p62, %p63
    %p66 = scmp.ne.s32.totalorder %s51, %s65
    %p67 = scmp.eq.s32.totalorder %s20, 0
    %p68 = por %p66, %p67
    %s70 = sadd.s32 %s69, 1
    %p73 = scmp.eq.s32.totalorder %s14, 1
    %p74 = scmp.ne.s32.totalorder %s69, %s71
    %p75 = scmp.eq.s32.totalorder %s14, 0
    %p76 = por %p74, %p75
    %p77 = scmp.ne.s32.totalorder %s69, %s71
    %p78 = scmp.eq.s32.totalorder %s19, 1
    %p79 = por %p77, %p78
    %p80 = scmp.ne.s32.totalorder %s71, %s72
    %p81 = scmp.eq.s32.totalorder %s19, 0
    %p82 = por %p80, %p81
    %p83 = scmp.ne.s32.totalorder %s71, %s72
    %p84 = scmp.eq.s32.totalorder %s20, 1
    %p85 = por %p83, %p84
    %p87 = scmp.ne.s32.totalorder %s72, %s86
    %p88 = scmp.eq.s32.totalorder %s20, 0
    %p89 = por %p87, %p88
    %s91 = sadd.s32 %s90, 1
    %p94 = scmp.eq.s32.totalorder %s14, 1
    %p95 = scmp.ne.s32.totalorder %s90, %s92
    %p96 = scmp.eq.s32.totalorder %s14, 0
    %p97 = por %p95, %p96
    %p98 = scmp.ne.s32.totalorder %s90, %s92
    %p99 = scmp.eq.s32.totalorder %s19, 1
    %p100 = por %p98, %p99
    %p101 = scmp.ne.s32.totalorder %s92, %s93
    %p102 = scmp.eq.s32.totalorder %s19, 0
    %p103 = por %p101, %p102
    %p104 = scmp.ne.s32.totalorder %s92, %s93
    %p105 = scmp.eq.s32.totalorder %s20, 1
    %p106 = por %p104, %p105
    %p108 = scmp.ne.s32.totalorder %s93, %s107
    %p109 = scmp.eq.s32.totalorder %s20, 0
    %p110 = por %p108, %p109
    %s112 = sadd.s32 %s111, 1
    %p115 = scmp.eq.s32.totalorder %s14, 1
    %p116 = scmp.ne.s32.totalorder %s111, %s113
    %p117 = scmp.eq.s32.totalorder %s14, 0
    %p118 = por %p116, %p117
    %p119 = scmp.ne.s32.totalorder %s111, %s113
    %p120 = scmp.eq.s32.totalorder %s19, 1
    %p121 = por %p119, %p120
    %p122 = scmp.ne.s32.totalorder %s113, %s114
    %p123 = scmp.eq.s32.totalorder %s19, 0
    %p124 = por %p122, %p123
    %p125 = scmp.ne.s32.totalorder %s113, %s114
    %p126 = scmp.eq.s32.totalorder %s20, 1
    %p127 = por %p125, %p126
    %p129 = scmp.ne.s32.totalorder %s114, %s128
    %p130 = scmp.eq.s32.totalorder %s20, 0
    %p131 = por %p129, %p130
    %s133 = sadd.s32 %s132, 1
    %p136 = scmp.eq.s32.totalorder %s14, 1
    %p137 = scmp.ne.s32.totalorder %s132, %s134
    %p138 = scmp.eq.s32.totalorder %s14, 0
    %p139 = por %p137, %p138
    %p140 = scmp.ne.s32.totalorder %s132, %s134
    %p141 = scmp.eq.s32.totalorder %s19, 1
    %p142 = por %p140, %p141
    %p143 = scmp.ne.s32.totalorder %s134, %s135
    %p144 = scmp.eq.s32.totalorder %s19, 0
    %p145 = por %p143, %p144
    %p146 = scmp.ne.s32.totalorder %s134, %s135
    %p147 = scmp.eq.s32.totalorder %s20, 1
    %p148 = por %p146, %p147
    %p150 = scmp.ne.s32.totalorder %s135, %s149
    %p151 = scmp.eq.s32.totalorder %s20, 0
    %p152 = por %p150, %p151
    %s154 = sadd.s32 %s153, 1
    %p157 = scmp.eq.s32.totalorder %s14, 1
    %p158 = scmp.ne.s32.totalorder %s153, %s155
    %p159 = scmp.eq.s32.totalorder %s14, 0
    %p160 = por %p158, %p159
    %p161 = scmp.ne.s32.totalorder %s153, %s155
    %p162 = scmp.eq.s32.totalorder %s19, 1
    %p163 = por %p161, %p162
    %p164 = scmp.ne.s32.totalorder %s155, %s156
    %p165 = scmp.eq.s32.totalorder %s19, 0
    %p166 = por %p164, %p165
    %p167 = scmp.ne.s32.totalorder %s155, %s156
    %p168 = scmp.eq.s32.totalorder %s20, 1
    %p169 = por %p167, %p168
    %p171 = scmp.ne.s32.totalorder %s156, %s170
    %p172 = scmp.eq.s32.totalorder %s20, 0
    %p173 = por %p171, %p172
    %s175 = sadd.s32 %s174, 1
    %p178 = scmp.eq.s32.totalorder %s14, 1
    %p179 = scmp.ne.s32.totalorder %s174, %s176
    %p180 = scmp.eq.s32.totalorder %s14, 0
    %p181 = por %p179, %p180
    %p182 = scmp.ne.s32.totalorder %s174, %s176
    %p183 = scmp.eq.s32.totalorder %s19, 1
    %p184 = por %p182, %p183
    %p185 = scmp.ne.s32.totalorder %s176, %s177
    %p186 = scmp.eq.s32.totalorder %s19, 0
    %p187 = por %p185, %p186
    %p188 = scmp.ne.s32.totalorder %s176, %s177
    %p189 = scmp.eq.s32.totalorder %s20, 1
    %p190 = por %p188, %p189
    %p192 = scmp.ne.s32.totalorder %s177, %s191
    %p193 = scmp.eq.s32.totalorder %s20, 0
    %p194 = por %p192, %p193
    %s195 = ssub.s32 %s14, %s21
    %p196 = scmp.eq.s32.totalorder %s195, 0
    %s198 = sadd.s32 %s197, 1
    %s199 = scalar_select %p196, %s197, %s198
    %p202 = pneg %p196
    %p203 = scmp.eq.s32.totalorder %s14, 1
    %p204 = por %p202, %p203
    %p205 = scmp.ne.s32.totalorder %s197, %s200
    %p206 = scmp.eq.s32.totalorder %s14, 0
    %p207 = por %p205, %p206
    %p208 = scmp.ne.s32.totalorder %s197, %s200
    %p209 = scmp.eq.s32.totalorder %s19, 1
    %p210 = por %p208, %p209
    %p211 = scmp.ne.s32.totalorder %s200, %s201
    %p212 = scmp.eq.s32.totalorder %s19, 0
    %p213 = por %p211, %p212
    %p214 = scmp.ne.s32.totalorder %s200, %s201
    %p215 = scmp.eq.s32.totalorder %s20, 1
    %p216 = por %p214, %p215
    %p218 = scmp.ne.s32.totalorder %s201, %s217
    %p219 = scmp.eq.s32.totalorder %s20, 0
    %p220 = por %p218, %p219
    %p221 = scmp.le.s32.totalorder 1, %s14
    %p222 = scmp.lt.s32.totalorder %s14, 3
    %p223 = pnand %p221, %p222
    %p224 = pneg %p223
    // Predicated region
    $region9: #{encoder_decoder_forward.17} parent=5 // pred_check
      _
    $region10: #{encoder_decoder_forward.17} parent=5 // pred_check_branch
      %226 = sbr.rel (%p223) target = $region12
    $region11: #{encoder_decoder_forward.17} parent=5 // pred_region
      %s227 = ssub.s32 %s14, 1
      // Predicated region
      $region13: #{encoder_decoder_forward.17} parent=11 // pred_check
        %p228 = pneg %p61
      $region14: #{encoder_decoder_forward.17} parent=11 // pred_check_branch
        %230 = sbr.rel (%p228) target = $region16
      $region15: #{encoder_decoder_forward.17} parent=11 // pred_region
        _
      $region16: #{encoder_decoder_forward.17} parent=11 // pred_fallthru
        _
      // Predicated region
      $region17: #{encoder_decoder_forward.17} parent=11 // pred_check
        %p231 = pneg %p82
      $region18: #{encoder_decoder_forward.17} parent=11 // pred_check_branch
        %233 = sbr.rel (%p231) target = $region20
      $region19: #{encoder_decoder_forward.17} parent=11 // pred_region
        _
      $region20: #{encoder_decoder_forward.17} parent=11 // pred_fallthru
        _
      // Predicated region
      $region21: #{encoder_decoder_forward.17} parent=11 // pred_check
        %p234 = pneg %p103
      $region22: #{encoder_decoder_forward.17} parent=11 // pred_check_branch
        %236 = sbr.rel (%p234) target = $region24
      $region23: #{encoder_decoder_forward.17} parent=11 // pred_region
        _
      $region24: #{encoder_decoder_forward.17} parent=11 // pred_fallthru
        _
      // Predicated region
      $region25: #{encoder_decoder_forward.17} parent=11 // pred_check
        %p237 = pneg %p124
      $region26: #{encoder_decoder_forward.17} parent=11 // pred_check_branch
        %239 = sbr.rel (%p237) target = $region28
      $region27: #{encoder_decoder_forward.17} parent=11 // pred_region
        _
      $region28: #{encoder_decoder_forward.17} parent=11 // pred_fallthru
        _
      // Predicated region
      $region29: #{encoder_decoder_forward.17} parent=11 // pred_check
        %p240 = pneg %p145
      $region30: #{encoder_decoder_forward.17} parent=11 // pred_check_branch
        %242 = sbr.rel (%p240) target = $region32
      $region31: #{encoder_decoder_forward.17} parent=11 // pred_region
        _
      $region32: #{encoder_decoder_forward.17} parent=11 // pred_fallthru
        _
      // Predicated region
      $region33: #{encoder_decoder_forward.17} parent=11 // pred_check
        %p243 = pneg %p166
      $region34: #{encoder_decoder_forward.17} parent=11 // pred_check_branch
        %245 = sbr.rel (%p243) target = $region36
      $region35: #{encoder_decoder_forward.17} parent=11 // pred_region
        _
      $region36: #{encoder_decoder_forward.17} parent=11 // pred_fallthru
        _
      // Predicated region
      $region37: #{encoder_decoder_forward.17} parent=11 // pred_check
        %p246 = pneg %p187
      $region38: #{encoder_decoder_forward.17} parent=11 // pred_check_branch
        %248 = sbr.rel (%p246) target = $region40
      $region39: #{encoder_decoder_forward.17} parent=11 // pred_region
        _
      $region40: #{encoder_decoder_forward.17} parent=11 // pred_fallthru
        _
    $region12: #{encoder_decoder_forward.17} parent=5 // pred_fallthru
      _
    %p249 = scmp.lt.s32.totalorder %s14, 2
    // Predicated region
    $region41: #{encoder_decoder_forward.17} parent=5 // pred_check
      %p250 = pneg %p249
    $region42: #{encoder_decoder_forward.17} parent=5 // pred_check_branch
      %252 = sbr.rel (%p250) target = $region44
    $region43: #{encoder_decoder_forward.17} parent=5 // pred_region
      // Predicated region
      $region45: #{encoder_decoder_forward.17} parent=43 // pred_check
        %p253 = pneg %p34
      $region46: #{encoder_decoder_forward.17} parent=43 // pred_check_branch
        %255 = sbr.rel (%p253) target = $region48
      $region47: #{encoder_decoder_forward.17} parent=43 // pred_region
        %p256 = scmp.lt.s32.totalorder %s14, 1
        %s257 = scalar_select %p256, %s14, 1
        %s258 = smul.addr %s257, 8
        %s259 = scalar_lea.vmem %s0, %s258
      $region48: #{encoder_decoder_forward.17} parent=43 // pred_fallthru
        _
    $region44: #{encoder_decoder_forward.17} parent=5 // pred_fallthru
      _
    %p260 = scmp.le.s32.totalorder 1, %s14
    %p261 = scmp.lt.s32.totalorder %s14, 3
    %p262 = pnand %p260, %p261
    %p263 = pneg %p262
    // Predicated region
    $region49: #{encoder_decoder_forward.17} parent=5 // pred_check
      _
    $region50: #{encoder_decoder_forward.17} parent=5 // pred_check_branch
      %265 = sbr.rel (%p262) target = $region52
    $region51: #{encoder_decoder_forward.17} parent=5 // pred_region
      %s266 = ssub.s32 %s14, 1
      %p267 = scmp.lt.s32.totalorder %s19, 1
      %s268 = scalar_select %p267, %s19, 1
      %s269 = smul.addr %s268, 8
      %s270 = scalar_lea.vmem %s0, %s269
      %p271 = pneg %p40
      %p272 = pneg %p37
      %p273 = pneg %p61
      %p274 = pneg %p58
      %p275 = pneg %p82
      %p276 = pneg %p79
      %p277 = pneg %p103
      %p278 = pneg %p100
      %p279 = pneg %p124
      %p280 = pneg %p121
      %p281 = pneg %p145
      %p282 = pneg %p142
      %p283 = pneg %p166
      %p284 = pneg %p163
      %p285 = pneg %p187
      %p286 = pneg %p184
      %p287 = pneg %p213
      %p288 = pneg %p210
      %p289 = scmp.lt.s32.totalorder %s19, 1
      %s290 = scalar_select %p289, %s19, 1
      %s291 = smul.addr %s290, 8
      %s292 = scalar_lea.vmem %s8, %s291
      %p293 = scmp.lt.s32.totalorder %s19, 1
      %s294 = scalar_select %p293, %s19, 1
      %s295 = smul.addr %s294, 8
      %s296 = scalar_lea.vmem %s0, %s295
      %p297 = scmp.lt.s32.totalorder %s19, 1
      %s298 = scalar_select %p297, %s19, 1
      %s299 = smul.addr %s298, 8
      %s300 = scalar_lea.vmem %s8, %s299
      %v302 = vld [vmem:[%s296] sm:$0xff]
      %v303 = vld [vmem:[%s1] sm:$0xff]
      %v304 = vld [vmem:[%s2] sm:$0x1]
      %v305 = vld [vmem:[%s3] sm:$0x1]
      %vm306 = vcmask 261120
      %v307 = vsel %vm306, %v302, 0.0
      %308 = vadd.xlane.f32.xlu0 %v307
      %v309 = vpop.xlane.xlu0 %308
      %v310 = vrcp.pop 32.0
      %v311 = vmul.f32 %v309, %v310
      %v312 = vsub.f32 %v302, %v311
      %v313 = vmul.f32 %v312, %v312
      %v314 = vsel %vm306, %v313, 0.0
      %315 = vadd.xlane.f32.xlu0 %v314
      %v316 = vpop.xlane.xlu0 %315
      %v317 = vrcp.pop 31.0
      %v318 = vmul.f32 %v316, %v317
      %v320 = vlaneseq
      %v321 = vshrl.u32 %v320, 7
      %v322 = vsub.s32 0, %v321
      %v323 = vrot.slane %v304, %v322
      %v325 = vmul.f32 %v323, %v312
      %v326 = vrsqrt.pop %v318
      %v327 = vmul.f32 %v318, %v326
      %vm328 = vcmp.eq.f32.partialorder %v318, inf
      %v329 = vsel %vm328, %v318, %v327
      %vm330 = vcmp.eq.f32.partialorder %v318, 0.0
      %v331 = vand.u32 %v318, 2147483648
      %v332 = vsel %vm330, %v331, %v329
      %v333 = vadd.f32 %v332, 1e-06
      %v334 = vrcp.pop %v333
      %v335 = vmul.f32 %v325, %v334
      %v337 = vlaneseq
      %v338 = vshrl.u32 %v337, 7
      %v339 = vsub.s32 0, %v338
      %v340 = vrot.slane %v305, %v339
      %v342 = vadd.f32 %v335, %v340
      %v343 = vpack.c.bf16 %v342, %v342
      %v344 = vld [vmem:[%s4] sm:$0xff]
      %v345 = vld [vmem:[%s4 + $0x8] sm:$0xff]
      %v346 = vld [vmem:[%s4 + $0x10] sm:$0xff]
      %v347 = vld [vmem:[%s4 + $0x18] sm:$0xff]
      %v348 = vpack.c.bf16 %v345, %v344
      %v349 = vpack.c.bf16 %v347, %v346
      %v350 = vld [vmem:[%s5] sm:$0x1]
      %v352 = vlaneseq
      %v353 = vshrl.u32 %v352, 7
      %v354 = vsub.s32 0, %v353
      %v355 = vrot.slane %v350, %v354
      %v358 = vsel %vm306, %v343, 0
      %360 = vmatprep.subr.bf16.mxu0 0
      %361 = vmatpush1.bf16.msra.mxu0 %v348
      %362 = vmatprep.subr.bf16.mxu0 0
      %363 = vmatpush1.bf16.msra.mxu0 %v349
      %364 = vmatprep.subr.bf16.mxu0 0
      %365 = vmatpush1.bf16.msra.mxu0 0
      %366 = vmatprep.subr.bf16.mxu0 0
      %367 = vmatpush1.bf16.msra.mxu0 0
      %368 = vmatprep.subr.bf16.mxu0 0
      %369 = vmatpush1.bf16.msra.mxu0 0
      %370 = vmatprep.subr.bf16.mxu0 0
      %371 = vmatpush1.bf16.msra.mxu0 0
      %372 = vmatprep.subr.bf16.mxu0 0
      %373 = vmatpush1.bf16.msra.mxu0 0
      %374 = vmatprep.subr.bf16.mxu0 0
      %375 = vmatpush1.bf16.msra.mxu0 0
      %376 = vmatprep.subr.bf16.mxu0 0
      %377 = vmatpush1.bf16.msra.mxu0 0
      %378 = vmatprep.subr.bf16.mxu0 0
      %379 = vmatpush1.bf16.msra.mxu0 0
      %380 = vmatprep.subr.bf16.mxu0 0
      %381 = vmatpush1.bf16.msra.mxu0 0
      %382 = vmatprep.subr.bf16.mxu0 0
      %383 = vmatpush1.bf16.msra.mxu0 0
      %384 = vmatprep.subr.bf16.mxu0 0
      %385 = vmatpush1.bf16.msra.mxu0 0
      %386 = vmatprep.subr.bf16.mxu0 0
      %387 = vmatpush1.bf16.msra.mxu0 0
      %388 = vmatprep.subr.bf16.mxu0 0
      %389 = vmatpush1.bf16.msra.mxu0 0
      %390 = vmatprep.subr.bf16.mxu0 0
      %391 = vmatpush1.bf16.msra.mxu0 0
      %392 = vmatprep.mubr.bf16.mxu0 0
      %393 = vmatmul.mubr.bf16.gmra.mrb[0].mxu0 %v358
      %v394 = vpop.f32.mrb[0].mxu0
      %v395 = vadd.f32 %v355, %v394
      %v396 = vpop.f32.mrb[0].mxu0
      %v397 = vpop.f32.mrb[0].mxu0
      %v398 = vpop.f32.mrb[0].mxu0
      %399 = vdwg.mxu0
      %v400 = vld [vmem:[%s7] sm:$0x1]
      %402 = vrot.lane.b32.xlu0 %v395, 96
      %v403 = vpop.permute.xlu0 %402
      %vm404 = vcmask 64512
      %v405 = vsel %vm404, %v395, 0
      %v407 = vsel %vm404, %v403, 0
      %409 = vmatprep.subr.mxu0 0.0
      %410 = vmatpush1.xpose.msra.mxu0 %v407
      %411 = vmatprep.subr.mxu0 0.0
      %412 = vmatpush1.xpose.msra.mxu0 0.0
      %413 = vmatprep.subr.mxu0 0.0
      %414 = vmatpush1.xpose.msra.mxu0 0.0
      %415 = vmatprep.subr.mxu0 0.0
      %416 = vmatpush1.xpose.msra.mxu0 0.0
      %417 = vmatprep.subr.mxu0 0.0
      %418 = vmatpush1.xpose.msra.mxu0 0.0
      %419 = vmatprep.subr.mxu0 0.0
      %420 = vmatpush1.xpose.msra.mxu0 0.0
      %421 = vmatprep.subr.mxu0 0.0
      %422 = vmatpush1.xpose.msra.mxu0 0.0
      %423 = vmatprep.subr.mxu0 0.0
      %424 = vmatpush1.xpose.msra.mxu0 0.0
      %425 = vmatprep.subr.mxu0 0.0
      %426 = vmatpush1.xpose.msra.mxu0 0.0
      %427 = vmatprep.subr.mxu0 0.0
      %428 = vmatpush1.xpose.msra.mxu0 0.0
      %429 = vmatprep.subr.mxu0 0.0
      %430 = vmatpush1.xpose.msra.mxu0 0.0
      %431 = vmatprep.subr.mxu0 0.0
      %432 = vmatpush1.xpose.msra.mxu0 0.0
      %433 = vmatprep.subr.mxu0 0.0
      %434 = vmatpush1.xpose.msra.mxu0 0.0
      %435 = vmatprep.subr.mxu0 0.0
      %436 = vmatpush1.xpose.msra.mxu0 0.0
      %437 = vmatprep.subr.mxu0 0.0
      %438 = vmatpush1.xpose.msra.mxu0 0.0
      %439 = vmatprep.subr.mxu0 0.0
      %440 = vmatpush1.xpose.msra.mxu0 0.0
      %441 = vmatprep.subr.mxu0 0.0
      %442 = vmatpush1.xpose.msra.mxu0 0.0
      %443 = vmatprep.subr.mxu0 0.0
      %444 = vmatpush1.xpose.msra.mxu0 0.0
      %445 = vmatprep.subr.mxu0 0.0
      %446 = vmatpush1.xpose.msra.mxu0 0.0
      %447 = vmatprep.subr.mxu0 0.0
      %448 = vmatpush1.xpose.msra.mxu0 0.0
      %449 = vmatprep.subr.mxu0 0.0
      %450 = vmatpush1.xpose.msra.mxu0 0.0
      %451 = vmatprep.subr.mxu0 0.0
      %452 = vmatpush1.xpose.msra.mxu0 0.0
      %453 = vmatprep.subr.mxu0 0.0
      %454 = vmatpush1.xpose.msra.mxu0 0.0
      %455 = vmatprep.subr.mxu0 0.0
      %456 = vmatpush1.xpose.msra.mxu0 0.0
      %457 = vmatprep.subr.mxu0 0.0
      %458 = vmatpush1.xpose.msra.mxu0 0.0
      %459 = vmatprep.subr.mxu0 0.0
      %460 = vmatpush1.xpose.msra.mxu0 0.0
      %461 = vmatprep.subr.mxu0 0.0
      %462 = vmatpush1.xpose.msra.mxu0 0.0
      %463 = vmatprep.subr.mxu0 0.0
      %464 = vmatpush1.xpose.msra.mxu0 0.0
      %465 = vmatprep.subr.mxu0 0.0
      %466 = vmatpush1.xpose.msra.mxu0 0.0
      %467 = vmatprep.subr.mxu0 0.0
      %468 = vmatpush1.xpose.msra.mxu0 0.0
      %469 = vmatprep.subr.mxu0 0.0
      %470 = vmatpush1.xpose.msra.mxu0 0.0
      %471 = vmatprep.subr.mxu0 0.0
      %472 = vmatpush1.xpose.msra.mxu0 0.0
      %473 = vmatprep.mubr.f32.mxu0 0.0
      %474 = vmatmul.mubr.f32.gmra.mrb[0].mxu0 %v405
      %v475 = vpop.f32.mrb[0].mxu0
      %v476 = vadd.f32 0.0, %v475
      %v477 = vpop.f32.mrb[0].mxu0
      %478 = vdwg.mxu0
      %v479 = vmul.f32 %v476, 0.35355338
      %vm480 = vcmp.eq.f32.partialorder %v303, 0.0
      %v481 = vsel %vm480, -1e+09, %v479
      %v482 = vsel %vm404, %v481, -inf
      %483 = vmax.xlane.f32.xlu0 %v482
      %v484 = vpop.xlane.xlu0 %483
      %v485 = vsub.f32 %v481, %v484
      %v486 = vmul.f32 %v485, 1.442695
      %v487 = vpow.pop %v486
      %v488 = vsel %vm404, %v487, 0.0
      %489 = vadd.xlane.f32.xlu0 %v488
      %v490 = vpop.xlane.xlu0 %489
      %v491 = vrcp.pop %v490
      %v492 = vmul.f32 %v487, %v491
      %493 = vrot.lane.b32.xlu0 %v395, 64
      %v494 = vpop.permute.xlu0 %493
      %v497 = vsel %vm404, %v492, 0
      %499 = vmatprep.subr.mxu0 0.0
      %500 = vmatpush1.msra.mxu0 %v494
      %501 = vmatprep.subr.mxu0 0.0
      %502 = vmatpush1.msra.mxu0 0.0
      %503 = vmatprep.subr.mxu0 0.0
      %504 = vmatpush1.msra.mxu0 0.0
      %505 = vmatprep.subr.mxu0 0.0
      %506 = vmatpush1.msra.mxu0 0.0
      %507 = vmatprep.subr.mxu0 0.0
      %508 = vmatpush1.msra.mxu0 0.0
      %509 = vmatprep.subr.mxu0 0.0
      %510 = vmatpush1.msra.mxu0 0.0
      %511 = vmatprep.subr.mxu0 0.0
      %512 = vmatpush1.msra.mxu0 0.0
      %513 = vmatprep.subr.mxu0 0.0
      %514 = vmatpush1.msra.mxu0 0.0
      %515 = vmatprep.subr.mxu0 0.0
      %516 = vmatpush1.msra.mxu0 0.0
      %517 = vmatprep.subr.mxu0 0.0
      %518 = vmatpush1.msra.mxu0 0.0
      %519 = vmatprep.subr.mxu0 0.0
      %520 = vmatpush1.msra.mxu0 0.0
      %521 = vmatprep.subr.mxu0 0.0
      %522 = vmatpush1.msra.mxu0 0.0
      %523 = vmatprep.subr.mxu0 0.0
      %524 = vmatpush1.msra.mxu0 0.0
      %525 = vmatprep.subr.mxu0 0.0
      %526 = vmatpush1.msra.mxu0 0.0
      %527 = vmatprep.subr.mxu0 0.0
      %528 = vmatpush1.msra.mxu0 0.0
      %529 = vmatprep.subr.mxu0 0.0
      %530 = vmatpush1.msra.mxu0 0.0
      %531 = vmatprep.subr.mxu0 0.0
      %532 = vmatpush1.msra.mxu0 0.0
      %533 = vmatprep.subr.mxu0 0.0
      %534 = vmatpush1.msra.mxu0 0.0
      %535 = vmatprep.subr.mxu0 0.0
      %536 = vmatpush1.msra.mxu0 0.0
      %537 = vmatprep.subr.mxu0 0.0
      %538 = vmatpush1.msra.mxu0 0.0
      %539 = vmatprep.subr.mxu0 0.0
      %540 = vmatpush1.msra.mxu0 0.0
      %541 = vmatprep.subr.mxu0 0.0
      %542 = vmatpush1.msra.mxu0 0.0
      %543 = vmatprep.subr.mxu0 0.0
      %544 = vmatpush1.msra.mxu0 0.0
      %545 = vmatprep.subr.mxu0 0.0
      %546 = vmatpush1.msra.mxu0 0.0
      %547 = vmatprep.subr.mxu0 0.0
      %548 = vmatpush1.msra.mxu0 0.0
      %549 = vmatprep.subr.mxu0 0.0
      %550 = vmatpush1.msra.mxu0 0.0
      %551 = vmatprep.subr.mxu0 0.0
      %552 = vmatpush1.msra.mxu0 0.0
      %553 = vmatprep.subr.mxu0 0.0
      %554 = vmatpush1.msra.mxu0 0.0
      %555 = vmatprep.subr.mxu0 0.0
      %556 = vmatpush1.msra.mxu0 0.0
      %557 = vmatprep.subr.mxu0 0.0
      %558 = vmatpush1.msra.mxu0 0.0
      %559 = vmatprep.subr.mxu0 0.0
      %560 = vmatpush1.msra.mxu0 0.0
      %561 = vmatprep.subr.mxu0 0.0
      %562 = vmatpush1.msra.mxu0 0.0
      %563 = vmatprep.mubr.f32.mxu0 0.0
      %564 = vmatmul.mubr.f32.gmra.mrb[0].mxu0 %v497
      %v565 = vpop.f32.mrb[0].mxu0
      %v566 = vadd.f32 0.0, %v565
      %v567 = vpop.f32.mrb[0].mxu0
      %568 = vdwg.mxu0
      %v569 = vpack.c.bf16 %v566, %v566
      %v570 = vld [vmem:[%s6] sm:$0xff]
      %v571 = vpack.c.bf16 %v570, %v570
      %572 = vrot.lane.b32.xlu0 %v395, 120
      %v573 = vpop.permute.xlu0 %572
      %574 = vrot.lane.b32.xlu0 %v395, 88
      %v575 = vpop.permute.xlu0 %574
      %v576 = vsel %vm404, %v573, 0
      %v578 = vsel %vm404, %v575, 0
      %580 = vmatprep.subr.mxu0 0.0
      %581 = vmatpush1.xpose.msra.mxu0 %v578
      %582 = vmatprep.subr.mxu0 0.0
      %583 = vmatpush1.xpose.msra.mxu0 0.0
      %584 = vmatprep.subr.mxu0 0.0
      %585 = vmatpush1.xpose.msra.mxu0 0.0
      %586 = vmatprep.subr.mxu0 0.0
      %587 = vmatpush1.xpose.msra.mxu0 0.0
      %588 = vmatprep.subr.mxu0 0.0
      %589 = vmatpush1.xpose.msra.mxu0 0.0
      %590 = vmatprep.subr.mxu0 0.0
      %591 = vmatpush1.xpose.msra.mxu0 0.0
      %592 = vmatprep.subr.mxu0 0.0
      %593 = vmatpush1.xpose.msra.mxu0 0.0
      %594 = vmatprep.subr.mxu0 0.0
      %595 = vmatpush1.xpose.msra.mxu0 0.0
      %596 = vmatprep.subr.mxu0 0.0
      %597 = vmatpush1.xpose.msra.mxu0 0.0
      %598 = vmatprep.subr.mxu0 0.0
      %599 = vmatpush1.xpose.msra.mxu0 0.0
      %600 = vmatprep.subr.mxu0 0.0
      %601 = vmatpush1.xpose.msra.mxu0 0.0
      %602 = vmatprep.subr.mxu0 0.0
      %603 = vmatpush1.xpose.msra.mxu0 0.0
      %604 = vmatprep.subr.mxu0 0.0
      %605 = vmatpush1.xpose.msra.mxu0 0.0
      %606 = vmatprep.subr.mxu0 0.0
      %607 = vmatpush1.xpose.msra.mxu0 0.0
      %608 = vmatprep.subr.mxu0 0.0
      %609 = vmatpush1.xpose.msra.mxu0 0.0
      %610 = vmatprep.subr.mxu0 0.0
      %611 = vmatpush1.xpose.msra.mxu0 0.0
      %612 = vmatprep.subr.mxu0 0.0
      %613 = vmatpush1.xpose.msra.mxu0 0.0
      %614 = vmatprep.subr.mxu0 0.0
      %615 = vmatpush1.xpose.msra.mxu0 0.0
      %616 = vmatprep.subr.mxu0 0.0
      %617 = vmatpush1.xpose.msra.mxu0 0.0
      %618 = vmatprep.subr.mxu0 0.0
      %619 = vmatpush1.xpose.msra.mxu0 0.0
      %620 = vmatprep.subr.mxu0 0.0
      %621 = vmatpush1.xpose.msra.mxu0 0.0
      %622 = vmatprep.subr.mxu0 0.0
      %623 = vmatpush1.xpose.msra.mxu0 0.0
      %624 = vmatprep.subr.mxu0 0.0
      %625 = vmatpush1.xpose.msra.mxu0 0.0
      %626 = vmatprep.subr.mxu0 0.0
      %627 = vmatpush1.xpose.msra.mxu0 0.0
      %628 = vmatprep.subr.mxu0 0.0
      %629 = vmatpush1.xpose.msra.mxu0 0.0
      %630 = vmatprep.subr.mxu0 0.0
      %631 = vmatpush1.xpose.msra.mxu0 0.0
      %632 = vmatprep.subr.mxu0 0.0
      %633 = vmatpush1.xpose.msra.mxu0 0.0
      %634 = vmatprep.subr.mxu0 0.0
      %635 = vmatpush1.xpose.msra.mxu0 0.0
      %636 = vmatprep.subr.mxu0 0.0
      %637 = vmatpush1.xpose.msra.mxu0 0.0
      %638 = vmatprep.subr.mxu0 0.0
      %639 = vmatpush1.xpose.msra.mxu0 0.0
      %640 = vmatprep.subr.mxu0 0.0
      %641 = vmatpush1.xpose.msra.mxu0 0.0
      %642 = vmatprep.subr.mxu0 0.0
      %643 = vmatpush1.xpose.msra.mxu0 0.0
      %644 = vmatprep.mubr.f32.mxu0 0.0
      %645 = vmatmul.mubr.f32.gmra.mrb[0].mxu0 %v576
      %v646 = vpop.f32.mrb[0].mxu0
      %v647 = vadd.f32 0.0, %v646
      %v648 = vpop.f32.mrb[0].mxu0
      %649 = vdwg.mxu0
      %v650 = vmul.f32 %v647, 0.35355338
      %v651 = vsel %vm480, -1e+09, %v650
      %v652 = vsel %vm404, %v651, -inf
      %653 = vmax.xlane.f32.xlu0 %v652
      %v654 = vpop.xlane.xlu0 %653
      %v655 = vsub.f32 %v651, %v654
      %v656 = vmul.f32 %v655, 1.442695
      %v657 = vpow.pop %v656
      %v658 = vsel %vm404, %v657, 0.0
      %659 = vadd.xlane.f32.xlu0 %v658
      %v660 = vpop.xlane.xlu0 %659
      %v661 = vrcp.pop %v660
      %v662 = vmul.f32 %v657, %v661
      %663 = vrot.lane.b32.xlu0 %v395, 56
      %v664 = vpop.permute.xlu0 %663
      %v667 = vsel %vm404, %v662, 0
      %669 = vmatprep.subr.mxu0 0.0
      %670 = vmatpush1.msra.mxu0 %v664
      %671 = vmatprep.subr.mxu0 0.0
      %672 = vmatpush1.msra.mxu0 0.0
      %673 = vmatprep.subr.mxu0 0.0
      %674 = vmatpush1.msra.mxu0 0.0
      %675 = vmatprep.subr.mxu0 0.0
      %676 = vmatpush1.msra.mxu0 0.0
      %677 = vmatprep.subr.mxu0 0.0
      %678 = vmatpush1.msra.mxu0 0.0
      %679 = vmatprep.subr.mxu0 0.0
      %680 = vmatpush1.msra.mxu0 0.0
      %681 = vmatprep.subr.mxu0 0.0
      %682 = vmatpush1.msra.mxu0 0.0
      %683 = vmatprep.subr.mxu0 0.0
      %684 = vmatpush1.msra.mxu0 0.0
      %685 = vmatprep.subr.mxu0 0.0
      %686 = vmatpush1.msra.mxu0 0.0
      %687 = vmatprep.subr.mxu0 0.0
      %688 = vmatpush1.msra.mxu0 0.0
      %689 = vmatprep.subr.mxu0 0.0
      %690 = vmatpush1.msra.mxu0 0.0
      %691 = vmatprep.subr.mxu0 0.0
      %692 = vmatpush1.msra.mxu0 0.0
      %693 = vmatprep.subr.mxu0 0.0
      %694 = vmatpush1.msra.mxu0 0.0
      %695 = vmatprep.subr.mxu0 0.0
      %696 = vmatpush1.msra.mxu0 0.0
      %697 = vmatprep.subr.mxu0 0.0
      %698 = vmatpush1.msra.mxu0 0.0
      %699 = vmatprep.subr.mxu0 0.0
      %700 = vmatpush1.msra.mxu0 0.0
      %701 = vmatprep.subr.mxu0 0.0
      %702 = vmatpush1.msra.mxu0 0.0
      %703 = vmatprep.subr.mxu0 0.0
      %704 = vmatpush1.msra.mxu0 0.0
      %705 = vmatprep.subr.mxu0 0.0
      %706 = vmatpush1.msra.mxu0 0.0
      %707 = vmatprep.subr.mxu0 0.0
      %708 = vmatpush1.msra.mxu0 0.0
      %709 = vmatprep.subr.mxu0 0.0
      %710 = vmatpush1.msra.mxu0 0.0
      %711 = vmatprep.subr.mxu0 0.0
      %712 = vmatpush1.msra.mxu0 0.0
      %713 = vmatprep.subr.mxu0 0.0
      %714 = vmatpush1.msra.mxu0 0.0
      %715 = vmatprep.subr.mxu0 0.0
      %716 = vmatpush1.msra.mxu0 0.0
      %717 = vmatprep.subr.mxu0 0.0
      %718 = vmatpush1.msra.mxu0 0.0
      %719 = vmatprep.subr.mxu0 0.0
      %720 = vmatpush1.msra.mxu0 0.0
      %721 = vmatprep.subr.mxu0 0.0
      %722 = vmatpush1.msra.mxu0 0.0
      %723 = vmatprep.subr.mxu0 0.0
      %724 = vmatpush1.msra.mxu0 0.0
      %725 = vmatprep.subr.mxu0 0.0
      %726 = vmatpush1.msra.mxu0 0.0
      %727 = vmatprep.subr.mxu0 0.0
      %728 = vmatpush1.msra.mxu0 0.0
      %729 = vmatprep.subr.mxu0 0.0
      %730 = vmatpush1.msra.mxu0 0.0
      %731 = vmatprep.subr.mxu0 0.0
      %732 = vmatpush1.msra.mxu0 0.0
      %733 = vmatprep.mubr.f32.mxu0 0.0
      %734 = vmatmul.mubr.f32.gmra.mrb[0].mxu0 %v667
      %v735 = vpop.f32.mrb[0].mxu0
      %v736 = vadd.f32 0.0, %v735
      %v737 = vpop.f32.mrb[0].mxu0
      %738 = vdwg.mxu0
      %v739 = vpack.c.bf16 %v736, %v736
      %v740 = vld [vmem:[%s6 + $0x8] sm:$0xff]
      %v741 = vpack.c.bf16 %v740, %v740
      %v743 = vsel %vm404, %v739, 0
      %vm745 = vcmask 1043456
      %v747 = vsel %vm745, %v741, 0
      %749 = vmatprep.subr.bf16.mxu0 0
      %750 = vmatpush1.bf16.msra.mxu0 %v747
      %751 = vmatprep.subr.bf16.mxu0 0
      %752 = vmatpush1.bf16.msra.mxu0 0
      %753 = vmatprep.subr.bf16.mxu0 0
      %754 = vmatpush1.bf16.msra.mxu0 0
      %755 = vmatprep.subr.bf16.mxu0 0
      %756 = vmatpush1.bf16.msra.mxu0 0
      %757 = vmatprep.subr.bf16.mxu0 0
      %758 = vmatpush1.bf16.msra.mxu0 0
      %759 = vmatprep.subr.bf16.mxu0 0
      %760 = vmatpush1.bf16.msra.mxu0 0
      %761 = vmatprep.subr.bf16.mxu0 0
      %762 = vmatpush1.bf16.msra.mxu0 0
      %763 = vmatprep.subr.bf16.mxu0 0
      %764 = vmatpush1.bf16.msra.mxu0 0
      %765 = vmatprep.subr.bf16.mxu0 0
      %766 = vmatpush1.bf16.msra.mxu0 0
      %767 = vmatprep.subr.bf16.mxu0 0
      %768 = vmatpush1.bf16.msra.mxu0 0
      %769 = vmatprep.subr.bf16.mxu0 0
      %770 = vmatpush1.bf16.msra.mxu0 0
      %771 = vmatprep.subr.bf16.mxu0 0
      %772 = vmatpush1.bf16.msra.mxu0 0
      %773 = vmatprep.subr.bf16.mxu0 0
      %774 = vmatpush1.bf16.msra.mxu0 0
      %775 = vmatprep.subr.bf16.mxu0 0
      %776 = vmatpush1.bf16.msra.mxu0 0
      %777 = vmatprep.subr.bf16.mxu0 0
      %778 = vmatpush1.bf16.msra.mxu0 0
      %779 = vmatprep.subr.bf16.mxu0 0
      %780 = vmatpush1.bf16.msra.mxu0 0
      %781 = vmatprep.mubr.bf16.mxu0 0
      %782 = vmatmul.mubr.bf16.gmra.mrb[0].mxu0 %v743
      %v783 = vpop.f32.mrb[0].mxu0
      %v784 = vadd.f32 0.0, %v783
      %v785 = vpop.f32.mrb[0].mxu0
      %v786 = vpop.f32.mrb[0].mxu0
      %v787 = vpop.f32.mrb[0].mxu0
      %788 = vdwg.mxu0
      %v790 = vsel %vm404, %v569, 0
      %v793 = vsel %vm745, %v571, 0
      %795 = vmatprep.subr.bf16.mxu0 0
      %796 = vmatpush1.bf16.msra.mxu0 %v793
      %797 = vmatprep.subr.bf16.mxu0 0
      %798 = vmatpush1.bf16.msra.mxu0 0
      %799 = vmatprep.subr.bf16.mxu0 0
      %800 = vmatpush1.bf16.msra.mxu0 0
      %801 = vmatprep.subr.bf16.mxu0 0
      %802 = vmatpush1.bf16.msra.mxu0 0
      %803 = vmatprep.subr.bf16.mxu0 0
      %804 = vmatpush1.bf16.msra.mxu0 0
      %805 = vmatprep.subr.bf16.mxu0 0
      %806 = vmatpush1.bf16.msra.mxu0 0
      %807 = vmatprep.subr.bf16.mxu0 0
      %808 = vmatpush1.bf16.msra.mxu0 0
      %809 = vmatprep.subr.bf16.mxu0 0
      %810 = vmatpush1.bf16.msra.mxu0 0
      %811 = vmatprep.subr.bf16.mxu0 0
      %812 = vmatpush1.bf16.msra.mxu0 0
      %813 = vmatprep.subr.bf16.mxu0 0
      %814 = vmatpush1.bf16.msra.mxu0 0
      %815 = vmatprep.subr.bf16.mxu0 0
      %816 = vmatpush1.bf16.msra.mxu0 0
      %817 = vmatprep.subr.bf16.mxu0 0
      %818 = vmatpush1.bf16.msra.mxu0 0
      %819 = vmatprep.subr.bf16.mxu0 0
      %820 = vmatpush1.bf16.msra.mxu0 0
      %821 = vmatprep.subr.bf16.mxu0 0
      %822 = vmatpush1.bf16.msra.mxu0 0
      %823 = vmatprep.subr.bf16.mxu0 0
      %824 = vmatpush1.bf16.msra.mxu0 0
      %825 = vmatprep.subr.bf16.mxu0 0
      %826 = vmatpush1.bf16.msra.mxu0 0
      %827 = vmatprep.mubr.bf16.mxu0 0
      %828 = vmatmul.mubr.bf16.gmra.mrb[0].mxu0 %v790
      %v829 = vpop.f32.mrb[0].mxu0
      %v830 = vadd.f32 %v784, %v829
      %v831 = vpop.f32.mrb[0].mxu0
      %v832 = vpop.f32.mrb[0].mxu0
      %v833 = vpop.f32.mrb[0].mxu0
      %834 = vdwg.mxu0
      %835 = vrot.lane.b32.xlu0 %v395, 112
      %v836 = vpop.permute.xlu0 %835
      %837 = vrot.lane.b32.xlu0 %v395, 80
      %v838 = vpop.permute.xlu0 %837
      %v839 = vsel %vm404, %v836, 0
      %v841 = vsel %vm404, %v838, 0
      %843 = vmatprep.subr.mxu0 0.0
      %844 = vmatpush1.xpose.msra.mxu0 %v841
      %845 = vmatprep.subr.mxu0 0.0
      %846 = vmatpush1.xpose.msra.mxu0 0.0
      %847 = vmatprep.subr.mxu0 0.0
      %848 = vmatpush1.xpose.msra.mxu0 0.0
      %849 = vmatprep.subr.mxu0 0.0
      %850 = vmatpush1.xpose.msra.mxu0 0.0
      %851 = vmatprep.subr.mxu0 0.0
      %852 = vmatpush1.xpose.msra.mxu0 0.0
      %853 = vmatprep.subr.mxu0 0.0
      %854 = vmatpush1.xpose.msra.mxu0 0.0
      %855 = vmatprep.subr.mxu0 0.0
      %856 = vmatpush1.xpose.msra.mxu0 0.0
      %857 = vmatprep.subr.mxu0 0.0
      %858 = vmatpush1.xpose.msra.mxu0 0.0
      %859 = vmatprep.subr.mxu0 0.0
      %860 = vmatpush1.xpose.msra.mxu0 0.0
      %861 = vmatprep.subr.mxu0 0.0
      %862 = vmatpush1.xpose.msra.mxu0 0.0
      %863 = vmatprep.subr.mxu0 0.0
      %864 = vmatpush1.xpose.msra.mxu0 0.0
      %865 = vmatprep.subr.mxu0 0.0
      %866 = vmatpush1.xpose.msra.mxu0 0.0
      %867 = vmatprep.subr.mxu0 0.0
      %868 = vmatpush1.xpose.msra.mxu0 0.0
      %869 = vmatprep.subr.mxu0 0.0
      %870 = vmatpush1.xpose.msra.mxu0 0.0
      %871 = vmatprep.subr.mxu0 0.0
      %872 = vmatpush1.xpose.msra.mxu0 0.0
      %873 = vmatprep.subr.mxu0 0.0
      %874 = vmatpush1.xpose.msra.mxu0 0.0
      %875 = vmatprep.subr.mxu0 0.0
      %876 = vmatpush1.xpose.msra.mxu0 0.0
      %877 = vmatprep.subr.mxu0 0.0
      %878 = vmatpush1.xpose.msra.mxu0 0.0
      %879 = vmatprep.subr.mxu0 0.0
      %880 = vmatpush1.xpose.msra.mxu0 0.0
      %881 = vmatprep.subr.mxu0 0.0
      %882 = vmatpush1.xpose.msra.mxu0 0.0
      %883 = vmatprep.subr.mxu0 0.0
      %884 = vmatpush1.xpose.msra.mxu0 0.0
      %885 = vmatprep.subr.mxu0 0.0
      %886 = vmatpush1.xpose.msra.mxu0 0.0
      %887 = vmatprep.subr.mxu0 0.0
      %888 = vmatpush1.xpose.msra.mxu0 0.0
      %889 = vmatprep.subr.mxu0 0.0
      %890 = vmatpush1.xpose.msra.mxu0 0.0
      %891 = vmatprep.subr.mxu0 0.0
      %892 = vmatpush1.xpose.msra.mxu0 0.0
      %893 = vmatprep.subr.mxu0 0.0
      %894 = vmatpush1.xpose.msra.mxu0 0.0
      %895 = vmatprep.subr.mxu0 0.0
      %896 = vmatpush1.xpose.msra.mxu0 0.0
      %897 = vmatprep.subr.mxu0 0.0
      %898 = vmatpush1.xpose.msra.mxu0 0.0
      %899 = vmatprep.subr.mxu0 0.0
      %900 = vmatpush1.xpose.msra.mxu0 0.0
      %901 = vmatprep.subr.mxu0 0.0
      %902 = vmatpush1.xpose.msra.mxu0 0.0
      %903 = vmatprep.subr.mxu0 0.0
      %904 = vmatpush1.xpose.msra.mxu0 0.0
      %905 = vmatprep.subr.mxu0 0.0
      %906 = vmatpush1.xpose.msra.mxu0 0.0
      %907 = vmatprep.mubr.f32.mxu0 0.0
      %908 = vmatmul.mubr.f32.gmra.mrb[0].mxu0 %v839
      %v909 = vpop.f32.mrb[0].mxu0
      %v910 = vadd.f32 0.0, %v909
      %v911 = vpop.f32.mrb[0].mxu0
      %912 = vdwg.mxu0
      %v913 = vmul.f32 %v910, 0.35355338
      %v914 = vsel %vm480, -1e+09, %v913
      %v915 = vsel %vm404, %v914, -inf
      %916 = vmax.xlane.f32.xlu0 %v915
      %v917 = vpop.xlane.xlu0 %916
      %v918 = vsub.f32 %v914, %v917
      %v919 = vmul.f32 %v918, 1.442695
      %v920 = vpow.pop %v919
      %v921 = vsel %vm404, %v920, 0.0
      %922 = vadd.xlane.f32.xlu0 %v921
      %v923 = vpop.xlane.xlu0 %922
      %v924 = vrcp.pop %v923
      %v925 = vmul.f32 %v920, %v924
      %926 = vrot.lane.b32.xlu0 %v395, 48
      %v927 = vpop.permute.xlu0 %926
      %v930 = vsel %vm404, %v925, 0
      %932 = vmatprep.subr.mxu0 0.0
      %933 = vmatpush1.msra.mxu0 %v927
      %934 = vmatprep.subr.mxu0 0.0
      %935 = vmatpush1.msra.mxu0 0.0
      %936 = vmatprep.subr.mxu0 0.0
      %937 = vmatpush1.msra.mxu0 0.0
      %938 = vmatprep.subr.mxu0 0.0
      %939 = vmatpush1.msra.mxu0 0.0
      %940 = vmatprep.subr.mxu0 0.0
      %941 = vmatpush1.msra.mxu0 0.0
      %942 = vmatprep.subr.mxu0 0.0
      %943 = vmatpush1.msra.mxu0 0.0
      %944 = vmatprep.subr.mxu0 0.0
      %945 = vmatpush1.msra.mxu0 0.0
      %946 = vmatprep.subr.mxu0 0.0
      %947 = vmatpush1.msra.mxu0 0.0
      %948 = vmatprep.subr.mxu0 0.0
      %949 = vmatpush1.msra.mxu0 0.0
      %950 = vmatprep.subr.mxu0 0.0
      %951 = vmatpush1.msra.mxu0 0.0
      %952 = vmatprep.subr.mxu0 0.0
      %953 = vmatpush1.msra.mxu0 0.0
      %954 = vmatprep.subr.mxu0 0.0
      %955 = vmatpush1.msra.mxu0 0.0
      %956 = vmatprep.subr.mxu0 0.0
      %957 = vmatpush1.msra.mxu0 0.0
      %958 = vmatprep.subr.mxu0 0.0
      %959 = vmatpush1.msra.mxu0 0.0
      %960 = vmatprep.subr.mxu0 0.0
      %961 = vmatpush1.msra.mxu0 0.0
      %962 = vmatprep.subr.mxu0 0.0
      %963 = vmatpush1.msra.mxu0 0.0
      %964 = vmatprep.subr.mxu0 0.0
      %965 = vmatpush1.msra.mxu0 0.0
      %966 = vmatprep.subr.mxu0 0.0
      %967 = vmatpush1.msra.mxu0 0.0
      %968 = vmatprep.subr.mxu0 0.0
      %969 = vmatpush1.msra.mxu0 0.0
      %970 = vmatprep.subr.mxu0 0.0
      %971 = vmatpush1.msra.mxu0 0.0
      %972 = vmatprep.subr.mxu0 0.0
      %973 = vmatpush1.msra.mxu0 0.0
      %974 = vmatprep.subr.mxu0 0.0
      %975 = vmatpush1.msra.mxu0 0.0
      %976 = vmatprep.subr.mxu0 0.0
      %977 = vmatpush1.msra.mxu0 0.0
      %978 = vmatprep.subr.mxu0 0.0
      %979 = vmatpush1.msra.mxu0 0.0
      %980 = vmatprep.subr.mxu0 0.0
      %981 = vmatpush1.msra.mxu0 0.0
      %982 = vmatprep.subr.mxu0 0.0
      %983 = vmatpush1.msra.mxu0 0.0
      %984 = vmatprep.subr.mxu0 0.0
      %985 = vmatpush1.msra.mxu0 0.0
      %986 = vmatprep.subr.mxu0 0.0
      %987 = vmatpush1.msra.mxu0 0.0
      %988 = vmatprep.subr.mxu0 0.0
      %989 = vmatpush1.msra.mxu0 0.0
      %990 = vmatprep.subr.mxu0 0.0
      %991 = vmatpush1.msra.mxu0 0.0
      %992 = vmatprep.subr.mxu0 0.0
      %993 = vmatpush1.msra.mxu0 0.0
      %994 = vmatprep.subr.mxu0 0.0
      %995 = vmatpush1.msra.mxu0 0.0
      %996 = vmatprep.mubr.f32.mxu0 0.0
      %997 = vmatmul.mubr.f32.gmra.mrb[0].mxu0 %v930
      %v998 = vpop.f32.mrb[0].mxu0
      %v999 = vadd.f32 0.0, %v998
      %v1000 = vpop.f32.mrb[0].mxu0
      %1001 = vdwg.mxu0
      %v1002 = vpack.c.bf16 %v999, %v999
      %v1003 = vld [vmem:[%s6 + $0x10] sm:$0xff]
      %v1004 = vpack.c.bf16 %v1003, %v1003
      %v1006 = vsel %vm404, %v1002, 0
      %v1009 = vsel %vm745, %v1004, 0
      %1011 = vmatprep.subr.bf16.mxu0 0
      %1012 = vmatpush1.bf16.msra.mxu0 %v1009
      %1013 = vmatprep.subr.bf16.mxu0 0
      %1014 = vmatpush1.bf16.msra.mxu0 0
      %1015 = vmatprep.subr.bf16.mxu0 0
      %1016 = vmatpush1.bf16.msra.mxu0 0
      %1017 = vmatprep.subr.bf16.mxu0 0
      %1018 = vmatpush1.bf16.msra.mxu0 0
      %1019 = vmatprep.subr.bf16.mxu0 0
      %1020 = vmatpush1.bf16.msra.mxu0 0
      %1021 = vmatprep.subr.bf16.mxu0 0
      %1022 = vmatpush1.bf16.msra.mxu0 0
      %1023 = vmatprep.subr.bf16.mxu0 0
      %1024 = vmatpush1.bf16.msra.mxu0 0
      %1025 = vmatprep.subr.bf16.mxu0 0
      %1026 = vmatpush1.bf16.msra.mxu0 0
      %1027 = vmatprep.subr.bf16.mxu0 0
      %1028 = vmatpush1.bf16.msra.mxu0 0
      %1029 = vmatprep.subr.bf16.mxu0 0
      %1030 = vmatpush1.bf16.msra.mxu0 0
      %1031 = vmatprep.subr.bf16.mxu0 0
      %1032 = vmatpush1.bf16.msra.mxu0 0
      %1033 = vmatprep.subr.bf16.mxu0 0
      %1034 = vmatpush1.bf16.msra.mxu0 0
      %1035 = vmatprep.subr.bf16.mxu0 0
      %1036 = vmatpush1.bf16.msra.mxu0 0
      %1037 = vmatprep.subr.bf16.mxu0 0
      %1038 = vmatpush1.bf16.msra.mxu0 0
      %1039 = vmatprep.subr.bf16.mxu0 0
      %1040 = vmatpush1.bf16.msra.mxu0 0
      %1041 = vmatprep.subr.bf16.mxu0 0
      %1042 = vmatpush1.bf16.msra.mxu0 0
      %1043 = vmatprep.mubr.bf16.mxu0 0
      %1044 = vmatmul.mubr.bf16.gmra.mrb[0].mxu0 %v1006
      %v1045 = vpop.f32.mrb[0].mxu0
      %v1046 = vadd.f32 0.0, %v1045
      %v1047 = vpop.f32.mrb[0].mxu0
      %v1048 = vpop.f32.mrb[0].mxu0
      %v1049 = vpop.f32.mrb[0].mxu0
      %1050 = vdwg.mxu0
      %v1051 = vadd.f32 %v830, %v1046
      %1052 = vrot.lane.b32.xlu0 %v395, 104
      %v1053 = vpop.permute.xlu0 %1052
      %1054 = vrot.lane.b32.xlu0 %v395, 72
      %v1055 = vpop.permute.xlu0 %1054
      %v1056 = vsel %vm404, %v1053, 0
      %v1058 = vsel %vm404, %v1055, 0
      %1060 = vmatprep.subr.mxu0 0.0
      %1061 = vmatpush1.xpose.msra.mxu0 %v1058
      %1062 = vmatprep.subr.mxu0 0.0
      %1063 = vmatpush1.xpose.msra.mxu0 0.0
      %1064 = vmatprep.subr.mxu0 0.0
      %1065 = vmatpush1.xpose.msra.mxu0 0.0
      %1066 = vmatprep.subr.mxu0 0.0
      %1067 = vmatpush1.xpose.msra.mxu0 0.0
      %1068 = vmatprep.subr.mxu0 0.0
      %1069 = vmatpush1.xpose.msra.mxu0 0.0
      %1070 = vmatprep.subr.mxu0 0.0
      %1071 = vmatpush1.xpose.msra.mxu0 0.0
      %1072 = vmatprep.subr.mxu0 0.0
      %1073 = vmatpush1.xpose.msra.mxu0 0.0
      %1074 = vmatprep.subr.mxu0 0.0
      %1075 = vmatpush1.xpose.msra.mxu0 0.0
      %1076 = vmatprep.subr.mxu0 0.0
      %1077 = vmatpush1.xpose.msra.mxu0 0.0
      %1078 = vmatprep.subr.mxu0 0.0
      %1079 = vmatpush1.xpose.msra.mxu0 0.0
      %1080 = vmatprep.subr.mxu0 0.0
      %1081 = vmatpush1.xpose.msra.mxu0 0.0
      %1082 = vmatprep.subr.mxu0 0.0
      %1083 = vmatpush1.xpose.msra.mxu0 0.0
      %1084 = vmatprep.subr.mxu0 0.0
      %1085 = vmatpush1.xpose.msra.mxu0 0.0
      %1086 = vmatprep.subr.mxu0 0.0
      %1087 = vmatpush1.xpose.msra.mxu0 0.0
      %1088 = vmatprep.subr.mxu0 0.0
      %1089 = vmatpush1.xpose.msra.mxu0 0.0
      %1090 = vmatprep.subr.mxu0 0.0
      %1091 = vmatpush1.xpose.msra.mxu0 0.0
      %1092 = vmatprep.subr.mxu0 0.0
      %1093 = vmatpush1.xpose.msra.mxu0 0.0
      %1094 = vmatprep.subr.mxu0 0.0
      %1095 = vmatpush1.xpose.msra.mxu0 0.0
      %1096 = vmatprep.subr.mxu0 0.0
      %1097 = vmatpush1.xpose.msra.mxu0 0.0
      %1098 = vmatprep.subr.mxu0 0.0
      %1099 = vmatpush1.xpose.msra.mxu0 0.0
      %1100 = vmatprep.subr.mxu0 0.0
      %1101 = vmatpush1.xpose.msra.mxu0 0.0
      %1102 = vmatprep.subr.mxu0 0.0
      %1103 = vmatpush1.xpose.msra.mxu0 0.0
      %1104 = vmatprep.subr.mxu0 0.0
      %1105 = vmatpush1.xpose.msra.mxu0 0.0
      %1106 = vmatprep.subr.mxu0 0.0
      %1107 = vmatpush1.xpose.msra.mxu0 0.0
      %1108 = vmatprep.subr.mxu0 0.0
      %1109 = vmatpush1.xpose.msra.mxu0 0.0
      %1110 = vmatprep.subr.mxu0 0.0
      %1111 = vmatpush1.xpose.msra.mxu0 0.0
      %1112 = vmatprep.subr.mxu0 0.0
      %1113 = vmatpush1.xpose.msra.mxu0 0.0
      %1114 = vmatprep.subr.mxu0 0.0
      %1115 = vmatpush1.xpose.msra.mxu0 0.0
      %1116 = vmatprep.subr.mxu0 0.0
      %1117 = vmatpush1.xpose.msra.mxu0 0.0
      %1118 = vmatprep.subr.mxu0 0.0
      %1119 = vmatpush1.xpose.msra.mxu0 0.0
      %1120 = vmatprep.subr.mxu0 0.0
      %1121 = vmatpush1.xpose.msra.mxu0 0.0
      %1122 = vmatprep.subr.mxu0 0.0
      %1123 = vmatpush1.xpose.msra.mxu0 0.0
      %1124 = vmatprep.mubr.f32.mxu0 0.0
      %1125 = vmatmul.mubr.f32.gmra.mrb[0].mxu0 %v1056
      %v1126 = vpop.f32.mrb[0].mxu0
      %v1127 = vadd.f32 0.0, %v1126
      %v1128 = vpop.f32.mrb[0].mxu0
      %1129 = vdwg.mxu0
      %v1130 = vmul.f32 %v1127, 0.35355338
      %v1131 = vsel %vm480, -1e+09, %v1130
      %v1132 = vsel %vm404, %v1131, -inf
      %1133 = vmax.xlane.f32.xlu0 %v1132
      %v1134 = vpop.xlane.xlu0 %1133
      %v1135 = vsub.f32 %v1131, %v1134
      %v1136 = vmul.f32 %v1135, 1.442695
      %v1137 = vpow.pop %v1136
      %v1138 = vsel %vm404, %v1137, 0.0
      %1139 = vadd.xlane.f32.xlu0 %v1138
      %v1140 = vpop.xlane.xlu0 %1139
      %v1141 = vrcp.pop %v1140
      %v1142 = vmul.f32 %v1137, %v1141
      %1143 = vrot.lane.b32.xlu0 %v395, 40
      %v1144 = vpop.permute.xlu0 %1143
      %v1147 = vsel %vm404, %v1142, 0
      %1149 = vmatprep.subr.mxu0 0.0
      %1150 = vmatpush1.msra.mxu0 %v1144
      %1151 = vmatprep.subr.mxu0 0.0
      %1152 = vmatpush1.msra.mxu0 0.0
      %1153 = vmatprep.subr.mxu0 0.0
      %1154 = vmatpush1.msra.mxu0 0.0
      %1155 = vmatprep.subr.mxu0 0.0
      %1156 = vmatpush1.msra.mxu0 0.0
      %1157 = vmatprep.subr.mxu0 0.0
      %1158 = vmatpush1.msra.mxu0 0.0
      %1159 = vmatprep.subr.mxu0 0.0
      %1160 = vmatpush1.msra.mxu0 0.0
      %1161 = vmatprep.subr.mxu0 0.0
      %1162 = vmatpush1.msra.mxu0 0.0
      %1163 = vmatprep.subr.mxu0 0.0
      %1164 = vmatpush1.msra.mxu0 0.0
      %1165 = vmatprep.subr.mxu0 0.0
      %1166 = vmatpush1.msra.mxu0 0.0
      %1167 = vmatprep.subr.mxu0 0.0
      %1168 = vmatpush1.msra.mxu0 0.0
      %1169 = vmatprep.subr.mxu0 0.0
      %1170 = vmatpush1.msra.mxu0 0.0
      %1171 = vmatprep.subr.mxu0 0.0
      %1172 = vmatpush1.msra.mxu0 0.0
      %1173 = vmatprep.subr.mxu0 0.0
      %1174 = vmatpush1.msra.mxu0 0.0
      %1175 = vmatprep.subr.mxu0 0.0
      %1176 = vmatpush1.msra.mxu0 0.0
      %1177 = vmatprep.subr.mxu0 0.0
      %1178 = vmatpush1.msra.mxu0 0.0
      %1179 = vmatprep.subr.mxu0 0.0
      %1180 = vmatpush1.msra.mxu0 0.0
      %1181 = vmatprep.subr.mxu0 0.0
      %1182 = vmatpush1.msra.mxu0 0.0
      %1183 = vmatprep.subr.mxu0 0.0
      %1184 = vmatpush1.msra.mxu0 0.0
      %1185 = vmatprep.subr.mxu0 0.0
      %1186 = vmatpush1.msra.mxu0 0.0
      %1187 = vmatprep.subr.mxu0 0.0
      %1188 = vmatpush1.msra.mxu0 0.0
      %1189 = vmatprep.subr.mxu0 0.0
      %1190 = vmatpush1.msra.mxu0 0.0
      %1191 = vmatprep.subr.mxu0 0.0
      %1192 = vmatpush1.msra.mxu0 0.0
      %1193 = vmatprep.subr.mxu0 0.0
      %1194 = vmatpush1.msra.mxu0 0.0
      %1195 = vmatprep.subr.mxu0 0.0
      %1196 = vmatpush1.msra.mxu0 0.0
      %1197 = vmatprep.subr.mxu0 0.0
      %1198 = vmatpush1.msra.mxu0 0.0
      %1199 = vmatprep.subr.mxu0 0.0
      %1200 = vmatpush1.msra.mxu0 0.0
      %1201 = vmatprep.subr.mxu0 0.0
      %1202 = vmatpush1.msra.mxu0 0.0
      %1203 = vmatprep.subr.mxu0 0.0
      %1204 = vmatpush1.msra.mxu0 0.0
      %1205 = vmatprep.subr.mxu0 0.0
      %1206 = vmatpush1.msra.mxu0 0.0
      %1207 = vmatprep.subr.mxu0 0.0
      %1208 = vmatpush1.msra.mxu0 0.0
      %1209 = vmatprep.subr.mxu0 0.0
      %1210 = vmatpush1.msra.mxu0 0.0
      %1211 = vmatprep.subr.mxu0 0.0
      %1212 = vmatpush1.msra.mxu0 0.0
      %1213 = vmatprep.mubr.f32.mxu0 0.0
      %1214 = vmatmul.mubr.f32.gmra.mrb[0].mxu0 %v1147
      %v1215 = vpop.f32.mrb[0].mxu0
      %v1216 = vadd.f32 0.0, %v1215
      %v1217 = vpop.f32.mrb[0].mxu0
      %1218 = vdwg.mxu0
      %v1219 = vpack.c.bf16 %v1216, %v1216
      %v1220 = vld [vmem:[%s6 + $0x18] sm:$0xff]
      %v1221 = vpack.c.bf16 %v1220, %v1220
      %v1223 = vsel %vm404, %v1219, 0
      %v1226 = vsel %vm745, %v1221, 0
      %1228 = vmatprep.subr.bf16.mxu0 0
      %1229 = vmatpush1.bf16.msra.mxu0 %v1226
      %1230 = vmatprep.subr.bf16.mxu0 0
      %1231 = vmatpush1.bf16.msra.mxu0 0
      %1232 = vmatprep.subr.bf16.mxu0 0
      %1233 = vmatpush1.bf16.msra.mxu0 0
      %1234 = vmatprep.subr.bf16.mxu0 0
      %1235 = vmatpush1.bf16.msra.mxu0 0
      %1236 = vmatprep.subr.bf16.mxu0 0
      %1237 = vmatpush1.bf16.msra.mxu0 0
      %1238 = vmatprep.subr.bf16.mxu0 0
      %1239 = vmatpush1.bf16.msra.mxu0 0
      %1240 = vmatprep.subr.bf16.mxu0 0
      %1241 = vmatpush1.bf16.msra.mxu0 0
      %1242 = vmatprep.subr.bf16.mxu0 0
      %1243 = vmatpush1.bf16.msra.mxu0 0
      %1244 = vmatprep.subr.bf16.mxu0 0
      %1245 = vmatpush1.bf16.msra.mxu0 0
      %1246 = vmatprep.subr.bf16.mxu0 0
      %1247 = vmatpush1.bf16.msra.mxu0 0
      %1248 = vmatprep.subr.bf16.mxu0 0
      %1249 = vmatpush1.bf16.msra.mxu0 0
      %1250 = vmatprep.subr.bf16.mxu0 0
      %1251 = vmatpush1.bf16.msra.mxu0 0
      %1252 = vmatprep.subr.bf16.mxu0 0
      %1253 = vmatpush1.bf16.msra.mxu0 0
      %1254 = vmatprep.subr.bf16.mxu0 0
      %1255 = vmatpush1.bf16.msra.mxu0 0
      %1256 = vmatprep.subr.bf16.mxu0 0
      %1257 = vmatpush1.bf16.msra.mxu0 0
      %1258 = vmatprep.subr.bf16.mxu0 0
      %1259 = vmatpush1.bf16.msra.mxu0 0
      %1260 = vmatprep.mubr.bf16.mxu0 0
      %1261 = vmatmul.mubr.bf16.gmra.mrb[0].mxu0 %v1223
      %v1262 = vpop.f32.mrb[0].mxu0
      %v1263 = vadd.f32 0.0, %v1262
      %v1264 = vpop.f32.mrb[0].mxu0
      %v1265 = vpop.f32.mrb[0].mxu0
      %v1266 = vpop.f32.mrb[0].mxu0
      %1267 = vdwg.mxu0
      %v1268 = vadd.f32 %v1051, %v1263
      %v1270 = vlaneseq
      %v1271 = vshrl.u32 %v1270, 7
      %v1272 = vsub.s32 0, %v1271
      %v1273 = vrot.slane %v400, %v1272
      %v1275 = vadd.f32 %v1268, %v1273
      %v1276 = vadd.f32 %v302, %v1275
      %1277 = vst.msk [vmem:[%s300] sm:$0xff] %vm306, %v1276
      %p1278 = scmp.lt.s32.totalorder %s19, 1
      %s1279 = scalar_select %p1278, %s19, 1
      %s1280 = smul.addr %s1279, 8
      %s1281 = scalar_lea.vmem %s8, %s1280
      // Predicated region
      $region53: #{encoder_decoder_forward.17} parent=51 // pred_check
        %p1282 = pneg %p210
      $region54: #{encoder_decoder_forward.17} parent=51 // pred_check_branch
        %1284 = sbr.rel (%p1282) target = $region56
      $region55: #{encoder_decoder_forward.17} parent=51 // pred_region
        _
      $region56: #{encoder_decoder_forward.17} parent=51 // pred_fallthru
        _
    $region52: #{encoder_decoder_forward.17} parent=5 // pred_fallthru
      _
    %p1285 = scmp.le.s32.totalorder 2, %s14
    // Predicated region
    $region57: #{encoder_decoder_forward.17} parent=5 // pred_check
      %p1286 = pneg %p1285
    $region58: #{encoder_decoder_forward.17} parent=5 // pred_check_branch
      %1288 = sbr.rel (%p1286) target = $region60
    $region59: #{encoder_decoder_forward.17} parent=5 // pred_region
      %s1289 = ssub.s32 %s14, 2
      // Predicated region
      $region61: #{encoder_decoder_forward.17} parent=59 // pred_check
        %p1290 = pneg %p216
      $region62: #{encoder_decoder_forward.17} parent=59 // pred_check_branch
        %1292 = sbr.rel (%p1290) target = $region64
      $region63: #{encoder_decoder_forward.17} parent=59 // pred_region
        %p1293 = scmp.lt.s32.totalorder %s20, 1
        %s1294 = scalar_select %p1293, %s20, 1
        %s1295 = smul.addr %s1294, 8
        %s1296 = scalar_lea.vmem %s8, %s1295
      $region64: #{encoder_decoder_forward.17} parent=59 // pred_fallthru
        _
    $region60: #{encoder_decoder_forward.17} parent=5 // pred_fallthru
      _
  $region6: #{encoder_decoder_forward.17} parent=0 // loop_footer
    %s18 = sadd.s32 1, %s14
  $region7: #{encoder_decoder_forward.17} parent=0 // loop_footer_branch
    %13 = sbr.rel target = $region3
  $region8: #{encoder_decoder_forward.17} parent=0 // loop_exit
    _

// kernel: encoder_decoder_forward.23
$region0: #{encoder_decoder_forward.23}
  #allocation0 [shape = 'u32[]', space=smem, size = 0x4, offset = 0x4, fixed_abs, tag = 'smem constant byte address 0x4 - core index']
  #allocation1 [shape = 'u32[144,128]{1,0:T(1,128)}', space=vmem, size = 0x12000, scoped, tag = 'internal scratch']
  %s0 = inlined_call_operand.vmem [shape: f32[16,32], index: 0, kind: input, shape index: {}]
  %s1 = inlined_call_operand.vmem [shape: f32[1,32], index: 1, kind: input, shape index: {}]
  %s2 = inlined_call_operand.vmem [shape: f32[1,32], index: 2, kind: input, shape index: {}]
  %s3 = inlined_call_operand.hbm [shape: f32[16,32], index: 3, kind: output, shape index: {}]
  %s4 = sld [smem:[#allocation0]]
  $region22: #{encoder_decoder_forward.23} parent=0
    _
  %s6 = ssub.s32 1, %s4
  %s7 = scalar_select 0, %s6, %s4
  $region1: #{encoder_decoder_forward.23} parent=0
    #allocation2 [shape = 'u8[8192]{0}', space=vmem, size = 0x2000, scoped, tag = 'output window, operand 0, single buffered']
    #allocation3 [shape = 's32[1]{0}', space=sflag, size = 0x4, scoped, tag = 'scoped memory for encoder_decoder_forward.23']
    %8 = vsyncpa [#allocation3], 0
    // Predicated region
    $region2: #{encoder_decoder_forward.23} parent=1 // pred_check
      _
    $region3: #{encoder_decoder_forward.23} parent=1 // pred_check_branch
      %10 = sbr.rel (0) target = $region5
    $region4: #{encoder_decoder_forward.23} parent=1 // pred_region
      _
    $region5: #{encoder_decoder_forward.23} parent=1 // pred_fallthru
      _
    // Predicated region
    $region6: #{encoder_decoder_forward.23} parent=1 // pred_check
      _
    $region7: #{encoder_decoder_forward.23} parent=1 // pred_check_branch
      %12 = sbr.rel (0) target = $region9
    $region8: #{encoder_decoder_forward.23} parent=1 // pred_region
      _
    $region9: #{encoder_decoder_forward.23} parent=1 // pred_fallthru
      _
    // Predicated region
    $region10: #{encoder_decoder_forward.23} parent=1 // pred_check
      _
    $region11: #{encoder_decoder_forward.23} parent=1 // pred_check_branch
      %14 = sbr.rel (0) target = $region13
    $region12: #{encoder_decoder_forward.23} parent=1 // pred_region
      _
    $region13: #{encoder_decoder_forward.23} parent=1 // pred_fallthru
      _
    %v15 = vld [vmem:[%s0] sm:$0xff]
    %v16 = vld [vmem:[%s0 + $0x8] sm:$0xff]
    %v17 = vld [vmem:[%s1] sm:$0x1]
    %v18 = vld [vmem:[%s2] sm:$0x1]
    %vm19 = vcmask 261120
    %v20 = vsel %vm19, %v15, 0.0
    %21 = vadd.xlane.f32.xlu0 %v20
    %v22 = vpop.xlane.xlu0 %21
    %v23 = vsel %vm19, %v16, 0.0
    %24 = vadd.xlane.f32.xlu0 %v23
    %v25 = vpop.xlane.xlu0 %24
    %v26 = vrcp.pop 32.0
    %v27 = vmul.f32 %v22, %v26
    %v28 = vmul.f32 %v25, %v26
    %v29 = vsub.f32 %v15, %v27
    %v30 = vsub.f32 %v16, %v28
    %v31 = vmul.f32 %v29, %v29
    %v32 = vmul.f32 %v30, %v30
    %v33 = vsel %vm19, %v31, 0.0
    %34 = vadd.xlane.f32.xlu0 %v33
    %v35 = vpop.xlane.xlu0 %34
    %v36 = vsel %vm19, %v32, 0.0
    %37 = vadd.xlane.f32.xlu0 %v36
    %v38 = vpop.xlane.xlu0 %37
    %v39 = vrcp.pop 31.0
    %v40 = vmul.f32 %v35, %v39
    %v41 = vmul.f32 %v38, %v39
    %v43 = vlaneseq
    %v44 = vshrl.u32 %v43, 7
    %v45 = vsub.s32 0, %v44
    %v46 = vrot.slane %v17, %v45
    %v48 = vmul.f32 %v46, %v29
    %v49 = vmul.f32 %v46, %v30
    %v50 = vrsqrt.pop %v40
    %v51 = vmul.f32 %v40, %v50
    %vm52 = vcmp.eq.f32.partialorder %v40, inf
    %v53 = vsel %vm52, %v40, %v51
    %vm54 = vcmp.eq.f32.partialorder %v40, 0.0
    %v55 = vand.u32 %v40, 2147483648
    %v56 = vsel %vm54, %v55, %v53
    %v57 = vrsqrt.pop %v41
    %v58 = vmul.f32 %v41, %v57
    %vm59 = vcmp.eq.f32.partialorder %v41, inf
    %v60 = vsel %vm59, %v41, %v58
    %vm61 = vcmp.eq.f32.partialorder %v41, 0.0
    %v62 = vand.u32 %v41, 2147483648
    %v63 = vsel %vm61, %v62, %v60
    %v64 = vadd.f32 %v56, 1e-06
    %v65 = vadd.f32 %v63, 1e-06
    %v66 = vrcp.pop %v64
    %v67 = vmul.f32 %v48, %v66
    %v68 = vrcp.pop %v65
    %v69 = vmul.f32 %v49, %v68
    %v71 = vlaneseq
    %v72 = vshrl.u32 %v71, 7
    %v73 = vsub.s32 0, %v72
    %v74 = vrot.slane %v18, %v73
    %v76 = vadd.f32 %v67, %v74
    %v77 = vadd.f32 %v69, %v74
    %78 = vst.msk [vmem:[#allocation2] sm:$0xff] %vm19, %v76
    %79 = vst.msk [vmem:[#allocation2 + $0x8] sm:$0xff] %vm19, %v77
    // Predicated region
    $region14: #{encoder_decoder_forward.23} parent=1 // pred_check
      _
    $region15: #{encoder_decoder_forward.23} parent=1 // pred_check_branch
      %81 = sbr.rel (0) target = $region17
    $region16: #{encoder_decoder_forward.23} parent=1 // pred_region
      %s83 = ssub.s32 256, 256
      %84 = vsyncadd [#allocation3], %s83
      %s85 = sshll.u32 [#allocation2], 4
      %s86 = int_to_ptr.vmem [resolvable:$true] %s85
      %91 = dma.vmem_to_hbm [thread:$0]  %s86, 256, %s3, [#allocation3], 128, 128, 8
    $region17: #{encoder_decoder_forward.23} parent=1 // pred_fallthru
      _
    // Predicated region
    $region18: #{encoder_decoder_forward.23} parent=1 // pred_check
      _
    $region19: #{encoder_decoder_forward.23} parent=1 // pred_check_branch
      %93 = sbr.rel (0) target = $region21
    $region20: #{encoder_decoder_forward.23} parent=1 // pred_region
      %94 = dma.done [#allocation3], 256
    $region21: #{encoder_decoder_forward.23} parent=1 // pred_fallthru
      _
    %95 = vsyncpa [#allocation3], 1

// kernel: encoder_decoder_forward.18
$region0: #{encoder_decoder_forward.18}
  #allocation0 [shape = 'u32[]', space=smem, size = 0x4, offset = 0x4, fixed_abs, tag = 'smem constant byte address 0x4 - core index']
  #allocation1 [shape = 'u32[144,128]{1,0:T(1,128)}', space=vmem, size = 0x12000, scoped, tag = 'internal scratch']
  %s0 = inlined_call_operand.vmem [shape: f32[2,8,32], index: 0, kind: input, shape index: {}]
  %s1 = inlined_call_operand.vmem [shape: f32[2,8,32], index: 1, kind: input, shape index: {}]
  %s2 = inlined_call_operand.vmem [shape: f32[2,1,8], index: 2, kind: input, shape index: {}]
  %s3 = inlined_call_operand.vmem [shape: f32[1,32], index: 3, kind: input, shape index: {}]
  %s4 = inlined_call_operand.vmem [shape: f32[1,32], index: 4, kind: input, shape index: {}]
  %s5 = inlined_call_operand.vmem [shape: f32[32,32], index: 5, kind: input, shape index: {}]
  %s6 = inlined_call_operand.vmem [shape: f32[1,32], index: 6, kind: input, shape index: {}]
  %s7 = inlined_call_operand.vmem [shape: f32[32,64], index: 7, kind: input, shape index: {}]
  %s8 = inlined_call_operand.vmem [shape: f32[1,64], index: 8, kind: input, shape index: {}]
  %s9 = inlined_call_operand.vmem [shape: f32[32,32], index: 9, kind: input, shape index: {}]
  %s10 = inlined_call_operand.vmem [shape: f32[1,32], index: 10, kind: input, shape index: {}]
  %s11 = inlined_call_operand.vmem [shape: f32[2,8,32], index: 11, kind: output, shape index: {}]
  %s12 = sld [smem:[#allocation0]]
  $region77: #{encoder_decoder_forward.18} parent=0
    _
  %s14 = ssub.s32 1, %s12
  %s15 = scalar_select 0, %s14, %s12
  loop: start=0, step=1, limit=4
  $region2: #{encoder_decoder_forward.18} parent=0 // loop_pre_header
    _
  $region3: #{encoder_decoder_forward.18} parent=0 // loop_header
    %s17 = sphi 0, %s21
    %p18 = scmp.ge.s32.totalorder %s17, 4
    %s27 = sphi 0, %s29
    %s30 = sphi 0, %s27
    %s31 = sphi 0, %s30
    %s47 = sphi 0, %s31
    %s53 = sphi 0, %s55
    %s56 = sphi 0, %s53
    %s57 = sphi 0, %s56
    %s73 = sphi 0, %s57
    %s79 = sphi 0, %s81
    %s82 = sphi 0, %s79
    %s83 = sphi 0, %s82
    %s99 = sphi 0, %s83
    %s103 = sphi 0, %s103
    %s105 = sphi 0, %s103
    %s106 = sphi 0, %s105
    %s120 = sphi 0, %s106
    %s124 = sphi 0, %s124
    %s126 = sphi 0, %s124
    %s127 = sphi 0, %s126
    %s141 = sphi 0, %s127
    %s145 = sphi 0, %s145
    %s147 = sphi 0, %s145
    %s148 = sphi 0, %s147
    %s162 = sphi 0, %s148
    %s166 = sphi 0, %s166
    %s168 = sphi 0, %s166
    %s169 = sphi 0, %s168
    %s183 = sphi 0, %s169
    %s187 = sphi 0, %s187
    %s189 = sphi 0, %s187
    %s190 = sphi 0, %s189
    %s204 = sphi 0, %s190
    %s208 = sphi 0, %s208
    %s210 = sphi 0, %s208
    %s211 = sphi 0, %s210
    %s225 = sphi 0, %s211
    %s229 = sphi 0, %s229
    %s231 = sphi 0, %s229
    %s232 = sphi 0, %s231
    %s246 = sphi 0, %s232
    %s250 = sphi 0, %s250
    %s252 = sphi 0, %s250
    %s253 = sphi 0, %s252
    %s267 = sphi 0, %s253
    %s273 = sphi 0, %s275
    %s276 = sphi 0, %s273
    %s277 = sphi 0, %s276
    %s293 = sphi 0, %s277
  $region4: #{encoder_decoder_forward.18} parent=0 // loop_header_branch
    %20 = sbr.rel (%p18) target = $region8
  $region5: #{encoder_decoder_forward.18} parent=0 // loop_body
    %s22 = ssub.s32 %s17, 1
    %s23 = ssub.s32 %s17, 2
    %s24 = sadd.s32 %s17, 1
    %s25 = ssub.s32 %s17, %s24
    %p26 = scmp.eq.s32.totalorder %s25, 0
    %s28 = sadd.s32 %s27, 1
    %s29 = scalar_select %p26, %s27, %s28
    %p32 = pneg %p26
    %p33 = scmp.eq.s32.totalorder %s17, 1
    %p34 = por %p32, %p33
    %p35 = scmp.ne.s32.totalorder %s27, %s30
    %p36 = scmp.eq.s32.totalorder %s17, 0
    %p37 = por %p35, %p36
    %p38 = scmp.ne.s32.totalorder %s27, %s30
    %p39 = scmp.eq.s32.totalorder %s22, 1
    %p40 = por %p38, %p39
    %p41 = scmp.ne.s32.totalorder %s30, %s31
    %p42 = scmp.eq.s32.totalorder %s22, 0
    %p43 = por %p41, %p42
    %p44 = scmp.ne.s32.totalorder %s30, %s31
    %p45 = scmp.eq.s32.totalorder %s23, 1
    %p46 = por %p44, %p45
    %p48 = scmp.ne.s32.totalorder %s31, %s47
    %p49 = scmp.eq.s32.totalorder %s23, 0
    %p50 = por %p48, %p49
    %s51 = ssub.s32 %s17, %s24
    %p52 = scmp.eq.s32.totalorder %s51, 0
    %s54 = sadd.s32 %s53, 1
    %s55 = scalar_select %p52, %s53, %s54
    %p58 = pneg %p52
    %p59 = scmp.eq.s32.totalorder %s17, 1
    %p60 = por %p58, %p59
    %p61 = scmp.ne.s32.totalorder %s53, %s56
    %p62 = scmp.eq.s32.totalorder %s17, 0
    %p63 = por %p61, %p62
    %p64 = scmp.ne.s32.totalorder %s53, %s56
    %p65 = scmp.eq.s32.totalorder %s22, 1
    %p66 = por %p64, %p65
    %p67 = scmp.ne.s32.totalorder %s56, %s57
    %p68 = scmp.eq.s32.totalorder %s22, 0
    %p69 = por %p67, %p68
    %p70 = scmp.ne.s32.totalorder %s56, %s57
    %p71 = scmp.eq.s32.totalorder %s23, 1
    %p72 = por %p70, %p71
    %p74 = scmp.ne.s32.totalorder %s57, %s73
    %p75 = scmp.eq.s32.totalorder %s23, 0
    %p76 = por %p74, %p75
    %s77 = ssub.s32 %s17, %s24
    %p78 = scmp.eq.s32.totalorder %s77, 0
    %s80 = sadd.s32 %s79, 1
    %s81 = scalar_select %p78, %s79, %s80
    %p84 = pneg %p78
    %p85 = scmp.eq.s32.totalorder %s17, 1
    %p86 = por %p84, %p85
    %p87 = scmp.ne.s32.totalorder %s79, %s82
    %p88 = scmp.eq.s32.totalorder %s17, 0
    %p89 = por %p87, %p88
    %p90 = scmp.ne.s32.totalorder %s79, %s82
    %p91 = scmp.eq.s32.totalorder %s22, 1
    %p92 = por %p90, %p91
    %p93 = scmp.ne.s32.totalorder %s82, %s83
    %p94 = scmp.eq.s32.totalorder %s22, 0
    %p95 = por %p93, %p94
    %p96 = scmp.ne.s32.totalorder %s82, %s83
    %p97 = scmp.eq.s32.totalorder %s23, 1
    %p98 = por %p96, %p97
    %p100 = scmp.ne.s32.totalorder %s83, %s99
    %p101 = scmp.eq.s32.totalorder %s23, 0
    %p102 = por %p100, %p101
    %s104 = sadd.s32 %s103, 1
    %p107 = scmp.eq.s32.totalorder %s17, 1
    %p108 = scmp.ne.s32.totalorder %s103, %s105
    %p109 = scmp.eq.s32.totalorder %s17, 0
    %p110 = por %p108, %p109
    %p111 = scmp.ne.s32.totalorder %s103, %s105
    %p112 = scmp.eq.s32.totalorder %s22, 1
    %p113 = por %p111, %p112
    %p114 = scmp.ne.s32.totalorder %s105, %s106
    %p115 = scmp.eq.s32.totalorder %s22, 0
    %p116 = por %p114, %p115
    %p117 = scmp.ne.s32.totalorder %s105, %s106
    %p118 = scmp.eq.s32.totalorder %s23, 1
    %p119 = por %p117, %p118
    %p121 = scmp.ne.s32.totalorder %s106, %s120
    %p122 = scmp.eq.s32.totalorder %s23, 0
    %p123 = por %p121, %p122
    %s125 = sadd.s32 %s124, 1
    %p128 = scmp.eq.s32.totalorder %s17, 1
    %p129 = scmp.ne.s32.totalorder %s124, %s126
    %p130 = scmp.eq.s32.totalorder %s17, 0
    %p131 = por %p129, %p130
    %p132 = scmp.ne.s32.totalorder %s124, %s126
    %p133 = scmp.eq.s32.totalorder %s22, 1
    %p134 = por %p132, %p133
    %p135 = scmp.ne.s32.totalorder %s126, %s127
    %p136 = scmp.eq.s32.totalorder %s22, 0
    %p137 = por %p135, %p136
    %p138 = scmp.ne.s32.totalorder %s126, %s127
    %p139 = scmp.eq.s32.totalorder %s23, 1
    %p140 = por %p138, %p139
    %p142 = scmp.ne.s32.totalorder %s127, %s141
    %p143 = scmp.eq.s32.totalorder %s23, 0
    %p144 = por %p142, %p143
    %s146 = sadd.s32 %s145, 1
    %p149 = scmp.eq.s32.totalorder %s17, 1
    %p150 = scmp.ne.s32.totalorder %s145, %s147
    %p151 = scmp.eq.s32.totalorder %s17, 0
    %p152 = por %p150, %p151
    %p153 = scmp.ne.s32.totalorder %s145, %s147
    %p154 = scmp.eq.s32.totalorder %s22, 1
    %p155 = por %p153, %p154
    %p156 = scmp.ne.s32.totalorder %s147, %s148
    %p157 = scmp.eq.s32.totalorder %s22, 0
    %p158 = por %p156, %p157
    %p159 = scmp.ne.s32.totalorder %s147, %s148
    %p160 = scmp.eq.s32.totalorder %s23, 1
    %p161 = por %p159, %p160
    %p163 = scmp.ne.s32.totalorder %s148, %s162
    %p164 = scmp.eq.s32.totalorder %s23, 0
    %p165 = por %p163, %p164
    %s167 = sadd.s32 %s166, 1
    %p170 = scmp.eq.s32.totalorder %s17, 1
    %p171 = scmp.ne.s32.totalorder %s166, %s168
    %p172 = scmp.eq.s32.totalorder %s17, 0
    %p173 = por %p171, %p172
    %p174 = scmp.ne.s32.totalorder %s166, %s168
    %p175 = scmp.eq.s32.totalorder %s22, 1
    %p176 = por %p174, %p175
    %p177 = scmp.ne.s32.totalorder %s168, %s169
    %p178 = scmp.eq.s32.totalorder %s22, 0
    %p179 = por %p177, %p178
    %p180 = scmp.ne.s32.totalorder %s168, %s169
    %p181 = scmp.eq.s32.totalorder %s23, 1
    %p182 = por %p180, %p181
    %p184 = scmp.ne.s32.totalorder %s169, %s183
    %p185 = scmp.eq.s32.totalorder %s23, 0
    %p186 = por %p184, %p185
    %s188 = sadd.s32 %s187, 1
    %p191 = scmp.eq.s32.totalorder %s17, 1
    %p192 = scmp.ne.s32.totalorder %s187, %s189
    %p193 = scmp.eq.s32.totalorder %s17, 0
    %p194 = por %p192, %p193
    %p195 = scmp.ne.s32.totalorder %s187, %s189
    %p196 = scmp.eq.s32.totalorder %s22, 1
    %p197 = por %p195, %p196
    %p198 = scmp.ne.s32.totalorder %s189, %s190
    %p199 = scmp.eq.s32.totalorder %s22, 0
    %p200 = por %p198, %p199
    %p201 = scmp.ne.s32.totalorder %s189, %s190
    %p202 = scmp.eq.s32.totalorder %s23, 1
    %p203 = por %p201, %p202
    %p205 = scmp.ne.s32.totalorder %s190, %s204
    %p206 = scmp.eq.s32.totalorder %s23, 0
    %p207 = por %p205, %p206
    %s209 = sadd.s32 %s208, 1
    %p212 = scmp.eq.s32.totalorder %s17, 1
    %p213 = scmp.ne.s32.totalorder %s208, %s210
    %p214 = scmp.eq.s32.totalorder %s17, 0
    %p215 = por %p213, %p214
    %p216 = scmp.ne.s32.totalorder %s208, %s210
    %p217 = scmp.eq.s32.totalorder %s22, 1
    %p218 = por %p216, %p217
    %p219 = scmp.ne.s32.totalorder %s210, %s211
    %p220 = scmp.eq.s32.totalorder %s22, 0
    %p221 = por %p219, %p220
    %p222 = scmp.ne.s32.totalorder %s210, %s211
    %p223 = scmp.eq.s32.totalorder %s23, 1
    %p224 = por %p222, %p223
    %p226 = scmp.ne.s32.totalorder %s211, %s225
    %p227 = scmp.eq.s32.totalorder %s23, 0
    %p228 = por %p226, %p227
    %s230 = sadd.s32 %s229, 1
    %p233 = scmp.eq.s32.totalorder %s17, 1
    %p234 = scmp.ne.s32.totalorder %s229, %s231
    %p235 = scmp.eq.s32.totalorder %s17, 0
    %p236 = por %p234, %p235
    %p237 = scmp.ne.s32.totalorder %s229, %s231
    %p238 = scmp.eq.s32.totalorder %s22, 1
    %p239 = por %p237, %p238
    %p240 = scmp.ne.s32.totalorder %s231, %s232
    %p241 = scmp.eq.s32.totalorder %s22, 0
    %p242 = por %p240, %p241
    %p243 = scmp.ne.s32.totalorder %s231, %s232
    %p244 = scmp.eq.s32.totalorder %s23, 1
    %p245 = por %p243, %p244
    %p247 = scmp.ne.s32.totalorder %s232, %s246
    %p248 = scmp.eq.s32.totalorder %s23, 0
    %p249 = por %p247, %p248
    %s251 = sadd.s32 %s250, 1
    %p254 = scmp.eq.s32.totalorder %s17, 1
    %p255 = scmp.ne.s32.totalorder %s250, %s252
    %p256 = scmp.eq.s32.totalorder %s17, 0
    %p257 = por %p255, %p256
    %p258 = scmp.ne.s32.totalorder %s250, %s252
    %p259 = scmp.eq.s32.totalorder %s22, 1
    %p260 = por %p258, %p259
    %p261 = scmp.ne.s32.totalorder %s252, %s253
    %p262 = scmp.eq.s32.totalorder %s22, 0
    %p263 = por %p261, %p262
    %p264 = scmp.ne.s32.totalorder %s252, %s253
    %p265 = scmp.eq.s32.totalorder %s23, 1
    %p266 = por %p264, %p265
    %p268 = scmp.ne.s32.totalorder %s253, %s267
    %p269 = scmp.eq.s32.totalorder %s23, 0
    %p270 = por %p268, %p269
    %s271 = ssub.s32 %s17, %s24
    %p272 = scmp.eq.s32.totalorder %s271, 0
    %s274 = sadd.s32 %s273, 1
    %s275 = scalar_select %p272, %s273, %s274
    %p278 = pneg %p272
    %p279 = scmp.eq.s32.totalorder %s17, 1
    %p280 = por %p278, %p279
    %p281 = scmp.ne.s32.totalorder %s273, %s276
    %p282 = scmp.eq.s32.totalorder %s17, 0
    %p283 = por %p281, %p282
    %p284 = scmp.ne.s32.totalorder %s273, %s276
    %p285 = scmp.eq.s32.totalorder %s22, 1
    %p286 = por %p284, %p285
    %p287 = scmp.ne.s32.totalorder %s276, %s277
    %p288 = scmp.eq.s32.totalorder %s22, 0
    %p289 = por %p287, %p288
    %p290 = scmp.ne.s32.totalorder %s276, %s277
    %p291 = scmp.eq.s32.totalorder %s23, 1
    %p292 = por %p290, %p291
    %p294 = scmp.ne.s32.totalorder %s277, %s293
    %p295 = scmp.eq.s32.totalorder %s23, 0
    %p296 = por %p294, %p295
    %p297 = scmp.le.s32.totalorder 1, %s17
    %p298 = scmp.lt.s32.totalorder %s17, 3
    %p299 = pnand %p297, %p298
    %p300 = pneg %p299
    // Predicated region
    $region9: #{encoder_decoder_forward.18} parent=5 // pred_check
      _
    $region10: #{encoder_decoder_forward.18} parent=5 // pred_check_branch
      %302 = sbr.rel (%p299) target = $region12
    $region11: #{encoder_decoder_forward.18} parent=5 // pred_region
      %s303 = ssub.s32 %s17, 1
      // Predicated region
      $region13: #{encoder_decoder_forward.18} parent=11 // pred_check
        %p304 = pneg %p116
      $region14: #{encoder_decoder_forward.18} parent=11 // pred_check_branch
        %306 = sbr.rel (%p304) target = $region16
      $region15: #{encoder_decoder_forward.18} parent=11 // pred_region
        _
      $region16: #{encoder_decoder_forward.18} parent=11 // pred_fallthru
        _
      // Predicated region
      $region17: #{encoder_decoder_forward.18} parent=11 // pred_check
        %p307 = pneg %p137
      $region18: #{encoder_decoder_forward.18} parent=11 // pred_check_branch
        %309 = sbr.rel (%p307) target = $region20
      $region19: #{encoder_decoder_forward.18} parent=11 // pred_region
        _
      $region20: #{encoder_decoder_forward.18} parent=11 // pred_fallthru
        _
      // Predicated region
      $region21: #{encoder_decoder_forward.18} parent=11 // pred_check
        %p310 = pneg %p158
      $region22: #{encoder_decoder_forward.18} parent=11 // pred_check_branch
        %312 = sbr.rel (%p310) target = $region24
      $region23: #{encoder_decoder_forward.18} parent=11 // pred_region
        _
      $region24: #{encoder_decoder_forward.18} parent=11 // pred_fallthru
        _
      // Predicated region
      $region25: #{encoder_decoder_forward.18} parent=11 // pred_check
        %p313 = pneg %p179
      $region26: #{encoder_decoder_forward.18} parent=11 // pred_check_branch
        %315 = sbr.rel (%p313) target = $region28
      $region27: #{encoder_decoder_forward.18} parent=11 // pred_region
        _
      $region28: #{encoder_decoder_forward.18} parent=11 // pred_fallthru
        _
      // Predicated region
      $region29: #{encoder_decoder_forward.18} parent=11 // pred_check
        %p316 = pneg %p200
      $region30: #{encoder_decoder_forward.18} parent=11 // pred_check_branch
        %318 = sbr.rel (%p316) target = $region32
      $region31: #{encoder_decoder_forward.18} parent=11 // pred_region
        _
      $region32: #{encoder_decoder_forward.18} parent=11 // pred_fallthru
        _
      // Predicated region
      $region33: #{encoder_decoder_forward.18} parent=11 // pred_check
        %p319 = pneg %p221
      $region34: #{encoder_decoder_forward.18} parent=11 // pred_check_branch
        %321 = sbr.rel (%p319) target = $region36
      $region35: #{encoder_decoder_forward.18} parent=11 // pred_region
        _
      $region36: #{encoder_decoder_forward.18} parent=11 // pred_fallthru
        _
      // Predicated region
      $region37: #{encoder_decoder_forward.18} parent=11 // pred_check
        %p322 = pneg %p242
      $region38: #{encoder_decoder_forward.18} parent=11 // pred_check_branch
        %324 = sbr.rel (%p322) target = $region40
      $region39: #{encoder_decoder_forward.18} parent=11 // pred_region
        _
      $region40: #{encoder_decoder_forward.18} parent=11 // pred_fallthru
        _
      // Predicated region
      $region41: #{encoder_decoder_forward.18} parent=11 // pred_check
        %p325 = pneg %p263
      $region42: #{encoder_decoder_forward.18} parent=11 // pred_check_branch
        %327 = sbr.rel (%p325) target = $region44
      $region43: #{encoder_decoder_forward.18} parent=11 // pred_region
        _
      $region44: #{encoder_decoder_forward.18} parent=11 // pred_fallthru
        _
    $region12: #{encoder_decoder_forward.18} parent=5 // pred_fallthru
      _
    %p328 = scmp.lt.s32.totalorder %s17, 2
    // Predicated region
    $region45: #{encoder_decoder_forward.18} parent=5 // pred_check
      %p329 = pneg %p328
    $region46: #{encoder_decoder_forward.18} parent=5 // pred_check_branch
      %331 = sbr.rel (%p329) target = $region48
    $region47: #{encoder_decoder_forward.18} parent=5 // pred_region
      // Predicated region
      $region49: #{encoder_decoder_forward.18} parent=47 // pred_check
        %p332 = pneg %p37
      $region50: #{encoder_decoder_forward.18} parent=47 // pred_check_branch
        %334 = sbr.rel (%p332) target = $region52
      $region51: #{encoder_decoder_forward.18} parent=47 // pred_region
        %p335 = scmp.lt.s32.totalorder %s17, 1
        %s336 = scalar_select %p335, %s17, 1
        %s337 = smul.addr %s336, 8
        %s338 = scalar_lea.vmem %s0, %s337
      $region52: #{encoder_decoder_forward.18} parent=47 // pred_fallthru
        _
      // Predicated region
      $region53: #{encoder_decoder_forward.18} parent=47 // pred_check
        %p339 = pneg %p63
      $region54: #{encoder_decoder_forward.18} parent=47 // pred_check_branch
        %341 = sbr.rel (%p339) target = $region56
      $region55: #{encoder_decoder_forward.18} parent=47 // pred_region
        %p342 = scmp.lt.s32.totalorder %s17, 1
        %s343 = scalar_select %p342, %s17, 1
        %s344 = smul.addr %s343, 8
        %s345 = scalar_lea.vmem %s1, %s344
      $region56: #{encoder_decoder_forward.18} parent=47 // pred_fallthru
        _
      // Predicated region
      $region57: #{encoder_decoder_forward.18} parent=47 // pred_check
        %p346 = pneg %p89
      $region58: #{encoder_decoder_forward.18} parent=47 // pred_check_branch
        %348 = sbr.rel (%p346) target = $region60
      $region59: #{encoder_decoder_forward.18} parent=47 // pred_region
        %p349 = scmp.lt.s32.totalorder %s17, 1
        %s350 = scalar_select %p349, %s17, 1
        %s351 = scalar_lea.vmem %s2, %s350
      $region60: #{encoder_decoder_forward.18} parent=47 // pred_fallthru
        _
    $region48: #{encoder_decoder_forward.18} parent=5 // pred_fallthru
      _
    %p352 = scmp.le.s32.totalorder 1, %s17
    %p353 = scmp.lt.s32.totalorder %s17, 3
    %p354 = pnand %p352, %p353
    %p355 = pneg %p354
    // Predicated region
    $region61: #{encoder_decoder_forward.18} parent=5 // pred_check
      _
    $region62: #{encoder_decoder_forward.18} parent=5 // pred_check_branch
      %357 = sbr.rel (%p354) target = $region64
    $region63: #{encoder_decoder_forward.18} parent=5 // pred_region
      %s358 = ssub.s32 %s17, 1
      %p359 = scmp.lt.s32.totalorder %s22, 1
      %s360 = scalar_select %p359, %s22, 1
      %s361 = smul.addr %s360, 8
      %s362 = scalar_lea.vmem %s0, %s361
      %p363 = pneg %p43
      %p364 = pneg %p40
      %p365 = scmp.lt.s32.totalorder %s22, 1
      %s366 = scalar_select %p365, %s22, 1
      %s367 = smul.addr %s366, 8
      %s368 = scalar_lea.vmem %s1, %s367
      %p369 = pneg %p69
      %p370 = pneg %p66
      %p371 = scmp.lt.s32.totalorder %s22, 1
      %s372 = scalar_select %p371, %s22, 1
      %s373 = scalar_lea.vmem %s2, %s372
      %p374 = pneg %p95
      %p375 = pneg %p92
      %p376 = pneg %p116
      %p377 = pneg %p113
      %p378 = pneg %p137
      %p379 = pneg %p134
      %p380 = pneg %p158
      %p381 = pneg %p155
      %p382 = pneg %p179
      %p383 = pneg %p176
      %p384 = pneg %p200
      %p385 = pneg %p197
      %p386 = pneg %p221
      %p387 = pneg %p218
      %p388 = pneg %p242
      %p389 = pneg %p239
      %p390 = pneg %p263
      %p391 = pneg %p260
      %p392 = pneg %p289
      %p393 = pneg %p286
      %p394 = scmp.lt.s32.totalorder %s22, 1
      %s395 = scalar_select %p394, %s22, 1
      %s396 = smul.addr %s395, 8
      %s397 = scalar_lea.vmem %s11, %s396
      %p398 = scmp.lt.s32.totalorder %s22, 1
      %s399 = scalar_select %p398, %s22, 1
      %s400 = smul.addr %s399, 8
      %s401 = scalar_lea.vmem %s0, %s400
      %p402 = scmp.lt.s32.totalorder %s22, 1
      %s403 = scalar_select %p402, %s22, 1
      %s404 = smul.addr %s403, 8
      %s405 = scalar_lea.vmem %s1, %s404
      %p406 = scmp.lt.s32.totalorder %s22, 1
      %s407 = scalar_select %p406, %s22, 1
      %s408 = scalar_lea.vmem %s2, %s407
      %p409 = scmp.lt.s32.totalorder %s22, 1
      %s410 = scalar_select %p409, %s22, 1
      %s411 = smul.addr %s410, 8
      %s412 = scalar_lea.vmem %s11, %s411
      %v414 = vld [vmem:[%s401] sm:$0xff]
      %v415 = vld [vmem:[%s405] sm:$0xff]
      %v416 = vld [vmem:[%s408] sm:$0x1]
      %v417 = vld [vmem:[%s3] sm:$0x1]
      %v418 = vld [vmem:[%s4] sm:$0x1]
      %vm419 = vcmask 261120
      %v420 = vsel %vm419, %v414, 0.0
      %421 = vadd.xlane.f32.xlu0 %v420
      %v422 = vpop.xlane.xlu0 %421
      %v423 = vrcp.pop 32.0
      %v424 = vmul.f32 %v422, %v423
      %v425 = vsub.f32 %v414, %v424
      %v426 = vmul.f32 %v425, %v425
      %v427 = vsel %vm419, %v426, 0.0
      %428 = vadd.xlane.f32.xlu0 %v427
      %v429 = vpop.xlane.xlu0 %428
      %v430 = vrcp.pop 31.0
      %v431 = vmul.f32 %v429, %v430
      %v433 = vlaneseq
      %v434 = vshrl.u32 %v433, 7
      %v435 = vsub.s32 0, %v434
      %v436 = vrot.slane %v417, %v435
      %v438 = vmul.f32 %v436, %v425
      %v439 = vrsqrt.pop %v431
      %v440 = vmul.f32 %v431, %v439
      %vm441 = vcmp.eq.f32.partialorder %v431, inf
      %v442 = vsel %vm441, %v431, %v440
      %vm443 = vcmp.eq.f32.partialorder %v431, 0.0
      %v444 = vand.u32 %v431, 2147483648
      %v445 = vsel %vm443, %v444, %v442
      %v446 = vadd.f32 %v445, 1e-06
      %v447 = vrcp.pop %v446
      %v448 = vmul.f32 %v438, %v447
      %v450 = vlaneseq
      %v451 = vshrl.u32 %v450, 7
      %v452 = vsub.s32 0, %v451
      %v453 = vrot.slane %v418, %v452
      %v455 = vadd.f32 %v448, %v453
      %v456 = vpack.c.bf16 %v455, %v455
      %v457 = vld [vmem:[%s5] sm:$0xff]
      %v458 = vld [vmem:[%s5 + $0x8] sm:$0xff]
      %v459 = vld [vmem:[%s5 + $0x10] sm:$0xff]
      %v460 = vld [vmem:[%s5 + $0x18] sm:$0xff]
      %v461 = vpack.c.bf16 %v458, %v457
      %v462 = vpack.c.bf16 %v460, %v459
      %v463 = vld [vmem:[%s6] sm:$0x1]
      %v465 = vlaneseq
      %v466 = vshrl.u32 %v465, 7
      %v467 = vsub.s32 0, %v466
      %v468 = vrot.slane %v463, %v467
      %v471 = vsel %vm419, %v456, 0
      %473 = vmatprep.subr.bf16.mxu0 0
      %474 = vmatpush1.bf16.msra.mxu0 %v461
      %475 = vmatprep.subr.bf16.mxu0 0
      %476 = vmatpush1.bf16.msra.mxu0 %v462
      %477 = vmatprep.subr.bf16.mxu0 0
      %478 = vmatpush1.bf16.msra.mxu0 0
      %479 = vmatprep.subr.bf16.mxu0 0
      %480 = vmatpush1.bf16.msra.mxu0 0
      %481 = vmatprep.subr.bf16.mxu0 0
      %482 = vmatpush1.bf16.msra.mxu0 0
      %483 = vmatprep.subr.bf16.mxu0 0
      %484 = vmatpush1.bf16.msra.mxu0 0
      %485 = vmatprep.subr.bf16.mxu0 0
      %486 = vmatpush1.bf16.msra.mxu0 0
      %487 = vmatprep.subr.bf16.mxu0 0
      %488 = vmatpush1.bf16.msra.mxu0 0
      %489 = vmatprep.subr.bf16.mxu0 0
      %490 = vmatpush1.bf16.msra.mxu0 0
      %491 = vmatprep.subr.bf16.mxu0 0
      %492 = vmatpush1.bf16.msra.mxu0 0
      %493 = vmatprep.subr.bf16.mxu0 0
      %494 = vmatpush1.bf16.msra.mxu0 0
      %495 = vmatprep.subr.bf16.mxu0 0
      %496 = vmatpush1.bf16.msra.mxu0 0
      %497 = vmatprep.subr.bf16.mxu0 0
      %498 = vmatpush1.bf16.msra.mxu0 0
      %499 = vmatprep.subr.bf16.mxu0 0
      %500 = vmatpush1.bf16.msra.mxu0 0
      %501 = vmatprep.subr.bf16.mxu0 0
      %502 = vmatpush1.bf16.msra.mxu0 0
      %503 = vmatprep.subr.bf16.mxu0 0
      %504 = vmatpush1.bf16.msra.mxu0 0
      %505 = vmatprep.mubr.bf16.mxu0 0
      %506 = vmatmul.mubr.bf16.gmra.mrb[0].mxu0 %v471
      %v507 = vpop.f32.mrb[0].mxu0
      %v508 = vadd.f32 %v468, %v507
      %v509 = vpop.f32.mrb[0].mxu0
      %v510 = vpop.f32.mrb[0].mxu0
      %v511 = vpop.f32.mrb[0].mxu0
      %512 = vdwg.mxu0
      %v513 = vpack.c.bf16 %v415, %v415
      %v514 = vld [vmem:[%s7] sm:$0xff]
      %v515 = vld [vmem:[%s7 + $0x8] sm:$0xff]
      %v516 = vld [vmem:[%s7 + $0x10] sm:$0xff]
      %v517 = vld [vmem:[%s7 + $0x18] sm:$0xff]
      %v518 = vpack.c.bf16 %v515, %v514
      %v519 = vpack.c.bf16 %v517, %v516
      %v520 = vld [vmem:[%s8] sm:$0x1]
      %v522 = vlaneseq
      %v523 = vshrl.u32 %v522, 7
      %v524 = vsub.s32 0, %v523
      %v525 = vrot.slane %v520, %v524
      %v528 = vsel %vm419, %v513, 0
      %530 = vmatprep.subr.bf16.mxu0 0
      %531 = vmatpush1.bf16.msra.mxu0 %v518
      %532 = vmatprep.subr.bf16.mxu0 0
      %533 = vmatpush1.bf16.msra.mxu0 %v519
      %534 = vmatprep.subr.bf16.mxu0 0
      %535 = vmatpush1.bf16.msra.mxu0 0
      %536 = vmatprep.subr.bf16.mxu0 0
      %537 = vmatpush1.bf16.msra.mxu0 0
      %538 = vmatprep.subr.bf16.mxu0 0
      %539 = vmatpush1.bf16.msra.mxu0 0
      %540 = vmatprep.subr.bf16.mxu0 0
      %541 = vmatpush1.bf16.msra.mxu0 0
      %542 = vmatprep.subr.bf16.mxu0 0
      %543 = vmatpush1.bf16.msra.mxu0 0
      %544 = vmatprep.subr.bf16.mxu0 0
      %545 = vmatpush1.bf16.msra.mxu0 0
      %546 = vmatprep.subr.bf16.mxu0 0
      %547 = vmatpush1.bf16.msra.mxu0 0
      %548 = vmatprep.subr.bf16.mxu0 0
      %549 = vmatpush1.bf16.msra.mxu0 0
      %550 = vmatprep.subr.bf16.mxu0 0
      %551 = vmatpush1.bf16.msra.mxu0 0
      %552 = vmatprep.subr.bf16.mxu0 0
      %553 = vmatpush1.bf16.msra.mxu0 0
      %554 = vmatprep.subr.bf16.mxu0 0
      %555 = vmatpush1.bf16.msra.mxu0 0
      %556 = vmatprep.subr.bf16.mxu0 0
      %557 = vmatpush1.bf16.msra.mxu0 0
      %558 = vmatprep.subr.bf16.mxu0 0
      %559 = vmatpush1.bf16.msra.mxu0 0
      %560 = vmatprep.subr.bf16.mxu0 0
      %561 = vmatpush1.bf16.msra.mxu0 0
      %562 = vmatprep.mubr.bf16.mxu0 0
      %563 = vmatmul.mubr.bf16.gmra.mrb[0].mxu0 %v528
      %v564 = vpop.f32.mrb[0].mxu0
      %v565 = vadd.f32 %v525, %v564
      %v566 = vpop.f32.mrb[0].mxu0
      %v567 = vpop.f32.mrb[0].mxu0
      %v568 = vpop.f32.mrb[0].mxu0
      %569 = vdwg.mxu0
      %v570 = vld [vmem:[%s10] sm:$0x1]
      %vm571 = vcmask 64512
      %v573 = vsel %vm571, %v508, 0
      %v576 = vsel %vm571, %v565, 0
      %578 = vmatprep.subr.mxu0 0.0
      %579 = vmatpush1.xpose.msra.mxu0 %v576
      %580 = vmatprep.subr.mxu0 0.0
      %581 = vmatpush1.xpose.msra.mxu0 0.0
      %582 = vmatprep.subr.mxu0 0.0
      %583 = vmatpush1.xpose.msra.mxu0 0.0
      %584 = vmatprep.subr.mxu0 0.0
      %585 = vmatpush1.xpose.msra.mxu0 0.0
      %586 = vmatprep.subr.mxu0 0.0
      %587 = vmatpush1.xpose.msra.mxu0 0.0
      %588 = vmatprep.subr.mxu0 0.0
      %589 = vmatpush1.xpose.msra.mxu0 0.0
      %590 = vmatprep.subr.mxu0 0.0
      %591 = vmatpush1.xpose.msra.mxu0 0.0
      %592 = vmatprep.subr.mxu0 0.0
      %593 = vmatpush1.xpose.msra.mxu0 0.0
      %594 = vmatprep.subr.mxu0 0.0
      %595 = vmatpush1.xpose.msra.mxu0 0.0
      %596 = vmatprep.subr.mxu0 0.0
      %597 = vmatpush1.xpose.msra.mxu0 0.0
      %598 = vmatprep.subr.mxu0 0.0
      %599 = vmatpush1.xpose.msra.mxu0 0.0
      %600 = vmatprep.subr.mxu0 0.0
      %601 = vmatpush1.xpose.msra.mxu0 0.0
      %602 = vmatprep.subr.mxu0 0.0
      %603 = vmatpush1.xpose.msra.mxu0 0.0
      %604 = vmatprep.subr.mxu0 0.0
      %605 = vmatpush1.xpose.msra.mxu0 0.0
      %606 = vmatprep.subr.mxu0 0.0
      %607 = vmatpush1.xpose.msra.mxu0 0.0
      %608 = vmatprep.subr.mxu0 0.0
      %609 = vmatpush1.xpose.msra.mxu0 0.0
      %610 = vmatprep.subr.mxu0 0.0
      %611 = vmatpush1.xpose.msra.mxu0 0.0
      %612 = vmatprep.subr.mxu0 0.0
      %613 = vmatpush1.xpose.msra.mxu0 0.0
      %614 = vmatprep.subr.mxu0 0.0
      %615 = vmatpush1.xpose.msra.mxu0 0.0
      %616 = vmatprep.subr.mxu0 0.0
      %617 = vmatpush1.xpose.msra.mxu0 0.0
      %618 = vmatprep.subr.mxu0 0.0
      %619 = vmatpush1.xpose.msra.mxu0 0.0
      %620 = vmatprep.subr.mxu0 0.0
      %621 = vmatpush1.xpose.msra.mxu0 0.0
      %622 = vmatprep.subr.mxu0 0.0
      %623 = vmatpush1.xpose.msra.mxu0 0.0
      %624 = vmatprep.subr.mxu0 0.0
      %625 = vmatpush1.xpose.msra.mxu0 0.0
      %626 = vmatprep.subr.mxu0 0.0
      %627 = vmatpush1.xpose.msra.mxu0 0.0
      %628 = vmatprep.subr.mxu0 0.0
      %629 = vmatpush1.xpose.msra.mxu0 0.0
      %630 = vmatprep.subr.mxu0 0.0
      %631 = vmatpush1.xpose.msra.mxu0 0.0
      %632 = vmatprep.subr.mxu0 0.0
      %633 = vmatpush1.xpose.msra.mxu0 0.0
      %634 = vmatprep.subr.mxu0 0.0
      %635 = vmatpush1.xpose.msra.mxu0 0.0
      %636 = vmatprep.subr.mxu0 0.0
      %637 = vmatpush1.xpose.msra.mxu0 0.0
      %638 = vmatprep.subr.mxu0 0.0
      %639 = vmatpush1.xpose.msra.mxu0 0.0
      %640 = vmatprep.subr.mxu0 0.0
      %641 = vmatpush1.xpose.msra.mxu0 0.0
      %642 = vmatprep.mubr.f32.mxu0 0.0
      %643 = vmatmul.mubr.f32.gmra.mrb[0].mxu0 %v573
      %v644 = vpop.f32.mrb[0].mxu0
      %v645 = vadd.f32 0.0, %v644
      %v646 = vpop.f32.mrb[0].mxu0
      %647 = vdwg.mxu0
      %v648 = vmul.f32 %v645, 0.35355338
      %vm649 = vcmp.eq.f32.partialorder %v416, 0.0
      %v650 = vsel %vm649, 1, 0
      %v651 = vlaneseq
      %v652 = vshrl.u32 %v651, 7
      %v653 = vsub.s32 0, %v652
      %v654 = vrot.slane %v650, %v653
      %vm655 = vcmp.eq.s32.totalorder %v654, 1
      %v656 = vsel %vm655, -1e+09, %v648
      %v657 = vsel %vm571, %v656, -inf
      %658 = vmax.xlane.f32.xlu0 %v657
      %v659 = vpop.xlane.xlu0 %658
      %v660 = vsub.f32 %v656, %v659
      %v661 = vmul.f32 %v660, 1.442695
      %v662 = vpow.pop %v661
      %v663 = vsel %vm571, %v662, 0.0
      %664 = vadd.xlane.f32.xlu0 %v663
      %v665 = vpop.xlane.xlu0 %664
      %v666 = vrcp.pop %v665
      %v667 = vmul.f32 %v662, %v666
      %668 = vrot.lane.b32.xlu0 %v565, 96
      %v669 = vpop.permute.xlu0 %668
      %v672 = vsel %vm571, %v667, 0
      %674 = vmatprep.subr.mxu0 0.0
      %675 = vmatpush1.msra.mxu0 %v669
      %676 = vmatprep.subr.mxu0 0.0
      %677 = vmatpush1.msra.mxu0 0.0
      %678 = vmatprep.subr.mxu0 0.0
      %679 = vmatpush1.msra.mxu0 0.0
      %680 = vmatprep.subr.mxu0 0.0
      %681 = vmatpush1.msra.mxu0 0.0
      %682 = vmatprep.subr.mxu0 0.0
      %683 = vmatpush1.msra.mxu0 0.0
      %684 = vmatprep.subr.mxu0 0.0
      %685 = vmatpush1.msra.mxu0 0.0
      %686 = vmatprep.subr.mxu0 0.0
      %687 = vmatpush1.msra.mxu0 0.0
      %688 = vmatprep.subr.mxu0 0.0
      %689 = vmatpush1.msra.mxu0 0.0
      %690 = vmatprep.subr.mxu0 0.0
      %691 = vmatpush1.msra.mxu0 0.0
      %692 = vmatprep.subr.mxu0 0.0
      %693 = vmatpush1.msra.mxu0 0.0
      %694 = vmatprep.subr.mxu0 0.0
      %695 = vmatpush1.msra.mxu0 0.0
      %696 = vmatprep.subr.mxu0 0.0
      %697 = vmatpush1.msra.mxu0 0.0
      %698 = vmatprep.subr.mxu0 0.0
      %699 = vmatpush1.msra.mxu0 0.0
      %700 = vmatprep.subr.mxu0 0.0
      %701 = vmatpush1.msra.mxu0 0.0
      %702 = vmatprep.subr.mxu0 0.0
      %703 = vmatpush1.msra.mxu0 0.0
      %704 = vmatprep.subr.mxu0 0.0
      %705 = vmatpush1.msra.mxu0 0.0
      %706 = vmatprep.subr.mxu0 0.0
      %707 = vmatpush1.msra.mxu0 0.0
      %708 = vmatprep.subr.mxu0 0.0
      %709 = vmatpush1.msra.mxu0 0.0
      %710 = vmatprep.subr.mxu0 0.0
      %711 = vmatpush1.msra.mxu0 0.0
      %712 = vmatprep.subr.mxu0 0.0
      %713 = vmatpush1.msra.mxu0 0.0
      %714 = vmatprep.subr.mxu0 0.0
      %715 = vmatpush1.msra.mxu0 0.0
      %716 = vmatprep.subr.mxu0 0.0
      %717 = vmatpush1.msra.mxu0 0.0
      %718 = vmatprep.subr.mxu0 0.0
      %719 = vmatpush1.msra.mxu0 0.0
      %720 = vmatprep.subr.mxu0 0.0
      %721 = vmatpush1.msra.mxu0 0.0
      %722 = vmatprep.subr.mxu0 0.0
      %723 = vmatpush1.msra.mxu0 0.0
      %724 = vmatprep.subr.mxu0 0.0
      %725 = vmatpush1.msra.mxu0 0.0
      %726 = vmatprep.subr.mxu0 0.0
      %727 = vmatpush1.msra.mxu0 0.0
      %728 = vmatprep.subr.mxu0 0.0
      %729 = vmatpush1.msra.mxu0 0.0
      %730 = vmatprep.subr.mxu0 0.0
      %731 = vmatpush1.msra.mxu0 0.0
      %732 = vmatprep.subr.mxu0 0.0
      %733 = vmatpush1.msra.mxu0 0.0
      %734 = vmatprep.subr.mxu0 0.0
      %735 = vmatpush1.msra.mxu0 0.0
      %736 = vmatprep.subr.mxu0 0.0
      %737 = vmatpush1.msra.mxu0 0.0
      %738 = vmatprep.mubr.f32.mxu0 0.0
      %739 = vmatmul.mubr.f32.gmra.mrb[0].mxu0 %v672
      %v740 = vpop.f32.mrb[0].mxu0
      %v741 = vadd.f32 0.0, %v740
      %v742 = vpop.f32.mrb[0].mxu0
      %743 = vdwg.mxu0
      %v744 = vpack.c.bf16 %v741, %v741
      %v745 = vld [vmem:[%s9] sm:$0xff]
      %v746 = vpack.c.bf16 %v745, %v745
      %747 = vrot.lane.b32.xlu0 %v508, 120
      %v748 = vpop.permute.xlu0 %747
      %749 = vrot.lane.b32.xlu0 %v565, 120
      %v750 = vpop.permute.xlu0 %749
      %v751 = vsel %vm571, %v748, 0
      %v753 = vsel %vm571, %v750, 0
      %755 = vmatprep.subr.mxu0 0.0
      %756 = vmatpush1.xpose.msra.mxu0 %v753
      %757 = vmatprep.subr.mxu0 0.0
      %758 = vmatpush1.xpose.msra.mxu0 0.0
      %759 = vmatprep.subr.mxu0 0.0
      %760 = vmatpush1.xpose.msra.mxu0 0.0
      %761 = vmatprep.subr.mxu0 0.0
      %762 = vmatpush1.xpose.msra.mxu0 0.0
      %763 = vmatprep.subr.mxu0 0.0
      %764 = vmatpush1.xpose.msra.mxu0 0.0
      %765 = vmatprep.subr.mxu0 0.0
      %766 = vmatpush1.xpose.msra.mxu0 0.0
      %767 = vmatprep.subr.mxu0 0.0
      %768 = vmatpush1.xpose.msra.mxu0 0.0
      %769 = vmatprep.subr.mxu0 0.0
      %770 = vmatpush1.xpose.msra.mxu0 0.0
      %771 = vmatprep.subr.mxu0 0.0
      %772 = vmatpush1.xpose.msra.mxu0 0.0
      %773 = vmatprep.subr.mxu0 0.0
      %774 = vmatpush1.xpose.msra.mxu0 0.0
      %775 = vmatprep.subr.mxu0 0.0
      %776 = vmatpush1.xpose.msra.mxu0 0.0
      %777 = vmatprep.subr.mxu0 0.0
      %778 = vmatpush1.xpose.msra.mxu0 0.0
      %779 = vmatprep.subr.mxu0 0.0
      %780 = vmatpush1.xpose.msra.mxu0 0.0
      %781 = vmatprep.subr.mxu0 0.0
      %782 = vmatpush1.xpose.msra.mxu0 0.0
      %783 = vmatprep.subr.mxu0 0.0
      %784 = vmatpush1.xpose.msra.mxu0 0.0
      %785 = vmatprep.subr.mxu0 0.0
      %786 = vmatpush1.xpose.msra.mxu0 0.0
      %787 = vmatprep.subr.mxu0 0.0
      %788 = vmatpush1.xpose.msra.mxu0 0.0
      %789 = vmatprep.subr.mxu0 0.0
      %790 = vmatpush1.xpose.msra.mxu0 0.0
      %791 = vmatprep.subr.mxu0 0.0
      %792 = vmatpush1.xpose.msra.mxu0 0.0
      %793 = vmatprep.subr.mxu0 0.0
      %794 = vmatpush1.xpose.msra.mxu0 0.0
      %795 = vmatprep.subr.mxu0 0.0
      %796 = vmatpush1.xpose.msra.mxu0 0.0
      %797 = vmatprep.subr.mxu0 0.0
      %798 = vmatpush1.xpose.msra.mxu0 0.0
      %799 = vmatprep.subr.mxu0 0.0
      %800 = vmatpush1.xpose.msra.mxu0 0.0
      %801 = vmatprep.subr.mxu0 0.0
      %802 = vmatpush1.xpose.msra.mxu0 0.0
      %803 = vmatprep.subr.mxu0 0.0
      %804 = vmatpush1.xpose.msra.mxu0 0.0
      %805 = vmatprep.subr.mxu0 0.0
      %806 = vmatpush1.xpose.msra.mxu0 0.0
      %807 = vmatprep.subr.mxu0 0.0
      %808 = vmatpush1.xpose.msra.mxu0 0.0
      %809 = vmatprep.subr.mxu0 0.0
      %810 = vmatpush1.xpose.msra.mxu0 0.0
      %811 = vmatprep.subr.mxu0 0.0
      %812 = vmatpush1.xpose.msra.mxu0 0.0
      %813 = vmatprep.subr.mxu0 0.0
      %814 = vmatpush1.xpose.msra.mxu0 0.0
      %815 = vmatprep.subr.mxu0 0.0
      %816 = vmatpush1.xpose.msra.mxu0 0.0
      %817 = vmatprep.subr.mxu0 0.0
      %818 = vmatpush1.xpose.msra.mxu0 0.0
      %819 = vmatprep.mubr.f32.mxu0 0.0
      %820 = vmatmul.mubr.f32.gmra.mrb[0].mxu0 %v751
      %v821 = vpop.f32.mrb[0].mxu0
      %v822 = vadd.f32 0.0, %v821
      %v823 = vpop.f32.mrb[0].mxu0
      %824 = vdwg.mxu0
      %v825 = vmul.f32 %v822, 0.35355338
      %v826 = vsel %vm655, -1e+09, %v825
      %v827 = vsel %vm571, %v826, -inf
      %828 = vmax.xlane.f32.xlu0 %v827
      %v829 = vpop.xlane.xlu0 %828
      %v830 = vsub.f32 %v826, %v829
      %v831 = vmul.f32 %v830, 1.442695
      %v832 = vpow.pop %v831
      %v833 = vsel %vm571, %v832, 0.0
      %834 = vadd.xlane.f32.xlu0 %v833
      %v835 = vpop.xlane.xlu0 %834
      %v836 = vrcp.pop %v835
      %v837 = vmul.f32 %v832, %v836
      %838 = vrot.lane.b32.xlu0 %v565, 88
      %v839 = vpop.permute.xlu0 %838
      %v842 = vsel %vm571, %v837, 0
      %844 = vmatprep.subr.mxu0 0.0
      %845 = vmatpush1.msra.mxu0 %v839
      %846 = vmatprep.subr.mxu0 0.0
      %847 = vmatpush1.msra.mxu0 0.0
      %848 = vmatprep.subr.mxu0 0.0
      %849 = vmatpush1.msra.mxu0 0.0
      %850 = vmatprep.subr.mxu0 0.0
      %851 = vmatpush1.msra.mxu0 0.0
      %852 = vmatprep.subr.mxu0 0.0
      %853 = vmatpush1.msra.mxu0 0.0
      %854 = vmatprep.subr.mxu0 0.0
      %855 = vmatpush1.msra.mxu0 0.0
      %856 = vmatprep.subr.mxu0 0.0
      %857 = vmatpush1.msra.mxu0 0.0
      %858 = vmatprep.subr.mxu0 0.0
      %859 = vmatpush1.msra.mxu0 0.0
      %860 = vmatprep.subr.mxu0 0.0
      %861 = vmatpush1.msra.mxu0 0.0
      %862 = vmatprep.subr.mxu0 0.0
      %863 = vmatpush1.msra.mxu0 0.0
      %864 = vmatprep.subr.mxu0 0.0
      %865 = vmatpush1.msra.mxu0 0.0
      %866 = vmatprep.subr.mxu0 0.0
      %867 = vmatpush1.msra.mxu0 0.0
      %868 = vmatprep.subr.mxu0 0.0
      %869 = vmatpush1.msra.mxu0 0.0
      %870 = vmatprep.subr.mxu0 0.0
      %871 = vmatpush1.msra.mxu0 0.0
      %872 = vmatprep.subr.mxu0 0.0
      %873 = vmatpush1.msra.mxu0 0.0
      %874 = vmatprep.subr.mxu0 0.0
      %875 = vmatpush1.msra.mxu0 0.0
      %876 = vmatprep.subr.mxu0 0.0
      %877 = vmatpush1.msra.mxu0 0.0
      %878 = vmatprep.subr.mxu0 0.0
      %879 = vmatpush1.msra.mxu0 0.0
      %880 = vmatprep.subr.mxu0 0.0
      %881 = vmatpush1.msra.mxu0 0.0
      %882 = vmatprep.subr.mxu0 0.0
      %883 = vmatpush1.msra.mxu0 0.0
      %884 = vmatprep.subr.mxu0 0.0
      %885 = vmatpush1.msra.mxu0 0.0
      %886 = vmatprep.subr.mxu0 0.0
      %887 = vmatpush1.msra.mxu0 0.0
      %888 = vmatprep.subr.mxu0 0.0
      %889 = vmatpush1.msra.mxu0 0.0
      %890 = vmatprep.subr.mxu0 0.0
      %891 = vmatpush1.msra.mxu0 0.0
      %892 = vmatprep.subr.mxu0 0.0
      %893 = vmatpush1.msra.mxu0 0.0
      %894 = vmatprep.subr.mxu0 0.0
      %895 = vmatpush1.msra.mxu0 0.0
      %896 = vmatprep.subr.mxu0 0.0
      %897 = vmatpush1.msra.mxu0 0.0
      %898 = vmatprep.subr.mxu0 0.0
      %899 = vmatpush1.msra.mxu0 0.0
      %900 = vmatprep.subr.mxu0 0.0
      %901 = vmatpush1.msra.mxu0 0.0
      %902 = vmatprep.subr.mxu0 0.0
      %903 = vmatpush1.msra.mxu0 0.0
      %904 = vmatprep.subr.mxu0 0.0
      %905 = vmatpush1.msra.mxu0 0.0
      %906 = vmatprep.subr.mxu0 0.0
      %907 = vmatpush1.msra.mxu0 0.0
      %908 = vmatprep.mubr.f32.mxu0 0.0
      %909 = vmatmul.mubr.f32.gmra.mrb[0].mxu0 %v842
      %v910 = vpop.f32.mrb[0].mxu0
      %v911 = vadd.f32 0.0, %v910
      %v912 = vpop.f32.mrb[0].mxu0
      %913 = vdwg.mxu0
      %v914 = vpack.c.bf16 %v911, %v911
      %v915 = vld [vmem:[%s9 + $0x8] sm:$0xff]
      %v916 = vpack.c.bf16 %v915, %v915
      %v918 = vsel %vm571, %v914, 0
      %vm920 = vcmask 1043456
      %v922 = vsel %vm920, %v916, 0
      %924 = vmatprep.subr.bf16.mxu0 0
      %925 = vmatpush1.bf16.msra.mxu0 %v922
      %926 = vmatprep.subr.bf16.mxu0 0
      %927 = vmatpush1.bf16.msra.mxu0 0
      %928 = vmatprep.subr.bf16.mxu0 0
      %929 = vmatpush1.bf16.msra.mxu0 0
      %930 = vmatprep.subr.bf16.mxu0 0
      %931 = vmatpush1.bf16.msra.mxu0 0
      %932 = vmatprep.subr.bf16.mxu0 0
      %933 = vmatpush1.bf16.msra.mxu0 0
      %934 = vmatprep.subr.bf16.mxu0 0
      %935 = vmatpush1.bf16.msra.mxu0 0
      %936 = vmatprep.subr.bf16.mxu0 0
      %937 = vmatpush1.bf16.msra.mxu0 0
      %938 = vmatprep.subr.bf16.mxu0 0
      %939 = vmatpush1.bf16.msra.mxu0 0
      %940 = vmatprep.subr.bf16.mxu0 0
      %941 = vmatpush1.bf16.msra.mxu0 0
      %942 = vmatprep.subr.bf16.mxu0 0
      %943 = vmatpush1.bf16.msra.mxu0 0
      %944 = vmatprep.subr.bf16.mxu0 0
      %945 = vmatpush1.bf16.msra.mxu0 0
      %946 = vmatprep.subr.bf16.mxu0 0
      %947 = vmatpush1.bf16.msra.mxu0 0
      %948 = vmatprep.subr.bf16.mxu0 0
      %949 = vmatpush1.bf16.msra.mxu0 0
      %950 = vmatprep.subr.bf16.mxu0 0
      %951 = vmatpush1.bf16.msra.mxu0 0
      %952 = vmatprep.subr.bf16.mxu0 0
      %953 = vmatpush1.bf16.msra.mxu0 0
      %954 = vmatprep.subr.bf16.mxu0 0
      %955 = vmatpush1.bf16.msra.mxu0 0
      %956 = vmatprep.mubr.bf16.mxu0 0
      %957 = vmatmul.mubr.bf16.gmra.mrb[0].mxu0 %v918
      %v958 = vpop.f32.mrb[0].mxu0
      %v959 = vadd.f32 0.0, %v958
      %v960 = vpop.f32.mrb[0].mxu0
      %v961 = vpop.f32.mrb[0].mxu0
      %v962 = vpop.f32.mrb[0].mxu0
      %963 = vdwg.mxu0
      %v965 = vsel %vm571, %v744, 0
      %v968 = vsel %vm920, %v746, 0
      %970 = vmatprep.subr.bf16.mxu0 0
      %971 = vmatpush1.bf16.msra.mxu0 %v968
      %972 = vmatprep.subr.bf16.mxu0 0
      %973 = vmatpush1.bf16.msra.mxu0 0
      %974 = vmatprep.subr.bf16.mxu0 0
      %975 = vmatpush1.bf16.msra.mxu0 0
      %976 = vmatprep.subr.bf16.mxu0 0
      %977 = vmatpush1.bf16.msra.mxu0 0
      %978 = vmatprep.subr.bf16.mxu0 0
      %979 = vmatpush1.bf16.msra.mxu0 0
      %980 = vmatprep.subr.bf16.mxu0 0
      %981 = vmatpush1.bf16.msra.mxu0 0
      %982 = vmatprep.subr.bf16.mxu0 0
      %983 = vmatpush1.bf16.msra.mxu0 0
      %984 = vmatprep.subr.bf16.mxu0 0
      %985 = vmatpush1.bf16.msra.mxu0 0
      %986 = vmatprep.subr.bf16.mxu0 0
      %987 = vmatpush1.bf16.msra.mxu0 0
      %988 = vmatprep.subr.bf16.mxu0 0
      %989 = vmatpush1.bf16.msra.mxu0 0
      %990 = vmatprep.subr.bf16.mxu0 0
      %991 = vmatpush1.bf16.msra.mxu0 0
      %992 = vmatprep.subr.bf16.mxu0 0
      %993 = vmatpush1.bf16.msra.mxu0 0
      %994 = vmatprep.subr.bf16.mxu0 0
      %995 = vmatpush1.bf16.msra.mxu0 0
      %996 = vmatprep.subr.bf16.mxu0 0
      %997 = vmatpush1.bf16.msra.mxu0 0
      %998 = vmatprep.subr.bf16.mxu0 0
      %999 = vmatpush1.bf16.msra.mxu0 0
      %1000 = vmatprep.subr.bf16.mxu0 0
      %1001 = vmatpush1.bf16.msra.mxu0 0
      %1002 = vmatprep.mubr.bf16.mxu0 0
      %1003 = vmatmul.mubr.bf16.gmra.mrb[0].mxu0 %v965
      %v1004 = vpop.f32.mrb[0].mxu0
      %v1005 = vadd.f32 %v959, %v1004
      %v1006 = vpop.f32.mrb[0].mxu0
      %v1007 = vpop.f32.mrb[0].mxu0
      %v1008 = vpop.f32.mrb[0].mxu0
      %1009 = vdwg.mxu0
      %1010 = vrot.lane.b32.xlu0 %v508, 112
      %v1011 = vpop.permute.xlu0 %1010
      %1012 = vrot.lane.b32.xlu0 %v565, 112
      %v1013 = vpop.permute.xlu0 %1012
      %v1014 = vsel %vm571, %v1011, 0
      %v1016 = vsel %vm571, %v1013, 0
      %1018 = vmatprep.subr.mxu0 0.0
      %1019 = vmatpush1.xpose.msra.mxu0 %v1016
      %1020 = vmatprep.subr.mxu0 0.0
      %1021 = vmatpush1.xpose.msra.mxu0 0.0
      %1022 = vmatprep.subr.mxu0 0.0
      %1023 = vmatpush1.xpose.msra.mxu0 0.0
      %1024 = vmatprep.subr.mxu0 0.0
      %1025 = vmatpush1.xpose.msra.mxu0 0.0
      %1026 = vmatprep.subr.mxu0 0.0
      %1027 = vmatpush1.xpose.msra.mxu0 0.0
      %1028 = vmatprep.subr.mxu0 0.0
      %1029 = vmatpush1.xpose.msra.mxu0 0.0
      %1030 = vmatprep.subr.mxu0 0.0
      %1031 = vmatpush1.xpose.msra.mxu0 0.0
      %1032 = vmatprep.subr.mxu0 0.0
      %1033 = vmatpush1.xpose.msra.mxu0 0.0
      %1034 = vmatprep.subr.mxu0 0.0
      %1035 = vmatpush1.xpose.msra.mxu0 0.0
      %1036 = vmatprep.subr.mxu0 0.0
      %1037 = vmatpush1.xpose.msra.mxu0 0.0
      %1038 = vmatprep.subr.mxu0 0.0
      %1039 = vmatpush1.xpose.msra.mxu0 0.0
      %1040 = vmatprep.subr.mxu0 0.0
      %1041 = vmatpush1.xpose.msra.mxu0 0.0
      %1042 = vmatprep.subr.mxu0 0.0
      %1043 = vmatpush1.xpose.msra.mxu0 0.0
      %1044 = vmatprep.subr.mxu0 0.0
      %1045 = vmatpush1.xpose.msra.mxu0 0.0
      %1046 = vmatprep.subr.mxu0 0.0
      %1047 = vmatpush1.xpose.msra.mxu0 0.0
      %1048 = vmatprep.subr.mxu0 0.0
      %1049 = vmatpush1.xpose.msra.mxu0 0.0
      %1050 = vmatprep.subr.mxu0 0.0
      %1051 = vmatpush1.xpose.msra.mxu0 0.0
      %1052 = vmatprep.subr.mxu0 0.0
      %1053 = vmatpush1.xpose.msra.mxu0 0.0
      %1054 = vmatprep.subr.mxu0 0.0
      %1055 = vmatpush1.xpose.msra.mxu0 0.0
      %1056 = vmatprep.subr.mxu0 0.0
      %1057 = vmatpush1.xpose.msra.mxu0 0.0
      %1058 = vmatprep.subr.mxu0 0.0
      %1059 = vmatpush1.xpose.msra.mxu0 0.0
      %1060 = vmatprep.subr.mxu0 0.0
      %1061 = vmatpush1.xpose.msra.mxu0 0.0
      %1062 = vmatprep.subr.mxu0 0.0
      %1063 = vmatpush1.xpose.msra.mxu0 0.0
      %1064 = vmatprep.subr.mxu0 0.0
      %1065 = vmatpush1.xpose.msra.mxu0 0.0
      %1066 = vmatprep.subr.mxu0 0.0
      %1067 = vmatpush1.xpose.msra.mxu0 0.0
      %1068 = vmatprep.subr.mxu0 0.0
      %1069 = vmatpush1.xpose.msra.mxu0 0.0
      %1070 = vmatprep.subr.mxu0 0.0
      %1071 = vmatpush1.xpose.msra.mxu0 0.0
      %1072 = vmatprep.subr.mxu0 0.0
      %1073 = vmatpush1.xpose.msra.mxu0 0.0
      %1074 = vmatprep.subr.mxu0 0.0
      %1075 = vmatpush1.xpose.msra.mxu0 0.0
      %1076 = vmatprep.subr.mxu0 0.0
      %1077 = vmatpush1.xpose.msra.mxu0 0.0
      %1078 = vmatprep.subr.mxu0 0.0
      %1079 = vmatpush1.xpose.msra.mxu0 0.0
      %1080 = vmatprep.subr.mxu0 0.0
      %1081 = vmatpush1.xpose.msra.mxu0 0.0
      %1082 = vmatprep.mubr.f32.mxu0 0.0
      %1083 = vmatmul.mubr.f32.gmra.mrb[0].mxu0 %v1014
      %v1084 = vpop.f32.mrb[0].mxu0
      %v1085 = vadd.f32 0.0, %v1084
      %v1086 = vpop.f32.mrb[0].mxu0
      %1087 = vdwg.mxu0
      %v1088 = vmul.f32 %v1085, 0.35355338
      %v1089 = vsel %vm655, -1e+09, %v1088
      %v1090 = vsel %vm571, %v1089, -inf
      %1091 = vmax.xlane.f32.xlu0 %v1090
      %v1092 = vpop.xlane.xlu0 %1091
      %v1093 = vsub.f32 %v1089, %v1092
      %v1094 = vmul.f32 %v1093, 1.442695
      %v1095 = vpow.pop %v1094
      %v1096 = vsel %vm571, %v1095, 0.0
      %1097 = vadd.xlane.f32.xlu0 %v1096
      %v1098 = vpop.xlane.xlu0 %1097
      %v1099 = vrcp.pop %v1098
      %v1100 = vmul.f32 %v1095, %v1099
      %1101 = vrot.lane.b32.xlu0 %v565, 80
      %v1102 = vpop.permute.xlu0 %1101
      %v1105 = vsel %vm571, %v1100, 0
      %1107 = vmatprep.subr.mxu0 0.0
      %1108 = vmatpush1.msra.mxu0 %v1102
      %1109 = vmatprep.subr.mxu0 0.0
      %1110 = vmatpush1.msra.mxu0 0.0
      %1111 = vmatprep.subr.mxu0 0.0
      %1112 = vmatpush1.msra.mxu0 0.0
      %1113 = vmatprep.subr.mxu0 0.0
      %1114 = vmatpush1.msra.mxu0 0.0
      %1115 = vmatprep.subr.mxu0 0.0
      %1116 = vmatpush1.msra.mxu0 0.0
      %1117 = vmatprep.subr.mxu0 0.0
      %1118 = vmatpush1.msra.mxu0 0.0
      %1119 = vmatprep.subr.mxu0 0.0
      %1120 = vmatpush1.msra.mxu0 0.0
      %1121 = vmatprep.subr.mxu0 0.0
      %1122 = vmatpush1.msra.mxu0 0.0
      %1123 = vmatprep.subr.mxu0 0.0
      %1124 = vmatpush1.msra.mxu0 0.0
      %1125 = vmatprep.subr.mxu0 0.0
      %1126 = vmatpush1.msra.mxu0 0.0
      %1127 = vmatprep.subr.mxu0 0.0
      %1128 = vmatpush1.msra.mxu0 0.0
      %1129 = vmatprep.subr.mxu0 0.0
      %1130 = vmatpush1.msra.mxu0 0.0
      %1131 = vmatprep.subr.mxu0 0.0
      %1132 = vmatpush1.msra.mxu0 0.0
      %1133 = vmatprep.subr.mxu0 0.0
      %1134 = vmatpush1.msra.mxu0 0.0
      %1135 = vmatprep.subr.mxu0 0.0
      %1136 = vmatpush1.msra.mxu0 0.0
      %1137 = vmatprep.subr.mxu0 0.0
      %1138 = vmatpush1.msra.mxu0 0.0
      %1139 = vmatprep.subr.mxu0 0.0
      %1140 = vmatpush1.msra.mxu0 0.0
      %1141 = vmatprep.subr.mxu0 0.0
      %1142 = vmatpush1.msra.mxu0 0.0
      %1143 = vmatprep.subr.mxu0 0.0
      %1144 = vmatpush1.msra.mxu0 0.0
      %1145 = vmatprep.subr.mxu0 0.0
      %1146 = vmatpush1.msra.mxu0 0.0
      %1147 = vmatprep.subr.mxu0 0.0
      %1148 = vmatpush1.msra.mxu0 0.0
      %1149 = vmatprep.subr.mxu0 0.0
      %1150 = vmatpush1.msra.mxu0 0.0
      %1151 = vmatprep.subr.mxu0 0.0
      %1152 = vmatpush1.msra.mxu0 0.0
      %1153 = vmatprep.subr.mxu0 0.0
      %1154 = vmatpush1.msra.mxu0 0.0
      %1155 = vmatprep.subr.mxu0 0.0
      %1156 = vmatpush1.msra.mxu0 0.0
      %1157 = vmatprep.subr.mxu0 0.0
      %1158 = vmatpush1.msra.mxu0 0.0
      %1159 = vmatprep.subr.mxu0 0.0
      %1160 = vmatpush1.msra.mxu0 0.0
      %1161 = vmatprep.subr.mxu0 0.0
      %1162 = vmatpush1.msra.mxu0 0.0
      %1163 = vmatprep.subr.mxu0 0.0
      %1164 = vmatpush1.msra.mxu0 0.0
      %1165 = vmatprep.subr.mxu0 0.0
      %1166 = vmatpush1.msra.mxu0 0.0
      %1167 = vmatprep.subr.mxu0 0.0
      %1168 = vmatpush1.msra.mxu0 0.0
      %1169 = vmatprep.subr.mxu0 0.0
      %1170 = vmatpush1.msra.mxu0 0.0
      %1171 = vmatprep.mubr.f32.mxu0 0.0
      %1172 = vmatmul.mubr.f32.gmra.mrb[0].mxu0 %v1105
      %v1173 = vpop.f32.mrb[0].mxu0
      %v1174 = vadd.f32 0.0, %v1173
      %v1175 = vpop.f32.mrb[0].mxu0
      %1176 = vdwg.mxu0
      %v1177 = vpack.c.bf16 %v1174, %v1174
      %v1178 = vld [vmem:[%s9 + $0x10] sm:$0xff]
      %v1179 = vpack.c.bf16 %v1178, %v1178
      %v1181 = vsel %vm571, %v1177, 0
      %v1184 = vsel %vm920, %v1179, 0
      %1186 = vmatprep.subr.bf16.mxu0 0
      %1187 = vmatpush1.bf16.msra.mxu0 %v1184
      %1188 = vmatprep.subr.bf16.mxu0 0
      %1189 = vmatpush1.bf16.msra.mxu0 0
      %1190 = vmatprep.subr.bf16.mxu0 0
      %1191 = vmatpush1.bf16.msra.mxu0 0
      %1192 = vmatprep.subr.bf16.mxu0 0
      %1193 = vmatpush1.bf16.msra.mxu0 0
      %1194 = vmatprep.subr.bf16.mxu0 0
      %1195 = vmatpush1.bf16.msra.mxu0 0
      %1196 = vmatprep.subr.bf16.mxu0 0
      %1197 = vmatpush1.bf16.msra.mxu0 0
      %1198 = vmatprep.subr.bf16.mxu0 0
      %1199 = vmatpush1.bf16.msra.mxu0 0
      %1200 = vmatprep.subr.bf16.mxu0 0
      %1201 = vmatpush1.bf16.msra.mxu0 0
      %1202 = vmatprep.subr.bf16.mxu0 0
      %1203 = vmatpush1.bf16.msra.mxu0 0
      %1204 = vmatprep.subr.bf16.mxu0 0
      %1205 = vmatpush1.bf16.msra.mxu0 0
      %1206 = vmatprep.subr.bf16.mxu0 0
      %1207 = vmatpush1.bf16.msra.mxu0 0
      %1208 = vmatprep.subr.bf16.mxu0 0
      %1209 = vmatpush1.bf16.msra.mxu0 0
      %1210 = vmatprep.subr.bf16.mxu0 0
      %1211 = vmatpush1.bf16.msra.mxu0 0
      %1212 = vmatprep.subr.bf16.mxu0 0
      %1213 = vmatpush1.bf16.msra.mxu0 0
      %1214 = vmatprep.subr.bf16.mxu0 0
      %1215 = vmatpush1.bf16.msra.mxu0 0
      %1216 = vmatprep.subr.bf16.mxu0 0
      %1217 = vmatpush1.bf16.msra.mxu0 0
      %1218 = vmatprep.mubr.bf16.mxu0 0
      %1219 = vmatmul.mubr.bf16.gmra.mrb[0].mxu0 %v1181
      %v1220 = vpop.f32.mrb[0].mxu0
      %v1221 = vadd.f32 0.0, %v1220
      %v1222 = vpop.f32.mrb[0].mxu0
      %v1223 = vpop.f32.mrb[0].mxu0
      %v1224 = vpop.f32.mrb[0].mxu0
      %1225 = vdwg.mxu0
      %v1226 = vadd.f32 %v1005, %v1221
      %1227 = vrot.lane.b32.xlu0 %v508, 104
      %v1228 = vpop.permute.xlu0 %1227
      %1229 = vrot.lane.b32.xlu0 %v565, 104
      %v1230 = vpop.permute.xlu0 %1229
      %v1231 = vsel %vm571, %v1228, 0
      %v1233 = vsel %vm571, %v1230, 0
      %1235 = vmatprep.subr.mxu0 0.0
      %1236 = vmatpush1.xpose.msra.mxu0 %v1233
      %1237 = vmatprep.subr.mxu0 0.0
      %1238 = vmatpush1.xpose.msra.mxu0 0.0
      %1239 = vmatprep.subr.mxu0 0.0
      %1240 = vmatpush1.xpose.msra.mxu0 0.0
      %1241 = vmatprep.subr.mxu0 0.0
      %1242 = vmatpush1.xpose.msra.mxu0 0.0
      %1243 = vmatprep.subr.mxu0 0.0
      %1244 = vmatpush1.xpose.msra.mxu0 0.0
      %1245 = vmatprep.subr.mxu0 0.0
      %1246 = vmatpush1.xpose.msra.mxu0 0.0
      %1247 = vmatprep.subr.mxu0 0.0
      %1248 = vmatpush1.xpose.msra.mxu0 0.0
      %1249 = vmatprep.subr.mxu0 0.0
      %1250 = vmatpush1.xpose.msra.mxu0 0.0
      %1251 = vmatprep.subr.mxu0 0.0
      %1252 = vmatpush1.xpose.msra.mxu0 0.0
      %1253 = vmatprep.subr.mxu0 0.0
      %1254 = vmatpush1.xpose.msra.mxu0 0.0
      %1255 = vmatprep.subr.mxu0 0.0
      %1256 = vmatpush1.xpose.msra.mxu0 0.0
      %1257 = vmatprep.subr.mxu0 0.0
      %1258 = vmatpush1.xpose.msra.mxu0 0.0
      %1259 = vmatprep.subr.mxu0 0.0
      %1260 = vmatpush1.xpose.msra.mxu0 0.0
      %1261 = vmatprep.subr.mxu0 0.0
      %1262 = vmatpush1.xpose.msra.mxu0 0.0
      %1263 = vmatprep.subr.mxu0 0.0
      %1264 = vmatpush1.xpose.msra.mxu0 0.0
      %1265 = vmatprep.subr.mxu0 0.0
      %1266 = vmatpush1.xpose.msra.mxu0 0.0
      %1267 = vmatprep.subr.mxu0 0.0
      %1268 = vmatpush1.xpose.msra.mxu0 0.0
      %1269 = vmatprep.subr.mxu0 0.0
      %1270 = vmatpush1.xpose.msra.mxu0 0.0
      %1271 = vmatprep.subr.mxu0 0.0
      %1272 = vmatpush1.xpose.msra.mxu0 0.0
      %1273 = vmatprep.subr.mxu0 0.0
      %1274 = vmatpush1.xpose.msra.mxu0 0.0
      %1275 = vmatprep.subr.mxu0 0.0
      %1276 = vmatpush1.xpose.msra.mxu0 0.0
      %1277 = vmatprep.subr.mxu0 0.0
      %1278 = vmatpush1.xpose.msra.mxu0 0.0
      %1279 = vmatprep.subr.mxu0 0.0
      %1280 = vmatpush1.xpose.msra.mxu0 0.0
      %1281 = vmatprep.subr.mxu0 0.0
      %1282 = vmatpush1.xpose.msra.mxu0 0.0
      %1283 = vmatprep.subr.mxu0 0.0
      %1284 = vmatpush1.xpose.msra.mxu0 0.0
      %1285 = vmatprep.subr.mxu0 0.0
      %1286 = vmatpush1.xpose.msra.mxu0 0.0
      %1287 = vmatprep.subr.mxu0 0.0
      %1288 = vmatpush1.xpose.msra.mxu0 0.0
      %1289 = vmatprep.subr.mxu0 0.0
      %1290 = vmatpush1.xpose.msra.mxu0 0.0
      %1291 = vmatprep.subr.mxu0 0.0
      %1292 = vmatpush1.xpose.msra.mxu0 0.0
      %1293 = vmatprep.subr.mxu0 0.0
      %1294 = vmatpush1.xpose.msra.mxu0 0.0
      %1295 = vmatprep.subr.mxu0 0.0
      %1296 = vmatpush1.xpose.msra.mxu0 0.0
      %1297 = vmatprep.subr.mxu0 0.0
      %1298 = vmatpush1.xpose.msra.mxu0 0.0
      %1299 = vmatprep.mubr.f32.mxu0 0.0
      %1300 = vmatmul.mubr.f32.gmra.mrb[0].mxu0 %v1231
      %v1301 = vpop.f32.mrb[0].mxu0
      %v1302 = vadd.f32 0.0, %v1301
      %v1303 = vpop.f32.mrb[0].mxu0
      %1304 = vdwg.mxu0
      %v1305 = vmul.f32 %v1302, 0.35355338
      %v1306 = vsel %vm655, -1e+09, %v1305
      %v1307 = vsel %vm571, %v1306, -inf
      %1308 = vmax.xlane.f32.xlu0 %v1307
      %v1309 = vpop.xlane.xlu0 %1308
      %v1310 = vsub.f32 %v1306, %v1309
      %v1311 = vmul.f32 %v1310, 1.442695
      %v1312 = vpow.pop %v1311
      %v1313 = vsel %vm571, %v1312, 0.0
      %1314 = vadd.xlane.f32.xlu0 %v1313
      %v1315 = vpop.xlane.xlu0 %1314
      %v1316 = vrcp.pop %v1315
      %v1317 = vmul.f32 %v1312, %v1316
      %1318 = vrot.lane.b32.xlu0 %v565, 72
      %v1319 = vpop.permute.xlu0 %1318
      %v1322 = vsel %vm571, %v1317, 0
      %1324 = vmatprep.subr.mxu0 0.0
      %1325 = vmatpush1.msra.mxu0 %v1319
      %1326 = vmatprep.subr.mxu0 0.0
      %1327 = vmatpush1.msra.mxu0 0.0
      %1328 = vmatprep.subr.mxu0 0.0
      %1329 = vmatpush1.msra.mxu0 0.0
      %1330 = vmatprep.subr.mxu0 0.0
      %1331 = vmatpush1.msra.mxu0 0.0
      %1332 = vmatprep.subr.mxu0 0.0
      %1333 = vmatpush1.msra.mxu0 0.0
      %1334 = vmatprep.subr.mxu0 0.0
      %1335 = vmatpush1.msra.mxu0 0.0
      %1336 = vmatprep.subr.mxu0 0.0
      %1337 = vmatpush1.msra.mxu0 0.0
      %1338 = vmatprep.subr.mxu0 0.0
      %1339 = vmatpush1.msra.mxu0 0.0
      %1340 = vmatprep.subr.mxu0 0.0
      %1341 = vmatpush1.msra.mxu0 0.0
      %1342 = vmatprep.subr.mxu0 0.0
      %1343 = vmatpush1.msra.mxu0 0.0
      %1344 = vmatprep.subr.mxu0 0.0
      %1345 = vmatpush1.msra.mxu0 0.0
      %1346 = vmatprep.subr.mxu0 0.0
      %1347 = vmatpush1.msra.mxu0 0.0
      %1348 = vmatprep.subr.mxu0 0.0
      %1349 = vmatpush1.msra.mxu0 0.0
      %1350 = vmatprep.subr.mxu0 0.0
      %1351 = vmatpush1.msra.mxu0 0.0
      %1352 = vmatprep.subr.mxu0 0.0
      %1353 = vmatpush1.msra.mxu0 0.0
      %1354 = vmatprep.subr.mxu0 0.0
      %1355 = vmatpush1.msra.mxu0 0.0
      %1356 = vmatprep.subr.mxu0 0.0
      %1357 = vmatpush1.msra.mxu0 0.0
      %1358 = vmatprep.subr.mxu0 0.0
      %1359 = vmatpush1.msra.mxu0 0.0
      %1360 = vmatprep.subr.mxu0 0.0
      %1361 = vmatpush1.msra.mxu0 0.0
      %1362 = vmatprep.subr.mxu0 0.0
      %1363 = vmatpush1.msra.mxu0 0.0
      %1364 = vmatprep.subr.mxu0 0.0
      %1365 = vmatpush1.msra.mxu0 0.0
      %1366 = vmatprep.subr.mxu0 0.0
      %1367 = vmatpush1.msra.mxu0 0.0
      %1368 = vmatprep.subr.mxu0 0.0
      %1369 = vmatpush1.msra.mxu0 0.0
      %1370 = vmatprep.subr.mxu0 0.0
      %1371 = vmatpush1.msra.mxu0 0.0
      %1372 = vmatprep.subr.mxu0 0.0
      %1373 = vmatpush1.msra.mxu0 0.0
      %1374 = vmatprep.subr.mxu0 0.0
      %1375 = vmatpush1.msra.mxu0 0.0
      %1376 = vmatprep.subr.mxu0 0.0
      %1377 = vmatpush1.msra.mxu0 0.0
      %1378 = vmatprep.subr.mxu0 0.0
      %1379 = vmatpush1.msra.mxu0 0.0
      %1380 = vmatprep.subr.mxu0 0.0
      %1381 = vmatpush1.msra.mxu0 0.0
      %1382 = vmatprep.subr.mxu0 0.0
      %1383 = vmatpush1.msra.mxu0 0.0
      %1384 = vmatprep.subr.mxu0 0.0
      %1385 = vmatpush1.msra.mxu0 0.0
      %1386 = vmatprep.subr.mxu0 0.0
      %1387 = vmatpush1.msra.mxu0 0.0
      %1388 = vmatprep.mubr.f32.mxu0 0.0
      %1389 = vmatmul.mubr.f32.gmra.mrb[0].mxu0 %v1322
      %v1390 = vpop.f32.mrb[0].mxu0
      %v1391 = vadd.f32 0.0, %v1390
      %v1392 = vpop.f32.mrb[0].mxu0
      %1393 = vdwg.mxu0
      %v1394 = vpack.c.bf16 %v1391, %v1391
      %v1395 = vld [vmem:[%s9 + $0x18] sm:$0xff]
      %v1396 = vpack.c.bf16 %v1395, %v1395
      %v1398 = vsel %vm571, %v1394, 0
      %v1401 = vsel %vm920, %v1396, 0
      %1403 = vmatprep.subr.bf16.mxu0 0
      %1404 = vmatpush1.bf16.msra.mxu0 %v1401
      %1405 = vmatprep.subr.bf16.mxu0 0
      %1406 = vmatpush1.bf16.msra.mxu0 0
      %1407 = vmatprep.subr.bf16.mxu0 0
      %1408 = vmatpush1.bf16.msra.mxu0 0
      %1409 = vmatprep.subr.bf16.mxu0 0
      %1410 = vmatpush1.bf16.msra.mxu0 0
      %1411 = vmatprep.subr.bf16.mxu0 0
      %1412 = vmatpush1.bf16.msra.mxu0 0
      %1413 = vmatprep.subr.bf16.mxu0 0
      %1414 = vmatpush1.bf16.msra.mxu0 0
      %1415 = vmatprep.subr.bf16.mxu0 0
      %1416 = vmatpush1.bf16.msra.mxu0 0
      %1417 = vmatprep.subr.bf16.mxu0 0
      %1418 = vmatpush1.bf16.msra.mxu0 0
      %1419 = vmatprep.subr.bf16.mxu0 0
      %1420 = vmatpush1.bf16.msra.mxu0 0
      %1421 = vmatprep.subr.bf16.mxu0 0
      %1422 = vmatpush1.bf16.msra.mxu0 0
      %1423 = vmatprep.subr.bf16.mxu0 0
      %1424 = vmatpush1.bf16.msra.mxu0 0
      %1425 = vmatprep.subr.bf16.mxu0 0
      %1426 = vmatpush1.bf16.msra.mxu0 0
      %1427 = vmatprep.subr.bf16.mxu0 0
      %1428 = vmatpush1.bf16.msra.mxu0 0
      %1429 = vmatprep.subr.bf16.mxu0 0
      %1430 = vmatpush1.bf16.msra.mxu0 0
      %1431 = vmatprep.subr.bf16.mxu0 0
      %1432 = vmatpush1.bf16.msra.mxu0 0
      %1433 = vmatprep.subr.bf16.mxu0 0
      %1434 = vmatpush1.bf16.msra.mxu0 0
      %1435 = vmatprep.mubr.bf16.mxu0 0
      %1436 = vmatmul.mubr.bf16.gmra.mrb[0].mxu0 %v1398
      %v1437 = vpop.f32.mrb[0].mxu0
      %v1438 = vadd.f32 0.0, %v1437
      %v1439 = vpop.f32.mrb[0].mxu0
      %v1440 = vpop.f32.mrb[0].mxu0
      %v1441 = vpop.f32.mrb[0].mxu0
      %1442 = vdwg.mxu0
      %v1443 = vadd.f32 %v1226, %v1438
      %v1445 = vlaneseq
      %v1446 = vshrl.u32 %v1445, 7
      %v1447 = vsub.s32 0, %v1446
      %v1448 = vrot.slane %v570, %v1447
      %v1450 = vadd.f32 %v1443, %v1448
      %v1451 = vadd.f32 %v414, %v1450
      %1452 = vst.msk [vmem:[%s412] sm:$0xff] %vm419, %v1451
      %p1453 = scmp.lt.s32.totalorder %s22, 1
      %s1454 = scalar_select %p1453, %s22, 1
      %s1455 = smul.addr %s1454, 8
      %s1456 = scalar_lea.vmem %s11, %s1455
      // Predicated region
      $region65: #{encoder_decoder_forward.18} parent=63 // pred_check
        %p1457 = pneg %p286
      $region66: #{encoder_decoder_forward.18} parent=63 // pred_check_branch
        %1459 = sbr.rel (%p1457) target = $region68
      $region67: #{encoder_decoder_forward.18} parent=63 // pred_region
        _
      $region68: #{encoder_decoder_forward.18} parent=63 // pred_fallthru
        _
    $region64: #{encoder_decoder_forward.18} parent=5 // pred_fallthru
      _
    %p1460 = scmp.le.s32.totalorder 2, %s17
    // Predicated region
    $region69: #{encoder_decoder_forward.18} parent=5 // pred_check
      %p1461 = pneg %p1460
    $region70: #{encoder_decoder_forward.18} parent=5 // pred_check_branch
      %1463 = sbr.rel (%p1461) target = $region72
    $region71: #{encoder_decoder_forward.18} parent=5 // pred_region
      %s1464 = ssub.s32 %s17, 2
      // Predicated region
      $region73: #{encoder_decoder_forward.18} parent=71 // pred_check
        %p1465 = pneg %p292
      $region74: #{encoder_decoder_forward.18} parent=71 // pred_check_branch
        %1467 = sbr.rel (%p1465) target = $region76
      $region75: #{encoder_decoder_forward.18} parent=71 // pred_region
        %p1468 = scmp.lt.s32.totalorder %s23, 1
        %s1469 = scalar_select %p1468, %s23, 1
        %s1470 = smul.addr %s1469, 8
        %s1471 = scalar_lea.vmem %s11, %s1470
      $region76: #{encoder_decoder_forward.18} parent=71 // pred_fallthru
        _
    $region72: #{encoder_decoder_forward.18} parent=5 // pred_fallthru
      _
  $region6: #{encoder_decoder_forward.18} parent=0 // loop_footer
    %s21 = sadd.s32 1, %s17
  $region7: #{encoder_decoder_forward.18} parent=0 // loop_footer_branch
    %16 = sbr.rel target = $region3
  $region8: #{encoder_decoder_forward.18} parent=0 // loop_exit
    _

</llo_original>
